<compile_context>
chip_gen: v7x
topology: tpu7x:2x2x1
jax: 0.10.0
libtpu: 0.0.40
codegen_flags: <defaults>
</compile_context>

<pallas_src>
import functools
import math

import jax
import jax.numpy as jnp
from jax.experimental import pallas as pl
from jax.experimental.pallas import tpu as pltpu


# ------------------------------ small helpers -------------------------------

def _round_up(x, m):
    return ((x + m - 1) // m) * m


def _choose_m_tiling(M, cap=512):
    """Row (sublane) tiling: prefer tiles that divide M exactly (no pad / no
    slice-back) and >=2 blocks when M allows it (feeds both v7x TensorCores)."""
    if M <= cap:
        if M >= 32 and M % 16 == 0:
            return M // 2, M                 # two parallel blocks
        return M, M                          # single block (full-dims rule)
    for t in (cap, 384, 256, 128, 64, 32, 16, 8):
        if t <= cap and M % t == 0:
            return t, M
    t = max(8, min(256, (cap // 8) * 8))
    return t, _round_up(M, t)


def _choose_n_tiling(Np, cap=2048):
    """Lane tiling of the (pre-padded, 128-multiple) output width."""
    if Np <= cap:
        return Np                            # whole weight resident in VMEM
    for t in (2048, 1024, 512, 256, 128):
        if Np % t == 0:
            return t
    return 128


def _pad_lanes(a):
    n = a.shape[-1]
    np_ = _round_up(n, 128)
    if np_ != n:
        a = jnp.pad(a, ((0, 0), (0, np_ - n)))
    return a


# --------------- fused resident-weight matmul + bias + activation -----------

def _matmul_bias_act_kernel(x_ref, w_ref, b_ref, o_ref, *, act):
    # single-shot contraction: f32 accumulate on the MXU, epilogue in f32
    y = jnp.dot(x_ref[...], w_ref[...], preferred_element_type=jnp.float32)
    y = y + b_ref[...]
    if act == "relu":
        y = jnp.maximum(y, 0.0)
    elif act == "sigmoid":
        y = jax.nn.sigmoid(y)
    o_ref[...] = y.astype(o_ref.dtype)


def matmul_bias_act(x, w2, b2, *, act="none", out_dtype=jnp.bfloat16, n_valid=None):
    """act(x @ w2 + b2).

    x : (M, K)  any float dtype (usually already bf16)
    w2: (K, Np) bf16, lane-padded to a 128 multiple in prepare_params
    b2: (1, Np) f32,  lane-padded likewise
    Returns (M, n_valid) in out_dtype; accumulation is f32 inside the kernel.
    """
    M, K = x.shape
    K2, Np = w2.shape
    assert K == K2 and Np % 128 == 0 and b2.shape == (1, Np)

    tm, Mp = _choose_m_tiling(M)
    tn = _choose_n_tiling(Np)

    xb = x.astype(jnp.bfloat16)
    if Mp != M:
        xb = jnp.pad(xb, ((0, Mp - M), (0, 0)))

    out_bytes = jnp.dtype(out_dtype).itemsize
    out = pl.pallas_call(
        functools.partial(_matmul_bias_act_kernel, act=act),
        out_shape=jax.ShapeDtypeStruct((Mp, Np), out_dtype),
        grid=(Mp // tm, Np // tn),
        in_specs=[
            pl.BlockSpec((tm, K), lambda i, j: (i, 0)),   # activations: tiled on M
            pl.BlockSpec((K, tn), lambda i, j: (0, j)),   # weight: VMEM-resident
            pl.BlockSpec((1, tn), lambda i, j: (0, j)),   # bias:   VMEM-resident
        ],
        out_specs=pl.BlockSpec((tm, tn), lambda i, j: (i, j)),
        compiler_params=pltpu.CompilerParams(
            dimension_semantics=("parallel", "parallel"),
            vmem_limit_bytes=64 * 1024 * 1024,
        ),
        cost_estimate=pl.CostEstimate(
            flops=2 * Mp * Np * K,
            transcendentals=(Mp * Np if act == "sigmoid" else 0),
            bytes_accessed=(Mp * K + K * Np) * 2 + Np * 4 + Mp * Np * out_bytes,
        ),
    )(xb, w2, b2)

    if Mp != M:
        out = out[:M]
    if n_valid is not None and n_valid != Np:
        out = out[:, :n_valid]
    return out


# ------------------------- corruption (x + sigma*n) --------------------------

def _corrupt_prng_kernel(seed_ref, x_ref, o_ref, *, scale):
    # deterministic per-block seed; noise is generated on-chip (no HBM round trip)
    pltpu.prng_seed(seed_ref[0] + pl.program_id(0))
    noise = pltpu.stateful_normal(x_ref.shape, jnp.float32)
    o_ref[...] = (x_ref[...] + scale * noise).astype(o_ref.dtype)


def _corrupt_add_kernel(x_ref, n_ref, o_ref, *, scale):
    o_ref[...] = (x_ref[...] + scale * n_ref[...]).astype(o_ref.dtype)


def _detect_inkernel_prng():
    """Probe once whether the on-chip normal sampler is available/usable."""
    if not (hasattr(pltpu, "prng_seed") and hasattr(pltpu, "stateful_normal")):
        return False
    try:
        def _k(o_ref):
            pltpu.prng_seed(12345)
            o_ref[...] = pltpu.stateful_normal((8, 128), jnp.float32)
        out = pl.pallas_call(
            _k, out_shape=jax.ShapeDtypeStruct((8, 128), jnp.float32))()
        jax.block_until_ready(out)
        return bool(jnp.all(jnp.isfinite(out)))
    except Exception:
        return False


_HAS_INKERNEL_PRNG = _detect_inkernel_prng()


def corrupt(x_nhwc, noise_key, scale):
    """x + scale*N(0,1), fused Pallas kernel, bf16 output, NHWC layout kept."""
    N, H, W, C = x_nhwc.shape
    x2d = x_nhwc.reshape(N, -1).astype(jnp.float32)
    R, Cc = x2d.shape
    cap = max(8, min(256, ((2 * 1024 * 1024) // max(1, Cc * 4) // 8) * 8))
    tr, Rp = _choose_m_tiling(R, cap=cap)
    if Rp != R:
        x2d = jnp.pad(x2d, ((0, Rp - R), (0, 0)))

    if _HAS_INKERNEL_PRNG:
        seed = jax.random.randint(noise_key, (1,), 0,
                                  jnp.iinfo(jnp.int32).max, dtype=jnp.int32)
        out = pl.pallas_call(
            functools.partial(_corrupt_prng_kernel, scale=scale),
            out_shape=jax.ShapeDtypeStruct((Rp, Cc), jnp.bfloat16),
            grid_spec=pltpu.PrefetchScalarGridSpec(
                num_scalar_prefetch=1,
                grid=(Rp // tr,),
                in_specs=[pl.BlockSpec((tr, Cc), lambda i, s: (i, 0))],
                out_specs=pl.BlockSpec((tr, Cc), lambda i, s: (i, 0)),
            ),
            compiler_params=pltpu.CompilerParams(
                dimension_semantics=("parallel",)),
        )(seed, x2d)
    else:
        noise = jax.random.normal(noise_key, x2d.shape, jnp.float32)
        out = pl.pallas_call(
            functools.partial(_corrupt_add_kernel, scale=scale),
            out_shape=jax.ShapeDtypeStruct((Rp, Cc), jnp.bfloat16),
            grid=(Rp // tr,),
            in_specs=[pl.BlockSpec((tr, Cc), lambda i: (i, 0)),
                      pl.BlockSpec((tr, Cc), lambda i: (i, 0))],
            out_specs=pl.BlockSpec((tr, Cc), lambda i: (i, 0)),
            compiler_params=pltpu.CompilerParams(
                dimension_semantics=("parallel",)),
        )(x2d, noise)

    if Rp != R:
        out = out[:R]
    return out.reshape(N, H, W, C)


# ------------------------------- conv glue (NHWC) ----------------------------

def _im2col_nhwc(x, K, stride, pad):
    """(N,H,W,C) -> (N*Hout*Wout, K*K*C) bf16 patches, tap-major (KH,KW,C)."""
    N, H, W, C = x.shape
    xp = jnp.pad(x, ((0, 0), (pad, pad), (pad, pad), (0, 0)))
    Hout = (H + 2 * pad - K) // stride + 1
    Wout = (W + 2 * pad - K) // stride + 1
    taps = []
    for i in range(K):
        for j in range(K):
            taps.append(xp[:, i:i + stride * Hout:stride,
                           j:j + stride * Wout:stride, :])
    patches = jnp.stack(taps, axis=3).reshape(N * Hout * Wout, K * K * C)
    return patches, Hout, Wout


def conv2d_nhwc(x, w2, b2, cout, K, stride, pad, act, out_dtype=jnp.bfloat16):
    # TODO(synk): fuse im2col into the GEMM kernel (per-tap accumulation) to
    #             avoid materialising the KxK-amplified patch matrix in HBM.
    N = x.shape[0]
    patches, Hout, Wout = _im2col_nhwc(x, K, stride, pad)
    out = matmul_bias_act(patches, w2, b2, act=act, out_dtype=out_dtype,
                          n_valid=cout)
    return out.reshape(N, Hout, Wout, cout)


def conv_transpose2d_x2_nhwc(x, w2, b2, cout, act, out_dtype=jnp.bfloat16):
    """ConvTranspose2d(k=3, stride=2, padding=1, output_padding=1) via the
    sub-pixel decomposition: one dense GEMM over the 2x2 input taps emits all
    four output phases (lane dim = 4*Cout), then pixel-shuffle.  No zero-dilated
    input is ever materialised."""
    # TODO(synk): for the final Cout=3 layer, also fold spatial width into the
    #             lane dim to avoid padding 12 lanes up to 128.
    N, H, W, C = x.shape
    xp = jnp.pad(x, ((0, 0), (0, 1), (0, 1), (0, 0)))
    taps = [xp[:, ry:ry + H, rx:rx + W, :] for ry in (0, 1) for rx in (0, 1)]
    patches = jnp.concatenate(taps, axis=-1).reshape(N * H * W, 4 * C)
    out = matmul_bias_act(patches, w2, b2, act=act, out_dtype=out_dtype,
                          n_valid=4 * cout)
    out = out.reshape(N, H, W, 2, 2, cout)
    out = jnp.transpose(out, (0, 1, 3, 2, 4, 5)).reshape(N, 2 * H, 2 * W, cout)
    return out


# ------------------------------ IDAE parameters ------------------------------

def init_params(key, nz, imSize, fSize):
    inSize = imSize // 16                     # imSize / 2**4
    flat = fSize * 8 * inSize * inSize
    ks = jax.random.split(key, 20)

    def w(k, shape, scale=0.05):
        return scale * jax.random.normal(k, shape, jnp.float32)

    p = {
        "enc1_w": w(ks[0], (fSize, 3, 5, 5)),              "enc1_b": w(ks[1], (fSize,)),
        "enc2_w": w(ks[2], (fSize * 2, fSize, 5, 5)),      "enc2_b": w(ks[3], (fSize * 2,)),
        "enc3_w": w(ks[4], (fSize * 4, fSize * 2, 5, 5)),  "enc3_b": w(ks[5], (fSize * 4,)),
        "enc4_w": w(ks[6], (fSize * 8, fSize * 4, 5, 5)),  "enc4_b": w(ks[7], (fSize * 8,)),
        "enc5_w": w(ks[8], (nz, flat)),                    "enc5_b": w(ks[9], (nz,)),
        "dec1_w": w(ks[10], (flat, nz)),                   "dec1_b": w(ks[11], (flat,)),
        "dec2_w": w(ks[12], (fSize * 8, fSize * 4, 3, 3)), "dec2_b": w(ks[13], (fSize * 4,)),
        "dec3_w": w(ks[14], (fSize * 4, fSize * 2, 3, 3)), "dec3_b": w(ks[15], (fSize * 2,)),
        "dec4_w": w(ks[16], (fSize * 2, fSize, 3, 3)),     "dec4_b": w(ks[17], (fSize,)),
        "dec5_w": w(ks[18], (fSize, 3, 3, 3)),             "dec5_b": w(ks[19], (3,)),
    }
    return p, inSize


def prepare_params(p):
    """One-time weight layout prep: matmul-ready, bf16-cast, lane-padded to 128."""

    def conv_w2(w):                           # Conv2d (Cout,Cin,K,K) -> (K*K*Cin, Np)
        cout = w.shape[0]
        w2 = jnp.transpose(w, (2, 3, 1, 0)).reshape(-1, cout)
        return _pad_lanes(w2).astype(jnp.bfloat16)

    def lin_w2(w):                            # Linear (out,in) -> (in, Np)
        return _pad_lanes(w.T).astype(jnp.bfloat16)

    def bias2(b):
        return _pad_lanes(b.reshape(1, -1).astype(jnp.float32))

    def convT_sub_w2(w):
        # ConvTranspose2d weight (Cin,Cout,3,3) with stride=2, pad=1, out_pad=1.
        # Sub-pixel weight (4*Cin, 4*Cout):
        #   row  ((ry,rx),ci) = input tap in[p+ry, q+rx]
        #   col  ((dy,dx),co) = output phase out[2p+dy, 2q+dx]
        #   entry = w[ci,co,ky,kx] with ky = dy-2*ry+1, kx = dx-2*rx+1 (else 0)
        cin, cout = w.shape[0], w.shape[1]
        rows = []
        for ry in (0, 1):
            for rx in (0, 1):
                cols = []
                for dy in (0, 1):
                    for dx in (0, 1):
                        ky, kx = dy - 2 * ry + 1, dx - 2 * rx + 1
                        if 0 <= ky < 3 and 0 <= kx < 3:
                            cols.append(w[:, :, ky, kx])
                        else:
                            cols.append(jnp.zeros((cin, cout), w.dtype))
                rows.append(jnp.concatenate(cols, axis=1))
        w2 = jnp.concatenate(rows, axis=0)
        return _pad_lanes(w2).astype(jnp.bfloat16)

    def convT_sub_b2(b):
        return _pad_lanes(jnp.tile(b, 4).reshape(1, -1).astype(jnp.float32))

    return {
        "enc1_w2": conv_w2(p["enc1_w"]), "enc1_b2": bias2(p["enc1_b"]),
        "enc2_w2": conv_w2(p["enc2_w"]), "enc2_b2": bias2(p["enc2_b"]),
        "enc3_w2": conv_w2(p["enc3_w"]), "enc3_b2": bias2(p["enc3_b"]),
        "enc4_w2": conv_w2(p["enc4_w"]), "enc4_b2": bias2(p["enc4_b"]),
        "enc5_w2": lin_w2(p["enc5_w"]),  "enc5_b2": bias2(p["enc5_b"]),
        "dec1_w2": lin_w2(p["dec1_w"]),  "dec1_b2": bias2(p["dec1_b"]),
        "dec2_w2": convT_sub_w2(p["dec2_w"]), "dec2_b2": convT_sub_b2(p["dec2_b"]),
        "dec3_w2": convT_sub_w2(p["dec3_w"]), "dec3_b2": convT_sub_b2(p["dec3_b"]),
        "dec4_w2": convT_sub_w2(p["dec4_w"]), "dec4_b2": convT_sub_b2(p["dec4_b"]),
        "dec5_w2": convT_sub_w2(p["dec5_w"]), "dec5_b2": convT_sub_b2(p["dec5_b"]),
    }


# -------------------------------- IDAE forward -------------------------------

def idae_forward(prep, x, noise_key, *, nz, fSize, inSize, sigma=0.1, M=20):
    N = x.shape[0]

    # PyTorch forward(): x_corr = (1/M) * sum_m (x + sigma*n_m)
    #                          = x + sigma*mean_m(n_m) ~ x + (sigma/sqrt(M))*n
    x_nhwc = jnp.transpose(x, (0, 2, 3, 1))                  # NCHW -> NHWC boundary
    h = corrupt(x_nhwc, noise_key, sigma / math.sqrt(M))     # bf16 NHWC

    # ---- encode ----
    h = conv2d_nhwc(h, prep["enc1_w2"], prep["enc1_b2"], fSize,     5, 2, 2, "relu")
    h = conv2d_nhwc(h, prep["enc2_w2"], prep["enc2_b2"], fSize * 2, 5, 2, 2, "relu")
    h = conv2d_nhwc(h, prep["enc3_w2"], prep["enc3_b2"], fSize * 4, 5, 2, 2, "relu")
    h = conv2d_nhwc(h, prep["enc4_w2"], prep["enc4_b2"], fSize * 8, 5, 2, 2, "relu")
    h_flat = jnp.transpose(h, (0, 3, 1, 2)).reshape(N, -1)   # PyTorch NCHW flatten
    z = matmul_bias_act(h_flat, prep["enc5_w2"], prep["enc5_b2"],
                        act="none", out_dtype=jnp.float32, n_valid=nz)

    # ---- decode ----
    flat = fSize * 8 * inSize * inSize
    d = matmul_bias_act(z, prep["dec1_w2"], prep["dec1_b2"],
                        act="relu", out_dtype=jnp.bfloat16, n_valid=flat)
    d = d.reshape(N, fSize * 8, inSize, inSize)              # NCHW per z.view(...)
    d = jnp.transpose(d, (0, 2, 3, 1))                       # -> NHWC
    d = conv_transpose2d_x2_nhwc(d, prep["dec2_w2"], prep["dec2_b2"], fSize * 4, "relu")
    d = conv_transpose2d_x2_nhwc(d, prep["dec3_w2"], prep["dec3_b2"], fSize * 2, "relu")
    d = conv_transpose2d_x2_nhwc(d, prep["dec4_w2"], prep["dec4_b2"], fSize,     "relu")
    rec = conv_transpose2d_x2_nhwc(d, prep["dec5_w2"], prep["dec5_b2"], 3, "sigmoid",
                                   out_dtype=jnp.float32)
    rec = jnp.transpose(rec, (0, 3, 1, 2))                   # NHWC -> NCHW boundary
    return z, rec


if __name__ == "__main__":
    # small, deterministic example: batch=2, RGB, imSize=16, fSize=2, nz=8
    nz, imSize, fSize, sigma, M = 8, 16, 2, 0.1, 20
    key = jax.random.PRNGKey(0)
    k_params, k_input, k_noise = jax.random.split(key, 3)

    params, inSize = init_params(k_params, nz, imSize, fSize)
    prep = prepare_params(params)
    x = jax.random.uniform(k_input, (2, 3, imSize, imSize), jnp.float32)

    fwd = jax.jit(functools.partial(idae_forward, nz=nz, fSize=fSize,
                                    inSize=inSize, sigma=sigma, M=M))
    z, rec = fwd(prep, x, k_noise)
    jax.block_until_ready((z, rec))

    assert z.shape == (2, nz)
    assert rec.shape == (2, 3, imSize, imSize)
    assert bool(jnp.all(jnp.isfinite(z))) and bool(jnp.all(jnp.isfinite(rec)))
    assert bool(jnp.all(rec >= 0.0)) and bool(jnp.all(rec <= 1.0))
    print("KERNEL_OK")
</pallas_src>

<mosaic_0001>
module attributes {stable_mosaic.version = 11 : i64} {
  func.func @_corrupt_add_kernel(%arg0: i32, %arg1: memref<2x768xf32, #tpu.memory_space<vmem>>, %arg2: memref<2x768xf32, #tpu.memory_space<vmem>>, %arg3: memref<2x768xbf16, #tpu.memory_space<vmem>>) attributes {dimension_semantics = [#tpu.dimension_semantics<parallel>], iteration_bounds = array<i64: 1>, scalar_prefetch = 0 : i64, scratch_operands = 0 : i64, tpu.core_type = #tpu.core_type<tc>, window_params = [{transform_indices = @transform_0, window_bounds = array<i64: 2, 768>}, {transform_indices = @transform_1, window_bounds = array<i64: 2, 768>}, {transform_indices = @transform_2, window_bounds = array<i64: 2, 768>}]} {
    %c0 = arith.constant 0 : index
    %c0_0 = arith.constant 0 : index
    %0 = vector.load %arg1[%c0, %c0_0] : memref<2x768xf32, #tpu.memory_space<vmem>>, vector<2x768xf32>
    %c0_1 = arith.constant 0 : index
    %c0_2 = arith.constant 0 : index
    %1 = vector.load %arg2[%c0_1, %c0_2] : memref<2x768xf32, #tpu.memory_space<vmem>>, vector<2x768xf32>
    %cst = arith.constant 0.0223606806 : f32
    %2 = vector.broadcast %cst : f32 to vector<2x768xf32>
    %3 = arith.mulf %2, %1 : vector<2x768xf32>
    %4 = arith.addf %0, %3 : vector<2x768xf32>
    %5 = arith.truncf %4 : vector<2x768xf32> to vector<2x768xbf16>
    %c0_3 = arith.constant 0 : index
    %c0_4 = arith.constant 0 : index
    %6 = vector.load %arg3[%c0_3, %c0_4] : memref<2x768xbf16, #tpu.memory_space<vmem>>, vector<2x768xbf16>
    tpu.vector_store %arg3[%c0_3, %c0_4], %5 {strides = array<i32>} : memref<2x768xbf16, #tpu.memory_space<vmem>>, vector<2x768xbf16>,
    return
  }
  func.func @transform_0(%arg0: i32) -> (i32, i32) {
    %c0_i32 = arith.constant 0 : i32
    %c0_i32_0 = arith.constant 0 : i32
    return %arg0, %c0_i32 : i32, i32
  }
  func.func @transform_1(%arg0: i32) -> (i32, i32) {
    %c0_i32 = arith.constant 0 : i32
    %c0_i32_0 = arith.constant 0 : i32
    return %arg0, %c0_i32 : i32, i32
  }
  func.func @transform_2(%arg0: i32) -> (i32, i32) {
    %c0_i32 = arith.constant 0 : i32
    %c0_i32_0 = arith.constant 0 : i32
    return %arg0, %c0_i32 : i32, i32
  }
}

module attributes {stable_mosaic.version = 11 : i64} {
  func.func @_matmul_bias_act_kernel(%arg0: i32, %arg1: i32, %arg2: memref<64x75xbf16, #tpu.memory_space<vmem>>, %arg3: memref<75x128xbf16, #tpu.memory_space<vmem>>, %arg4: memref<1x128xf32, #tpu.memory_space<vmem>>, %arg5: memref<64x128xbf16, #tpu.memory_space<vmem>>) attributes {dimension_semantics = [#tpu.dimension_semantics<parallel>, #tpu.dimension_semantics<parallel>], iteration_bounds = array<i64: 2, 1>, scalar_prefetch = 0 : i64, scratch_operands = 0 : i64, tpu.core_type = #tpu.core_type<tc>, window_params = [{transform_indices = @transform_0, window_bounds = array<i64: 64, 75>}, {transform_indices = @transform_1, window_bounds = array<i64: 75, 128>}, {transform_indices = @transform_2, window_bounds = array<i64: 1, 128>}, {transform_indices = @transform_3, window_bounds = array<i64: 64, 128>}]} {
    %c0 = arith.constant 0 : index
    %c0_0 = arith.constant 0 : index
    %0 = vector.load %arg2[%c0, %c0_0] : memref<64x75xbf16, #tpu.memory_space<vmem>>, vector<64x75xbf16>
    %c0_1 = arith.constant 0 : index
    %c0_2 = arith.constant 0 : index
    %1 = vector.load %arg3[%c0_1, %c0_2] : memref<75x128xbf16, #tpu.memory_space<vmem>>, vector<75x128xbf16>
    %cst = arith.constant dense<0.000000e+00> : vector<64x128xf32>
    %2 = tpu.matmul %0, %1, %cst {dimension_numbers = #tpu.dot_dimension_numbers<[1], [0], [0], [1], [0, 0, 1, 1], [], []>} : vector<64x75xbf16>, vector<75x128xbf16>, vector<64x128xf32> -> vector<64x128xf32>
    %c0_3 = arith.constant 0 : index
    %c0_4 = arith.constant 0 : index
    %3 = vector.load %arg4[%c0_3, %c0_4] : memref<1x128xf32, #tpu.memory_space<vmem>>, vector<1x128xf32>
    %4 = vector.broadcast %3 : vector<1x128xf32> to vector<64x128xf32>
    %5 = arith.addf %2, %4 : vector<64x128xf32>
    %cst_5 = arith.constant 0.000000e+00 : f32
    %6 = vector.broadcast %cst_5 : f32 to vector<64x128xf32>
    %7 = arith.maximumf %5, %6 : vector<64x128xf32>
    %8 = arith.truncf %7 : vector<64x128xf32> to vector<64x128xbf16>
    %c0_6 = arith.constant 0 : index
    %c0_7 = arith.constant 0 : index
    %9 = vector.load %arg5[%c0_6, %c0_7] : memref<64x128xbf16, #tpu.memory_space<vmem>>, vector<64x128xbf16>
    tpu.vector_store %arg5[%c0_6, %c0_7], %8 {strides = array<i32>} : memref<64x128xbf16, #tpu.memory_space<vmem>>, vector<64x128xbf16>,
    return
  }
  func.func @transform_0(%arg0: i32, %arg1: i32) -> (i32, i32) {
    %c0_i32 = arith.constant 0 : i32
    %c0_i32_0 = arith.constant 0 : i32
    return %arg0, %c0_i32 : i32, i32
  }
  func.func @transform_1(%arg0: i32, %arg1: i32) -> (i32, i32) {
    %c0_i32 = arith.constant 0 : i32
    %c0_i32_0 = arith.constant 0 : i32
    return %c0_i32, %arg1 : i32, i32
  }
  func.func @transform_2(%arg0: i32, %arg1: i32) -> (i32, i32) {
    %c0_i32 = arith.constant 0 : i32
    %c0_i32_0 = arith.constant 0 : i32
    return %c0_i32, %arg1 : i32, i32
  }
  func.func @transform_3(%arg0: i32, %arg1: i32) -> (i32, i32) {
    %c0_i32 = arith.constant 0 : i32
    return %arg0, %arg1 : i32, i32
  }
}

module attributes {stable_mosaic.version = 11 : i64} {
  func.func @_matmul_bias_act_kernel(%arg0: i32, %arg1: i32, %arg2: memref<16x50xbf16, #tpu.memory_space<vmem>>, %arg3: memref<50x128xbf16, #tpu.memory_space<vmem>>, %arg4: memref<1x128xf32, #tpu.memory_space<vmem>>, %arg5: memref<16x128xbf16, #tpu.memory_space<vmem>>) attributes {dimension_semantics = [#tpu.dimension_semantics<parallel>, #tpu.dimension_semantics<parallel>], iteration_bounds = array<i64: 2, 1>, scalar_prefetch = 0 : i64, scratch_operands = 0 : i64, tpu.core_type = #tpu.core_type<tc>, window_params = [{transform_indices = @transform_0, window_bounds = array<i64: 16, 50>}, {transform_indices = @transform_1, window_bounds = array<i64: 50, 128>}, {transform_indices = @transform_2, window_bounds = array<i64: 1, 128>}, {transform_indices = @transform_3, window_bounds = array<i64: 16, 128>}]} {
    %c0 = arith.constant 0 : index
    %c0_0 = arith.constant 0 : index
    %0 = vector.load %arg2[%c0, %c0_0] : memref<16x50xbf16, #tpu.memory_space<vmem>>, vector<16x50xbf16>
    %c0_1 = arith.constant 0 : index
    %c0_2 = arith.constant 0 : index
    %1 = vector.load %arg3[%c0_1, %c0_2] : memref<50x128xbf16, #tpu.memory_space<vmem>>, vector<50x128xbf16>
    %cst = arith.constant dense<0.000000e+00> : vector<16x128xf32>
    %2 = tpu.matmul %0, %1, %cst {dimension_numbers = #tpu.dot_dimension_numbers<[1], [0], [0], [1], [0, 0, 1, 1], [], []>} : vector<16x50xbf16>, vector<50x128xbf16>, vector<16x128xf32> -> vector<16x128xf32>
    %c0_3 = arith.constant 0 : index
    %c0_4 = arith.constant 0 : index
    %3 = vector.load %arg4[%c0_3, %c0_4] : memref<1x128xf32, #tpu.memory_space<vmem>>, vector<1x128xf32>
    %4 = vector.broadcast %3 : vector<1x128xf32> to vector<16x128xf32>
    %5 = arith.addf %2, %4 : vector<16x128xf32>
    %cst_5 = arith.constant 0.000000e+00 : f32
    %6 = vector.broadcast %cst_5 : f32 to vector<16x128xf32>
    %7 = arith.maximumf %5, %6 : vector<16x128xf32>
    %8 = arith.truncf %7 : vector<16x128xf32> to vector<16x128xbf16>
    %c0_6 = arith.constant 0 : index
    %c0_7 = arith.constant 0 : index
    %9 = vector.load %arg5[%c0_6, %c0_7] : memref<16x128xbf16, #tpu.memory_space<vmem>>, vector<16x128xbf16>
    tpu.vector_store %arg5[%c0_6, %c0_7], %8 {strides = array<i32>} : memref<16x128xbf16, #tpu.memory_space<vmem>>, vector<16x128xbf16>,
    return
  }
  func.func @transform_0(%arg0: i32, %arg1: i32) -> (i32, i32) {
    %c0_i32 = arith.constant 0 : i32
    %c0_i32_0 = arith.constant 0 : i32
    return %arg0, %c0_i32 : i32, i32
  }
  func.func @transform_1(%arg0: i32, %arg1: i32) -> (i32, i32) {
    %c0_i32 = arith.constant 0 : i32
    %c0_i32_0 = arith.constant 0 : i32
    return %c0_i32, %arg1 : i32, i32
  }
  func.func @transform_2(%arg0: i32, %arg1: i32) -> (i32, i32) {
    %c0_i32 = arith.constant 0 : i32
    %c0_i32_0 = arith.constant 0 : i32
    return %c0_i32, %arg1 : i32, i32
  }
  func.func @transform_3(%arg0: i32, %arg1: i32) -> (i32, i32) {
    %c0_i32 = arith.constant 0 : i32
    return %arg0, %arg1 : i32, i32
  }
}

module attributes {stable_mosaic.version = 11 : i64} {
  func.func @_matmul_bias_act_kernel(%arg0: i32, %arg1: i32, %arg2: memref<8x100xbf16, #tpu.memory_space<vmem>>, %arg3: memref<100x128xbf16, #tpu.memory_space<vmem>>, %arg4: memref<1x128xf32, #tpu.memory_space<vmem>>, %arg5: memref<8x128xbf16, #tpu.memory_space<vmem>>) attributes {dimension_semantics = [#tpu.dimension_semantics<parallel>, #tpu.dimension_semantics<parallel>], iteration_bounds = array<i64: 1, 1>, scalar_prefetch = 0 : i64, scratch_operands = 0 : i64, tpu.core_type = #tpu.core_type<tc>, window_params = [{transform_indices = @transform_0, window_bounds = array<i64: 8, 100>}, {transform_indices = @transform_1, window_bounds = array<i64: 100, 128>}, {transform_indices = @transform_2, window_bounds = array<i64: 1, 128>}, {transform_indices = @transform_3, window_bounds = array<i64: 8, 128>}]} {
    %c0 = arith.constant 0 : index
    %c0_0 = arith.constant 0 : index
    %0 = vector.load %arg2[%c0, %c0_0] : memref<8x100xbf16, #tpu.memory_space<vmem>>, vector<8x100xbf16>
    %c0_1 = arith.constant 0 : index
    %c0_2 = arith.constant 0 : index
    %1 = vector.load %arg3[%c0_1, %c0_2] : memref<100x128xbf16, #tpu.memory_space<vmem>>, vector<100x128xbf16>
    %cst = arith.constant dense<0.000000e+00> : vector<8x128xf32>
    %2 = tpu.matmul %0, %1, %cst {dimension_numbers = #tpu.dot_dimension_numbers<[1], [0], [0], [1], [0, 0, 1, 1], [], []>} : vector<8x100xbf16>, vector<100x128xbf16>, vector<8x128xf32> -> vector<8x128xf32>
    %c0_3 = arith.constant 0 : index
    %c0_4 = arith.constant 0 : index
    %3 = vector.load %arg4[%c0_3, %c0_4] : memref<1x128xf32, #tpu.memory_space<vmem>>, vector<1x128xf32>
    %4 = vector.broadcast %3 : vector<1x128xf32> to vector<8x128xf32>
    %5 = arith.addf %2, %4 : vector<8x128xf32>
    %cst_5 = arith.constant 0.000000e+00 : f32
    %6 = vector.broadcast %cst_5 : f32 to vector<8x128xf32>
    %7 = arith.maximumf %5, %6 : vector<8x128xf32>
    %8 = arith.truncf %7 : vector<8x128xf32> to vector<8x128xbf16>
    %c0_6 = arith.constant 0 : index
    %c0_7 = arith.constant 0 : index
    %9 = vector.load %arg5[%c0_6, %c0_7] : memref<8x128xbf16, #tpu.memory_space<vmem>>, vector<8x128xbf16>
    tpu.vector_store %arg5[%c0_6, %c0_7], %8 {strides = array<i32>} : memref<8x128xbf16, #tpu.memory_space<vmem>>, vector<8x128xbf16>,
    return
  }
  func.func @transform_0(%arg0: i32, %arg1: i32) -> (i32, i32) {
    %c0_i32 = arith.constant 0 : i32
    %c0_i32_0 = arith.constant 0 : i32
    return %arg0, %c0_i32 : i32, i32
  }
  func.func @transform_1(%arg0: i32, %arg1: i32) -> (i32, i32) {
    %c0_i32 = arith.constant 0 : i32
    %c0_i32_0 = arith.constant 0 : i32
    return %c0_i32, %arg1 : i32, i32
  }
  func.func @transform_2(%arg0: i32, %arg1: i32) -> (i32, i32) {
    %c0_i32 = arith.constant 0 : i32
    %c0_i32_0 = arith.constant 0 : i32
    return %c0_i32, %arg1 : i32, i32
  }
  func.func @transform_3(%arg0: i32, %arg1: i32) -> (i32, i32) {
    %c0_i32 = arith.constant 0 : i32
    return %arg0, %arg1 : i32, i32
  }
}

module attributes {stable_mosaic.version = 11 : i64} {
  func.func @_matmul_bias_act_kernel(%arg0: i32, %arg1: i32, %arg2: memref<2x200xbf16, #tpu.memory_space<vmem>>, %arg3: memref<200x128xbf16, #tpu.memory_space<vmem>>, %arg4: memref<1x128xf32, #tpu.memory_space<vmem>>, %arg5: memref<2x128xbf16, #tpu.memory_space<vmem>>) attributes {dimension_semantics = [#tpu.dimension_semantics<parallel>, #tpu.dimension_semantics<parallel>], iteration_bounds = array<i64: 1, 1>, scalar_prefetch = 0 : i64, scratch_operands = 0 : i64, tpu.core_type = #tpu.core_type<tc>, window_params = [{transform_indices = @transform_0, window_bounds = array<i64: 2, 200>}, {transform_indices = @transform_1, window_bounds = array<i64: 200, 128>}, {transform_indices = @transform_2, window_bounds = array<i64: 1, 128>}, {transform_indices = @transform_3, window_bounds = array<i64: 2, 128>}]} {
    %c0 = arith.constant 0 : index
    %c0_0 = arith.constant 0 : index
    %0 = vector.load %arg2[%c0, %c0_0] : memref<2x200xbf16, #tpu.memory_space<vmem>>, vector<2x200xbf16>
    %c0_1 = arith.constant 0 : index
    %c0_2 = arith.constant 0 : index
    %1 = vector.load %arg3[%c0_1, %c0_2] : memref<200x128xbf16, #tpu.memory_space<vmem>>, vector<200x128xbf16>
    %cst = arith.constant dense<0.000000e+00> : vector<2x128xf32>
    %2 = tpu.matmul %0, %1, %cst {dimension_numbers = #tpu.dot_dimension_numbers<[1], [0], [0], [1], [0, 0, 1, 1], [], []>} : vector<2x200xbf16>, vector<200x128xbf16>, vector<2x128xf32> -> vector<2x128xf32>
    %c0_3 = arith.constant 0 : index
    %c0_4 = arith.constant 0 : index
    %3 = vector.load %arg4[%c0_3, %c0_4] : memref<1x128xf32, #tpu.memory_space<vmem>>, vector<1x128xf32>
    %4 = vector.broadcast %3 : vector<1x128xf32> to vector<2x128xf32>
    %5 = arith.addf %2, %4 : vector<2x128xf32>
    %cst_5 = arith.constant 0.000000e+00 : f32
    %6 = vector.broadcast %cst_5 : f32 to vector<2x128xf32>
    %7 = arith.maximumf %5, %6 : vector<2x128xf32>
    %8 = arith.truncf %7 : vector<2x128xf32> to vector<2x128xbf16>
    %c0_6 = arith.constant 0 : index
    %c0_7 = arith.constant 0 : index
    %9 = vector.load %arg5[%c0_6, %c0_7] : memref<2x128xbf16, #tpu.memory_space<vmem>>, vector<2x128xbf16>
    tpu.vector_store %arg5[%c0_6, %c0_7], %8 {strides = array<i32>} : memref<2x128xbf16, #tpu.memory_space<vmem>>, vector<2x128xbf16>,
    return
  }
  func.func @transform_0(%arg0: i32, %arg1: i32) -> (i32, i32) {
    %c0_i32 = arith.constant 0 : i32
    %c0_i32_0 = arith.constant 0 : i32
    return %arg0, %c0_i32 : i32, i32
  }
  func.func @transform_1(%arg0: i32, %arg1: i32) -> (i32, i32) {
    %c0_i32 = arith.constant 0 : i32
    %c0_i32_0 = arith.constant 0 : i32
    return %c0_i32, %arg1 : i32, i32
  }
  func.func @transform_2(%arg0: i32, %arg1: i32) -> (i32, i32) {
    %c0_i32 = arith.constant 0 : i32
    %c0_i32_0 = arith.constant 0 : i32
    return %c0_i32, %arg1 : i32, i32
  }
  func.func @transform_3(%arg0: i32, %arg1: i32) -> (i32, i32) {
    %c0_i32 = arith.constant 0 : i32
    return %arg0, %arg1 : i32, i32
  }
}

module attributes {stable_mosaic.version = 11 : i64} {
  func.func @_matmul_bias_act_kernel(%arg0: i32, %arg1: i32, %arg2: memref<2x64xbf16, #tpu.memory_space<vmem>>, %arg3: memref<64x128xbf16, #tpu.memory_space<vmem>>, %arg4: memref<1x128xf32, #tpu.memory_space<vmem>>, %arg5: memref<2x128xbf16, #tpu.memory_space<vmem>>) attributes {dimension_semantics = [#tpu.dimension_semantics<parallel>, #tpu.dimension_semantics<parallel>], iteration_bounds = array<i64: 1, 1>, scalar_prefetch = 0 : i64, scratch_operands = 0 : i64, tpu.core_type = #tpu.core_type<tc>, window_params = [{transform_indices = @transform_0, window_bounds = array<i64: 2, 64>}, {transform_indices = @transform_1, window_bounds = array<i64: 64, 128>}, {transform_indices = @transform_2, window_bounds = array<i64: 1, 128>}, {transform_indices = @transform_3, window_bounds = array<i64: 2, 128>}]} {
    %c0 = arith.constant 0 : index
    %c0_0 = arith.constant 0 : index
    %0 = vector.load %arg2[%c0, %c0_0] : memref<2x64xbf16, #tpu.memory_space<vmem>>, vector<2x64xbf16>
    %c0_1 = arith.constant 0 : index
    %c0_2 = arith.constant 0 : index
    %1 = vector.load %arg3[%c0_1, %c0_2] : memref<64x128xbf16, #tpu.memory_space<vmem>>, vector<64x128xbf16>
    %cst = arith.constant dense<0.000000e+00> : vector<2x128xf32>
    %2 = tpu.matmul %0, %1, %cst {dimension_numbers = #tpu.dot_dimension_numbers<[1], [0], [0], [1], [0, 0, 1, 1], [], []>} : vector<2x64xbf16>, vector<64x128xbf16>, vector<2x128xf32> -> vector<2x128xf32>
    %c0_3 = arith.constant 0 : index
    %c0_4 = arith.constant 0 : index
    %3 = vector.load %arg4[%c0_3, %c0_4] : memref<1x128xf32, #tpu.memory_space<vmem>>, vector<1x128xf32>
    %4 = vector.broadcast %3 : vector<1x128xf32> to vector<2x128xf32>
    %5 = arith.addf %2, %4 : vector<2x128xf32>
    %cst_5 = arith.constant 0.000000e+00 : f32
    %6 = vector.broadcast %cst_5 : f32 to vector<2x128xf32>
    %7 = arith.maximumf %5, %6 : vector<2x128xf32>
    %8 = arith.truncf %7 : vector<2x128xf32> to vector<2x128xbf16>
    %c0_6 = arith.constant 0 : index
    %c0_7 = arith.constant 0 : index
    %9 = vector.load %arg5[%c0_6, %c0_7] : memref<2x128xbf16, #tpu.memory_space<vmem>>, vector<2x128xbf16>
    tpu.vector_store %arg5[%c0_6, %c0_7], %8 {strides = array<i32>} : memref<2x128xbf16, #tpu.memory_space<vmem>>, vector<2x128xbf16>,
    return
  }
  func.func @transform_0(%arg0: i32, %arg1: i32) -> (i32, i32) {
    %c0_i32 = arith.constant 0 : i32
    %c0_i32_0 = arith.constant 0 : i32
    return %arg0, %c0_i32 : i32, i32
  }
  func.func @transform_1(%arg0: i32, %arg1: i32) -> (i32, i32) {
    %c0_i32 = arith.constant 0 : i32
    %c0_i32_0 = arith.constant 0 : i32
    return %c0_i32, %arg1 : i32, i32
  }
  func.func @transform_2(%arg0: i32, %arg1: i32) -> (i32, i32) {
    %c0_i32 = arith.constant 0 : i32
    %c0_i32_0 = arith.constant 0 : i32
    return %c0_i32, %arg1 : i32, i32
  }
  func.func @transform_3(%arg0: i32, %arg1: i32) -> (i32, i32) {
    %c0_i32 = arith.constant 0 : i32
    return %arg0, %arg1 : i32, i32
  }
}

module attributes {stable_mosaic.version = 11 : i64} {
  func.func @_matmul_bias_act_kernel(%arg0: i32, %arg1: i32, %arg2: memref<2x8xbf16, #tpu.memory_space<vmem>>, %arg3: memref<8x128xbf16, #tpu.memory_space<vmem>>, %arg4: memref<1x128xf32, #tpu.memory_space<vmem>>, %arg5: memref<2x128xbf16, #tpu.memory_space<vmem>>) attributes {dimension_semantics = [#tpu.dimension_semantics<parallel>, #tpu.dimension_semantics<parallel>], iteration_bounds = array<i64: 1, 1>, scalar_prefetch = 0 : i64, scratch_operands = 0 : i64, tpu.core_type = #tpu.core_type<tc>, window_params = [{transform_indices = @transform_0, window_bounds = array<i64: 2, 8>}, {transform_indices = @transform_1, window_bounds = array<i64: 8, 128>}, {transform_indices = @transform_2, window_bounds = array<i64: 1, 128>}, {transform_indices = @transform_3, window_bounds = array<i64: 2, 128>}]} {
    %c0 = arith.constant 0 : index
    %c0_0 = arith.constant 0 : index
    %0 = vector.load %arg2[%c0, %c0_0] : memref<2x8xbf16, #tpu.memory_space<vmem>>, vector<2x8xbf16>
    %c0_1 = arith.constant 0 : index
    %c0_2 = arith.constant 0 : index
    %1 = vector.load %arg3[%c0_1, %c0_2] : memref<8x128xbf16, #tpu.memory_space<vmem>>, vector<8x128xbf16>
    %cst = arith.constant dense<0.000000e+00> : vector<2x128xf32>
    %2 = tpu.matmul %0, %1, %cst {dimension_numbers = #tpu.dot_dimension_numbers<[1], [0], [0], [1], [0, 0, 1, 1], [], []>} : vector<2x8xbf16>, vector<8x128xbf16>, vector<2x128xf32> -> vector<2x128xf32>
    %c0_3 = arith.constant 0 : index
    %c0_4 = arith.constant 0 : index
    %3 = vector.load %arg4[%c0_3, %c0_4] : memref<1x128xf32, #tpu.memory_space<vmem>>, vector<1x128xf32>
    %4 = vector.broadcast %3 : vector<1x128xf32> to vector<2x128xf32>
    %5 = arith.addf %2, %4 : vector<2x128xf32>
    %cst_5 = arith.constant 0.000000e+00 : f32
    %6 = vector.broadcast %cst_5 : f32 to vector<2x128xf32>
    %7 = arith.maximumf %5, %6 : vector<2x128xf32>
    %8 = arith.truncf %7 : vector<2x128xf32> to vector<2x128xbf16>
    %c0_6 = arith.constant 0 : index
    %c0_7 = arith.constant 0 : index
    %9 = vector.load %arg5[%c0_6, %c0_7] : memref<2x128xbf16, #tpu.memory_space<vmem>>, vector<2x128xbf16>
    tpu.vector_store %arg5[%c0_6, %c0_7], %8 {strides = array<i32>} : memref<2x128xbf16, #tpu.memory_space<vmem>>, vector<2x128xbf16>,
    return
  }
  func.func @transform_0(%arg0: i32, %arg1: i32) -> (i32, i32) {
    %c0_i32 = arith.constant 0 : i32
    %c0_i32_0 = arith.constant 0 : i32
    return %arg0, %c0_i32 : i32, i32
  }
  func.func @transform_1(%arg0: i32, %arg1: i32) -> (i32, i32) {
    %c0_i32 = arith.constant 0 : i32
    %c0_i32_0 = arith.constant 0 : i32
    return %c0_i32, %arg1 : i32, i32
  }
  func.func @transform_2(%arg0: i32, %arg1: i32) -> (i32, i32) {
    %c0_i32 = arith.constant 0 : i32
    %c0_i32_0 = arith.constant 0 : i32
    return %c0_i32, %arg1 : i32, i32
  }
  func.func @transform_3(%arg0: i32, %arg1: i32) -> (i32, i32) {
    %c0_i32 = arith.constant 0 : i32
    return %arg0, %arg1 : i32, i32
  }
}

module attributes {stable_mosaic.version = 11 : i64} {
  func.func @_matmul_bias_act_kernel(%arg0: i32, %arg1: i32, %arg2: memref<2x16xbf16, #tpu.memory_space<vmem>>, %arg3: memref<16x128xbf16, #tpu.memory_space<vmem>>, %arg4: memref<1x128xf32, #tpu.memory_space<vmem>>, %arg5: memref<2x128xf32, #tpu.memory_space<vmem>>) attributes {dimension_semantics = [#tpu.dimension_semantics<parallel>, #tpu.dimension_semantics<parallel>], iteration_bounds = array<i64: 1, 1>, scalar_prefetch = 0 : i64, scratch_operands = 0 : i64, tpu.core_type = #tpu.core_type<tc>, window_params = [{transform_indices = @transform_0, window_bounds = array<i64: 2, 16>}, {transform_indices = @transform_1, window_bounds = array<i64: 16, 128>}, {transform_indices = @transform_2, window_bounds = array<i64: 1, 128>}, {transform_indices = @transform_3, window_bounds = array<i64: 2, 128>}]} {
    %c0 = arith.constant 0 : index
    %c0_0 = arith.constant 0 : index
    %0 = vector.load %arg2[%c0, %c0_0] : memref<2x16xbf16, #tpu.memory_space<vmem>>, vector<2x16xbf16>
    %c0_1 = arith.constant 0 : index
    %c0_2 = arith.constant 0 : index
    %1 = vector.load %arg3[%c0_1, %c0_2] : memref<16x128xbf16, #tpu.memory_space<vmem>>, vector<16x128xbf16>
    %cst = arith.constant dense<0.000000e+00> : vector<2x128xf32>
    %2 = tpu.matmul %0, %1, %cst {dimension_numbers = #tpu.dot_dimension_numbers<[1], [0], [0], [1], [0, 0, 1, 1], [], []>} : vector<2x16xbf16>, vector<16x128xbf16>, vector<2x128xf32> -> vector<2x128xf32>
    %c0_3 = arith.constant 0 : index
    %c0_4 = arith.constant 0 : index
    %3 = vector.load %arg4[%c0_3, %c0_4] : memref<1x128xf32, #tpu.memory_space<vmem>>, vector<1x128xf32>
    %4 = vector.broadcast %3 : vector<1x128xf32> to vector<2x128xf32>
    %5 = arith.addf %2, %4 : vector<2x128xf32>
    %c0_5 = arith.constant 0 : index
    %c0_6 = arith.constant 0 : index
    %6 = vector.load %arg5[%c0_5, %c0_6] : memref<2x128xf32, #tpu.memory_space<vmem>>, vector<2x128xf32>
    tpu.vector_store %arg5[%c0_5, %c0_6], %5 {strides = array<i32>} : memref<2x128xf32, #tpu.memory_space<vmem>>, vector<2x128xf32>,
    return
  }
  func.func @transform_0(%arg0: i32, %arg1: i32) -> (i32, i32) {
    %c0_i32 = arith.constant 0 : i32
    %c0_i32_0 = arith.constant 0 : i32
    return %arg0, %c0_i32 : i32, i32
  }
  func.func @transform_1(%arg0: i32, %arg1: i32) -> (i32, i32) {
    %c0_i32 = arith.constant 0 : i32
    %c0_i32_0 = arith.constant 0 : i32
    return %c0_i32, %arg1 : i32, i32
  }
  func.func @transform_2(%arg0: i32, %arg1: i32) -> (i32, i32) {
    %c0_i32 = arith.constant 0 : i32
    %c0_i32_0 = arith.constant 0 : i32
    return %c0_i32, %arg1 : i32, i32
  }
  func.func @transform_3(%arg0: i32, %arg1: i32) -> (i32, i32) {
    %c0_i32 = arith.constant 0 : i32
    return %arg0, %arg1 : i32, i32
  }
}

module attributes {stable_mosaic.version = 11 : i64} {
  func.func @_matmul_bias_act_kernel(%arg0: i32, %arg1: i32, %arg2: memref<8x32xbf16, #tpu.memory_space<vmem>>, %arg3: memref<32x128xbf16, #tpu.memory_space<vmem>>, %arg4: memref<1x128xf32, #tpu.memory_space<vmem>>, %arg5: memref<8x128xbf16, #tpu.memory_space<vmem>>) attributes {dimension_semantics = [#tpu.dimension_semantics<parallel>, #tpu.dimension_semantics<parallel>], iteration_bounds = array<i64: 1, 1>, scalar_prefetch = 0 : i64, scratch_operands = 0 : i64, tpu.core_type = #tpu.core_type<tc>, window_params = [{transform_indices = @transform_0, window_bounds = array<i64: 8, 32>}, {transform_indices = @transform_1, window_bounds = array<i64: 32, 128>}, {transform_indices = @transform_2, window_bounds = array<i64: 1, 128>}, {transform_indices = @transform_3, window_bounds = array<i64: 8, 128>}]} {
    %c0 = arith.constant 0 : index
    %c0_0 = arith.constant 0 : index
    %0 = vector.load %arg2[%c0, %c0_0] : memref<8x32xbf16, #tpu.memory_space<vmem>>, vector<8x32xbf16>
    %c0_1 = arith.constant 0 : index
    %c0_2 = arith.constant 0 : index
    %1 = vector.load %arg3[%c0_1, %c0_2] : memref<32x128xbf16, #tpu.memory_space<vmem>>, vector<32x128xbf16>
    %cst = arith.constant dense<0.000000e+00> : vector<8x128xf32>
    %2 = tpu.matmul %0, %1, %cst {dimension_numbers = #tpu.dot_dimension_numbers<[1], [0], [0], [1], [0, 0, 1, 1], [], []>} : vector<8x32xbf16>, vector<32x128xbf16>, vector<8x128xf32> -> vector<8x128xf32>
    %c0_3 = arith.constant 0 : index
    %c0_4 = arith.constant 0 : index
    %3 = vector.load %arg4[%c0_3, %c0_4] : memref<1x128xf32, #tpu.memory_space<vmem>>, vector<1x128xf32>
    %4 = vector.broadcast %3 : vector<1x128xf32> to vector<8x128xf32>
    %5 = arith.addf %2, %4 : vector<8x128xf32>
    %cst_5 = arith.constant 0.000000e+00 : f32
    %6 = vector.broadcast %cst_5 : f32 to vector<8x128xf32>
    %7 = arith.maximumf %5, %6 : vector<8x128xf32>
    %8 = arith.truncf %7 : vector<8x128xf32> to vector<8x128xbf16>
    %c0_6 = arith.constant 0 : index
    %c0_7 = arith.constant 0 : index
    %9 = vector.load %arg5[%c0_6, %c0_7] : memref<8x128xbf16, #tpu.memory_space<vmem>>, vector<8x128xbf16>
    tpu.vector_store %arg5[%c0_6, %c0_7], %8 {strides = array<i32>} : memref<8x128xbf16, #tpu.memory_space<vmem>>, vector<8x128xbf16>,
    return
  }
  func.func @transform_0(%arg0: i32, %arg1: i32) -> (i32, i32) {
    %c0_i32 = arith.constant 0 : i32
    %c0_i32_0 = arith.constant 0 : i32
    return %arg0, %c0_i32 : i32, i32
  }
  func.func @transform_1(%arg0: i32, %arg1: i32) -> (i32, i32) {
    %c0_i32 = arith.constant 0 : i32
    %c0_i32_0 = arith.constant 0 : i32
    return %c0_i32, %arg1 : i32, i32
  }
  func.func @transform_2(%arg0: i32, %arg1: i32) -> (i32, i32) {
    %c0_i32 = arith.constant 0 : i32
    %c0_i32_0 = arith.constant 0 : i32
    return %c0_i32, %arg1 : i32, i32
  }
  func.func @transform_3(%arg0: i32, %arg1: i32) -> (i32, i32) {
    %c0_i32 = arith.constant 0 : i32
    return %arg0, %arg1 : i32, i32
  }
}

module attributes {stable_mosaic.version = 11 : i64} {
  func.func @_matmul_bias_act_kernel(%arg0: i32, %arg1: i32, %arg2: memref<16x16xbf16, #tpu.memory_space<vmem>>, %arg3: memref<16x128xbf16, #tpu.memory_space<vmem>>, %arg4: memref<1x128xf32, #tpu.memory_space<vmem>>, %arg5: memref<16x128xbf16, #tpu.memory_space<vmem>>) attributes {dimension_semantics = [#tpu.dimension_semantics<parallel>, #tpu.dimension_semantics<parallel>], iteration_bounds = array<i64: 2, 1>, scalar_prefetch = 0 : i64, scratch_operands = 0 : i64, tpu.core_type = #tpu.core_type<tc>, window_params = [{transform_indices = @transform_0, window_bounds = array<i64: 16, 16>}, {transform_indices = @transform_1, window_bounds = array<i64: 16, 128>}, {transform_indices = @transform_2, window_bounds = array<i64: 1, 128>}, {transform_indices = @transform_3, window_bounds = array<i64: 16, 128>}]} {
    %c0 = arith.constant 0 : index
    %c0_0 = arith.constant 0 : index
    %0 = vector.load %arg2[%c0, %c0_0] : memref<16x16xbf16, #tpu.memory_space<vmem>>, vector<16x16xbf16>
    %c0_1 = arith.constant 0 : index
    %c0_2 = arith.constant 0 : index
    %1 = vector.load %arg3[%c0_1, %c0_2] : memref<16x128xbf16, #tpu.memory_space<vmem>>, vector<16x128xbf16>
    %cst = arith.constant dense<0.000000e+00> : vector<16x128xf32>
    %2 = tpu.matmul %0, %1, %cst {dimension_numbers = #tpu.dot_dimension_numbers<[1], [0], [0], [1], [0, 0, 1, 1], [], []>} : vector<16x16xbf16>, vector<16x128xbf16>, vector<16x128xf32> -> vector<16x128xf32>
    %c0_3 = arith.constant 0 : index
    %c0_4 = arith.constant 0 : index
    %3 = vector.load %arg4[%c0_3, %c0_4] : memref<1x128xf32, #tpu.memory_space<vmem>>, vector<1x128xf32>
    %4 = vector.broadcast %3 : vector<1x128xf32> to vector<16x128xf32>
    %5 = arith.addf %2, %4 : vector<16x128xf32>
    %cst_5 = arith.constant 0.000000e+00 : f32
    %6 = vector.broadcast %cst_5 : f32 to vector<16x128xf32>
    %7 = arith.maximumf %5, %6 : vector<16x128xf32>
    %8 = arith.truncf %7 : vector<16x128xf32> to vector<16x128xbf16>
    %c0_6 = arith.constant 0 : index
    %c0_7 = arith.constant 0 : index
    %9 = vector.load %arg5[%c0_6, %c0_7] : memref<16x128xbf16, #tpu.memory_space<vmem>>, vector<16x128xbf16>
    tpu.vector_store %arg5[%c0_6, %c0_7], %8 {strides = array<i32>} : memref<16x128xbf16, #tpu.memory_space<vmem>>, vector<16x128xbf16>,
    return
  }
  func.func @transform_0(%arg0: i32, %arg1: i32) -> (i32, i32) {
    %c0_i32 = arith.constant 0 : i32
    %c0_i32_0 = arith.constant 0 : i32
    return %arg0, %c0_i32 : i32, i32
  }
  func.func @transform_1(%arg0: i32, %arg1: i32) -> (i32, i32) {
    %c0_i32 = arith.constant 0 : i32
    %c0_i32_0 = arith.constant 0 : i32
    return %c0_i32, %arg1 : i32, i32
  }
  func.func @transform_2(%arg0: i32, %arg1: i32) -> (i32, i32) {
    %c0_i32 = arith.constant 0 : i32
    %c0_i32_0 = arith.constant 0 : i32
    return %c0_i32, %arg1 : i32, i32
  }
  func.func @transform_3(%arg0: i32, %arg1: i32) -> (i32, i32) {
    %c0_i32 = arith.constant 0 : i32
    return %arg0, %arg1 : i32, i32
  }
}

module attributes {stable_mosaic.version = 11 : i64} {
  func.func @_matmul_bias_act_kernel(%arg0: i32, %arg1: i32, %arg2: memref<64x8xbf16, #tpu.memory_space<vmem>>, %arg3: memref<8x128xbf16, #tpu.memory_space<vmem>>, %arg4: memref<1x128xf32, #tpu.memory_space<vmem>>, %arg5: memref<64x128xf32, #tpu.memory_space<vmem>>) attributes {dimension_semantics = [#tpu.dimension_semantics<parallel>, #tpu.dimension_semantics<parallel>], iteration_bounds = array<i64: 2, 1>, scalar_prefetch = 0 : i64, scratch_operands = 0 : i64, tpu.core_type = #tpu.core_type<tc>, window_params = [{transform_indices = @transform_0, window_bounds = array<i64: 64, 8>}, {transform_indices = @transform_1, window_bounds = array<i64: 8, 128>}, {transform_indices = @transform_2, window_bounds = array<i64: 1, 128>}, {transform_indices = @transform_3, window_bounds = array<i64: 64, 128>}]} {
    %c0 = arith.constant 0 : index
    %c0_0 = arith.constant 0 : index
    %0 = vector.load %arg2[%c0, %c0_0] : memref<64x8xbf16, #tpu.memory_space<vmem>>, vector<64x8xbf16>
    %c0_1 = arith.constant 0 : index
    %c0_2 = arith.constant 0 : index
    %1 = vector.load %arg3[%c0_1, %c0_2] : memref<8x128xbf16, #tpu.memory_space<vmem>>, vector<8x128xbf16>
    %cst = arith.constant dense<0.000000e+00> : vector<64x128xf32>
    %2 = tpu.matmul %0, %1, %cst {dimension_numbers = #tpu.dot_dimension_numbers<[1], [0], [0], [1], [0, 0, 1, 1], [], []>} : vector<64x8xbf16>, vector<8x128xbf16>, vector<64x128xf32> -> vector<64x128xf32>
    %c0_3 = arith.constant 0 : index
    %c0_4 = arith.constant 0 : index
    %3 = vector.load %arg4[%c0_3, %c0_4] : memref<1x128xf32, #tpu.memory_space<vmem>>, vector<1x128xf32>
    %4 = vector.broadcast %3 : vector<1x128xf32> to vector<64x128xf32>
    %5 = arith.addf %2, %4 : vector<64x128xf32>
    %6 = arith.negf %5 : vector<64x128xf32>
    %7 = math.exp %6 : vector<64x128xf32>
    %cst_5 = arith.constant 1.000000e+00 : f32
    %8 = vector.broadcast %cst_5 : f32 to vector<64x128xf32>
    %9 = arith.addf %8, %7 : vector<64x128xf32>
    %10 = arith.divf %8, %9 : vector<64x128xf32>
    %c0_6 = arith.constant 0 : index
    %c0_7 = arith.constant 0 : index
    %11 = vector.load %arg5[%c0_6, %c0_7] : memref<64x128xf32, #tpu.memory_space<vmem>>, vector<64x128xf32>
    tpu.vector_store %arg5[%c0_6, %c0_7], %10 {strides = array<i32>} : memref<64x128xf32, #tpu.memory_space<vmem>>, vector<64x128xf32>,
    return
  }
  func.func @transform_0(%arg0: i32, %arg1: i32) -> (i32, i32) {
    %c0_i32 = arith.constant 0 : i32
    %c0_i32_0 = arith.constant 0 : i32
    return %arg0, %c0_i32 : i32, i32
  }
  func.func @transform_1(%arg0: i32, %arg1: i32) -> (i32, i32) {
    %c0_i32 = arith.constant 0 : i32
    %c0_i32_0 = arith.constant 0 : i32
    return %c0_i32, %arg1 : i32, i32
  }
  func.func @transform_2(%arg0: i32, %arg1: i32) -> (i32, i32) {
    %c0_i32 = arith.constant 0 : i32
    %c0_i32_0 = arith.constant 0 : i32
    return %c0_i32, %arg1 : i32, i32
  }
  func.func @transform_3(%arg0: i32, %arg1: i32) -> (i32, i32) {
    %c0_i32 = arith.constant 0 : i32
    return %arg0, %arg1 : i32, i32
  }
}

</mosaic_0001>

<llo_original>
// kernel: idae_forward.11
$region0: #{idae_forward.11}
  #allocation0 [shape = 'u32[]', space=smem, size = 0x4, offset = 0x4, fixed_abs, tag = 'smem constant byte address 0x4 - core index']
  #allocation1 [shape = 'u32[144,128]{1,0:T(1,128)}', space=vmem, size = 0x12000, scoped, tag = 'internal scratch']
  %s0 = inlined_call_operand.vmem [shape: f32[2,768], index: 0, kind: input, shape index: {}]
  %s1 = inlined_call_operand.vmem [shape: f32[2,768], index: 1, kind: input, shape index: {}]
  %s2 = inlined_call_operand.vmem [shape: bf16[2,768], index: 2, kind: output, shape index: {}]
  %s3 = sld [smem:[#allocation0]]
  $region18: #{idae_forward.11} parent=0
    _
  %s5 = ssub.s32 1, %s3
  %s6 = scalar_select 0, %s5, %s3
  // Predicated region
  $region2: #{idae_forward.11} parent=0 // pred_check
    _
  $region3: #{idae_forward.11} parent=0 // pred_check_branch
    %8 = sbr.rel (0) target = $region5
  $region4: #{idae_forward.11} parent=0 // pred_region
    _
  $region5: #{idae_forward.11} parent=0 // pred_fallthru
    _
  // Predicated region
  $region6: #{idae_forward.11} parent=0 // pred_check
    _
  $region7: #{idae_forward.11} parent=0 // pred_check_branch
    %10 = sbr.rel (0) target = $region9
  $region8: #{idae_forward.11} parent=0 // pred_region
    _
  $region9: #{idae_forward.11} parent=0 // pred_fallthru
    _
  %v11 = vld [vmem:[%s0] sm:$0xff]
  %v12 = vld [vmem:[%s0 + $0x8] sm:$0xf]
  %v13 = vld [vmem:[%s1] sm:$0xff]
  %v14 = vld [vmem:[%s1 + $0x8] sm:$0xf]
  %v15 = vmul.f32 %v13, 0.02236068
  %v16 = vmul.f32 %v14, 0.02236068
  %v17 = vadd.f32 %v11, %v15
  %v18 = vadd.f32 %v12, %v16
  %v21 = vcombine.high %v17, %v17
  %v23 = vunpack.c.l.s4 1983009808
  %v24 = vunpack.c.0.s8 %v23
  %v25 = vlaneseq
  %v26 = vshrl.u32 %v25, 7
  %v27 = vsub.s32 %v24, %v26
  %v28 = vrot.slane %v17, %v27
  %v30 = vunpack.c.l.s4 1983009808
  %v31 = vunpack.c.0.s8 %v30
  %v32 = vlaneseq
  %v33 = vshrl.u32 %v32, 7
  %v34 = vsub.s32 %v31, %v33
  %v35 = vrot.slane %v21, %v34
  %v36 = vcombine.high %v28, %v28
  %v37 = vcombine.high %v35, %v35
  %v39 = vunpack.c.l.s4 1983009808
  %v40 = vunpack.c.0.s8 %v39
  %v41 = vlaneseq
  %v42 = vshrl.u32 %v41, 7
  %v43 = vsub.s32 %v40, %v42
  %v44 = vrot.slane %v18, %v43
  %v45 = vcombine.high %v44, %v44
  %v52 = vpack.c.bf16 %v28, %v28
  %v53 = vpack.c.bf16 %v36, %v36
  %v54 = vpack.c.bf16 %v35, %v35
  %v55 = vpack.c.bf16 %v37, %v37
  %v56 = vpack.c.bf16 %v44, %v44
  %v57 = vpack.c.bf16 %v45, %v45
  %v64 = vcombine.low %v52, %v53
  %v65 = vcombine.low %v54, %v55
  %v66 = vcombine.low %v56, %v57
  %v68 = vunpack.c.l.s4 1966171168
  %v69 = vunpack.c.0.s8 %v68
  %v70 = vlaneseq
  %v71 = vshrl.u32 %v70, 7
  %v72 = vsub.s32 %v69, %v71
  %v73 = vrot.slane %v64, %v72
  %v75 = vunpack.c.l.s4 1966171168
  %v76 = vunpack.c.0.s8 %v75
  %v77 = vlaneseq
  %v78 = vshrl.u32 %v77, 7
  %v79 = vsub.s32 %v76, %v78
  %v80 = vrot.slane %v65, %v79
  %v82 = vunpack.c.l.s4 1966171168
  %v83 = vunpack.c.0.s8 %v82
  %v84 = vlaneseq
  %v85 = vshrl.u32 %v84, 7
  %v86 = vsub.s32 %v83, %v85
  %v87 = vrot.slane %v66, %v86
  %v88 = vcombine.low %v73, %v80
  %v90 = vunpack.c.l.s4 1966171168
  %v91 = vunpack.c.0.s8 %v90
  %v92 = vlaneseq
  %v93 = vshrl.u32 %v92, 7
  %v94 = vsub.s32 %v91, %v93
  %v95 = vrot.slane %v88, %v94
  %v97 = vunpack.c.l.s4 1966171168
  %v98 = vunpack.c.0.s8 %v97
  %v99 = vlaneseq
  %v100 = vshrl.u32 %v99, 7
  %v101 = vsub.s32 %v98, %v100
  %v102 = vrot.slane %v87, %v101
  %v103 = vcombine.low %v95, %v102
  %105 = vst [vmem:[%s2] sm:$0x3f] %v103
  // Predicated region
  $region10: #{idae_forward.11} parent=0 // pred_check
    _
  $region11: #{idae_forward.11} parent=0 // pred_check_branch
    %107 = sbr.rel (0) target = $region13
  $region12: #{idae_forward.11} parent=0 // pred_region
    _
  $region13: #{idae_forward.11} parent=0 // pred_fallthru
    _
  // Predicated region
  $region14: #{idae_forward.11} parent=0 // pred_check
    _
  $region15: #{idae_forward.11} parent=0 // pred_check_branch
    %109 = sbr.rel (0) target = $region17
  $region16: #{idae_forward.11} parent=0 // pred_region
    _
  $region17: #{idae_forward.11} parent=0 // pred_fallthru
    _

// kernel: idae_forward.12
$region0: #{idae_forward.12}
  #allocation0 [shape = 'u32[]', space=smem, size = 0x4, offset = 0x4, fixed_abs, tag = 'smem constant byte address 0x4 - core index']
  #allocation1 [shape = 'u32[144,128]{1,0:T(1,128)}', space=vmem, size = 0x12000, scoped, tag = 'internal scratch']
  %s0 = inlined_call_operand.hbm [shape: bf16[128,75], index: 0, kind: input, shape index: {}]
  %s1 = inlined_call_operand.hbm [shape: bf16[75,128], index: 1, kind: input, shape index: {}]
  %s2 = inlined_call_operand.hbm [shape: f32[1,128], index: 2, kind: input, shape index: {}]
  %s3 = inlined_call_operand.hbm [shape: bf16[128,128], index: 3, kind: output, shape index: {}]
  %s4 = sld [smem:[#allocation0]]
  $region57: #{idae_forward.12} parent=0
    _
  %s6 = ssub.s32 1, %s4
  %s7 = scalar_select 0, %s6, %s4
  $region1: #{idae_forward.12} parent=0
    #allocation2 [shape = 'u8[32768]{0}', space=vmem, size = 0x8000, scoped, tag = 'input window, operand 0']
    #allocation3 [shape = 's32[2]{0}', space=sflag, size = 0x8, scoped, tag = 'scoped memory for idae_forward.12']
    #allocation4 [shape = 's32[2]{0}', space=sflag, size = 0x8, scoped, tag = 'scoped memory for idae_forward.12']
    #allocation5 [shape = 'u8[20480]{0}', space=vmem, size = 0x5000, scoped, tag = 'input window, operand 1, single buffered']
    #allocation6 [shape = 's32[1]{0}', space=sflag, size = 0x4, scoped, tag = 'scoped memory for idae_forward.12']
    #allocation7 [shape = 'u8[512]{0}', space=vmem, size = 0x400, scoped, tag = 'input window, operand 2, single buffered']
    #allocation8 [shape = 'u8[32768]{0}', space=vmem, size = 0x8000, scoped, tag = 'output window, operand 0']
    %8 = vsyncpa [#allocation3], 0
    %s9 = scalar_lea.sflag [#allocation3], 1
    %10 = vsyncpa %s9, 0
    %11 = vsyncpa [#allocation6], 0
    %12 = vsyncpa [#allocation4], 0
    %s13 = scalar_lea.sflag [#allocation4], 1
    %14 = vsyncpa %s13, 0
    loop: start=0, step=1, limit=4
    $region2: #{idae_forward.12} parent=1 // loop_pre_header
      _
    $region3: #{idae_forward.12} parent=1 // loop_header
      %s16 = sphi 0, %s20
      %p17 = scmp.ge.s32.totalorder %s16, 4
      %s23 = sphi 0, %s35
      %s24 = sphi 0, %s31
      %s25 = sphi 0, %s23
      %s26 = sphi 0, %s24
      %s27 = sphi 0, %s25
      %s28 = sphi 0, %s26
      %s38 = sphi 0, %s40
      %s41 = sphi 0, %s38
      %s42 = sphi 0, %s41
      %s58 = sphi 0, %s42
      %s64 = sphi 0, %s66
      %s67 = sphi 0, %s64
      %s68 = sphi 0, %s67
      %s84 = sphi 0, %s68
      %s90 = sphi 0, %s92
      %s93 = sphi 0, %s90
      %s94 = sphi 0, %s93
      %s110 = sphi 0, %s94
      %s118 = sphi 0, %s120
      %s121 = sphi 0, %s118
      %s122 = sphi 0, %s121
      %s138 = sphi 0, %s122
    $region4: #{idae_forward.12} parent=1 // loop_header_branch
      %19 = sbr.rel (%p17) target = $region8
    $region5: #{idae_forward.12} parent=1 // loop_body
      %s21 = ssub.s32 %s16, 1
      %s22 = ssub.s32 %s16, 2
      %s29 = sadd.s32 1, %s24
      %p30 = scmp.ge.s32.totalorder %s29, 1
      %s31 = scalar_select %p30, 0, %s29
      %s32 = sadd.s32 1, %s23
      %s33 = scalar_select %p30, %s32, %s23
      %p34 = scmp.ge.s32.totalorder %s33, 2
      %s35 = scalar_select %p34, 0, %s33
      %s36 = ssub.s32 %s23, %s35
      %p37 = scmp.eq.s32.totalorder %s36, 0
      %s39 = sadd.s32 %s38, 1
      %s40 = scalar_select %p37, %s38, %s39
      %p43 = pneg %p37
      %p44 = scmp.eq.s32.totalorder %s16, 1
      %p45 = por %p43, %p44
      %p46 = scmp.ne.s32.totalorder %s38, %s41
      %p47 = scmp.eq.s32.totalorder %s16, 0
      %p48 = por %p46, %p47
      %p49 = scmp.ne.s32.totalorder %s38, %s41
      %p50 = scmp.eq.s32.totalorder %s21, 1
      %p51 = por %p49, %p50
      %p52 = scmp.ne.s32.totalorder %s41, %s42
      %p53 = scmp.eq.s32.totalorder %s21, 0
      %p54 = por %p52, %p53
      %p55 = scmp.ne.s32.totalorder %s41, %s42
      %p56 = scmp.eq.s32.totalorder %s22, 1
      %p57 = por %p55, %p56
      %p59 = scmp.ne.s32.totalorder %s42, %s58
      %p60 = scmp.eq.s32.totalorder %s22, 0
      %p61 = por %p59, %p60
      %s62 = ssub.s32 %s24, %s31
      %p63 = scmp.eq.s32.totalorder %s62, 0
      %s65 = sadd.s32 %s64, 1
      %s66 = scalar_select %p63, %s64, %s65
      %p69 = pneg %p63
      %p70 = scmp.eq.s32.totalorder %s16, 1
      %p71 = por %p69, %p70
      %p72 = scmp.ne.s32.totalorder %s64, %s67
      %p73 = scmp.eq.s32.totalorder %s16, 0
      %p74 = por %p72, %p73
      %p75 = scmp.ne.s32.totalorder %s64, %s67
      %p76 = scmp.eq.s32.totalorder %s21, 1
      %p77 = por %p75, %p76
      %p78 = scmp.ne.s32.totalorder %s67, %s68
      %p79 = scmp.eq.s32.totalorder %s21, 0
      %p80 = por %p78, %p79
      %p81 = scmp.ne.s32.totalorder %s67, %s68
      %p82 = scmp.eq.s32.totalorder %s22, 1
      %p83 = por %p81, %p82
      %p85 = scmp.ne.s32.totalorder %s68, %s84
      %p86 = scmp.eq.s32.totalorder %s22, 0
      %p87 = por %p85, %p86
      %s88 = ssub.s32 %s24, %s31
      %p89 = scmp.eq.s32.totalorder %s88, 0
      %s91 = sadd.s32 %s90, 1
      %s92 = scalar_select %p89, %s90, %s91
      %p95 = pneg %p89
      %p96 = scmp.eq.s32.totalorder %s16, 1
      %p97 = por %p95, %p96
      %p98 = scmp.ne.s32.totalorder %s90, %s93
      %p99 = scmp.eq.s32.totalorder %s16, 0
      %p100 = por %p98, %p99
      %p101 = scmp.ne.s32.totalorder %s90, %s93
      %p102 = scmp.eq.s32.totalorder %s21, 1
      %p103 = por %p101, %p102
      %p104 = scmp.ne.s32.totalorder %s93, %s94
      %p105 = scmp.eq.s32.totalorder %s21, 0
      %p106 = por %p104, %p105
      %p107 = scmp.ne.s32.totalorder %s93, %s94
      %p108 = scmp.eq.s32.totalorder %s22, 1
      %p109 = por %p107, %p108
      %p111 = scmp.ne.s32.totalorder %s94, %s110
      %p112 = scmp.eq.s32.totalorder %s22, 0
      %p113 = por %p111, %p112
      %s114 = ssub.s32 %s23, %s35
      %s115 = ssub.s32 %s24, %s31
      %s116 = sor.u32 %s114, %s115
      %p117 = scmp.eq.s32.totalorder %s116, 0
      %s119 = sadd.s32 %s118, 1
      %s120 = scalar_select %p117, %s118, %s119
      %p123 = pneg %p117
      %p124 = scmp.eq.s32.totalorder %s16, 1
      %p125 = por %p123, %p124
      %p126 = scmp.ne.s32.totalorder %s118, %s121
      %p127 = scmp.eq.s32.totalorder %s16, 0
      %p128 = por %p126, %p127
      %p129 = scmp.ne.s32.totalorder %s118, %s121
      %p130 = scmp.eq.s32.totalorder %s21, 1
      %p131 = por %p129, %p130
      %p132 = scmp.ne.s32.totalorder %s121, %s122
      %p133 = scmp.eq.s32.totalorder %s21, 0
      %p134 = por %p132, %p133
      %p135 = scmp.ne.s32.totalorder %s121, %s122
      %p136 = scmp.eq.s32.totalorder %s22, 1
      %p137 = por %p135, %p136
      %p139 = scmp.ne.s32.totalorder %s122, %s138
      %p140 = scmp.eq.s32.totalorder %s22, 0
      %p141 = por %p139, %p140
      %p142 = scmp.le.s32.totalorder 1, %s16
      %p143 = scmp.lt.s32.totalorder %s16, 3
      %p144 = pnand %p142, %p143
      %p145 = pneg %p144
      // Predicated region
      $region9: #{idae_forward.12} parent=5 // pred_check
        _
      $region10: #{idae_forward.12} parent=5 // pred_check_branch
        %147 = sbr.rel (%p144) target = $region12
      $region11: #{idae_forward.12} parent=5 // pred_region
        %s148 = ssub.s32 %s16, 1
        // Predicated region
        $region13: #{idae_forward.12} parent=11 // pred_check
          %p149 = pneg %p80
        $region14: #{idae_forward.12} parent=11 // pred_check_branch
          %151 = sbr.rel (%p149) target = $region16
        $region15: #{idae_forward.12} parent=11 // pred_region
          %s153 = ssub.s32 640, 640
          %154 = vsyncadd [#allocation6], %s153
          %s155 = smul.addr %s26, 64
          %s156 = scalar_lea.hbm %s1, %s155
          %s157 = sshll.u32 [#allocation5], 4
          %s158 = int_to_ptr.vmem [resolvable:$true] %s157
          %163 = dma.hbm_to_vmem [thread:$0]  %s156, 640, %s158, [#allocation6], 64, 64, 4
        $region16: #{idae_forward.12} parent=11 // pred_fallthru
          _
        // Predicated region
        $region17: #{idae_forward.12} parent=11 // pred_check
          %p164 = pneg %p106
        $region18: #{idae_forward.12} parent=11 // pred_check_branch
          %166 = sbr.rel (%p164) target = $region20
        $region19: #{idae_forward.12} parent=11 // pred_region
          %s168 = ssub.s32 16, 16
          %169 = vsyncadd [#allocation6], %s168
          %s170 = smul.addr %s26, 16
          %s171 = scalar_lea.hbm %s2, %s170
          %s173 = sshll.u32 [#allocation7], 4
          %s174 = int_to_ptr.vmem [resolvable:$true] %s173
          %176 = dma.hbm_to_vmem [thread:$0]  %s171, 16, %s174, [#allocation6]
        $region20: #{idae_forward.12} parent=11 // pred_fallthru
          _
      $region12: #{idae_forward.12} parent=5 // pred_fallthru
        _
      %p177 = scmp.lt.s32.totalorder %s16, 2
      // Predicated region
      $region21: #{idae_forward.12} parent=5 // pred_check
        %p178 = pneg %p177
      $region22: #{idae_forward.12} parent=5 // pred_check_branch
        %180 = sbr.rel (%p178) target = $region24
      $region23: #{idae_forward.12} parent=5 // pred_region
        // Predicated region
        $region25: #{idae_forward.12} parent=23 // pred_check
          %p181 = pneg %p48
        $region26: #{idae_forward.12} parent=23 // pred_check_branch
          %183 = sbr.rel (%p181) target = $region28
        $region27: #{idae_forward.12} parent=23 // pred_region
          %s184 = sand.u32 %s38, 1
          %s185 = scalar_lea.sflag [#allocation3], %s184
          %s186 = sand.u32 %s38, 1
          %s187 = smul.addr %s186, 32
          %s188 = scalar_lea.vmem [#allocation2], %s187
          %s189 = smul.u32 8, %s23
          %s191 = ssub.s32 512, 512
          %192 = vsyncadd %s185, %s191
          %s193 = smul.addr %s189, 64
          %s194 = scalar_lea.hbm %s0, %s193
          %s195 = sshll.u32 %s188, 4
          %s196 = int_to_ptr.vmem [resolvable:$true] %s195
          %201 = dma.hbm_to_vmem [thread:$0]  %s194, 512, %s196, %s185, 64, 64, 4
        $region28: #{idae_forward.12} parent=23 // pred_fallthru
          _
      $region24: #{idae_forward.12} parent=5 // pred_fallthru
        _
      %p202 = scmp.le.s32.totalorder 1, %s16
      %p203 = scmp.lt.s32.totalorder %s16, 3
      %p204 = pnand %p202, %p203
      %p205 = pneg %p204
      // Predicated region
      $region29: #{idae_forward.12} parent=5 // pred_check
        _
      $region30: #{idae_forward.12} parent=5 // pred_check_branch
        %207 = sbr.rel (%p204) target = $region32
      $region31: #{idae_forward.12} parent=5 // pred_region
        %s208 = ssub.s32 %s16, 1
        %s209 = sand.u32 %s41, 1
        %s210 = scalar_lea.sflag [#allocation3], %s209
        %s211 = sand.u32 %s41, 1
        %s212 = smul.addr %s211, 32
        %s213 = scalar_lea.vmem [#allocation2], %s212
        // Predicated region
        $region33: #{idae_forward.12} parent=31 // pred_check
          %p214 = pneg %p54
        $region34: #{idae_forward.12} parent=31 // pred_check_branch
          %216 = sbr.rel (%p214) target = $region36
        $region35: #{idae_forward.12} parent=31 // pred_region
          %217 = dma.done %s210, 512
        $region36: #{idae_forward.12} parent=31 // pred_fallthru
          _
        // Predicated region
        $region37: #{idae_forward.12} parent=31 // pred_check
          %p218 = pneg %p80
        $region38: #{idae_forward.12} parent=31 // pred_check_branch
          %220 = sbr.rel (%p218) target = $region40
        $region39: #{idae_forward.12} parent=31 // pred_region
          %221 = dma.done [#allocation6], 640
        $region40: #{idae_forward.12} parent=31 // pred_fallthru
          _
        // Predicated region
        $region41: #{idae_forward.12} parent=31 // pred_check
          %p222 = pneg %p106
        $region42: #{idae_forward.12} parent=31 // pred_check_branch
          %224 = sbr.rel (%p222) target = $region44
        $region43: #{idae_forward.12} parent=31 // pred_region
          %225 = dma.done [#allocation6], 16
        $region44: #{idae_forward.12} parent=31 // pred_fallthru
          _
        %s226 = sand.u32 %s41, 1
        %s227 = scalar_lea.sflag [#allocation3], %s226
        %s228 = sand.u32 %s41, 1
        %s229 = smul.addr %s228, 32
        %s230 = scalar_lea.vmem [#allocation2], %s229
        %p231 = pneg %p54
        %p232 = pneg %p51
        %p233 = pneg %p80
        %p234 = pneg %p77
        %p235 = pneg %p106
        %p236 = pneg %p103
        %p237 = pneg %p134
        %p238 = pneg %p131
        %s239 = sand.u32 %s121, 1
        %s240 = scalar_lea.sflag [#allocation4], %s239
        %s241 = sand.u32 %s121, 1
        %s242 = smul.addr %s241, 32
        %s243 = scalar_lea.vmem [#allocation8], %s242
        %s244 = smul.u32 8, %s25
        %s245 = smul.u32 8, %s25
        %v247 = vld [vmem:[%s213] sm:$0xf]
        %v248 = vld [vmem:[%s213 + $0x4] sm:$0xf]
        %v249 = vld [vmem:[%s213 + $0x8] sm:$0xf]
        %v250 = vld [vmem:[%s213 + $0xc] sm:$0xf]
        %v251 = vld [vmem:[%s213 + $0x10] sm:$0xf]
        %v252 = vld [vmem:[%s213 + $0x14] sm:$0xf]
        %v253 = vld [vmem:[%s213 + $0x18] sm:$0xf]
        %v254 = vld [vmem:[%s213 + $0x1c] sm:$0xf]
        %v255 = vld [vmem:[#allocation5] sm:$0xf]
        %v256 = vld [vmem:[#allocation5 + $0x4] sm:$0xf]
        %v257 = vld [vmem:[#allocation5 + $0x8] sm:$0xf]
        %v258 = vld [vmem:[#allocation5 + $0xc] sm:$0xf]
        %v259 = vld [vmem:[#allocation5 + $0x10] sm:$0xf]
        %v260 = vld [vmem:[#allocation5 + $0x14] sm:$0xf]
        %v261 = vld [vmem:[#allocation5 + $0x18] sm:$0xf]
        %v262 = vld [vmem:[#allocation5 + $0x1c] sm:$0xf]
        %v263 = vld [vmem:[#allocation5 + $0x20] sm:$0xf]
        %v264 = vld [vmem:[#allocation5 + $0x24] sm:$0x3]
        %v265 = vld [vmem:[#allocation7] sm:$0x1]
        %v267 = vlaneseq
        %v268 = vshrl.u32 %v267, 7
        %v269 = vsub.s32 0, %v268
        %v270 = vrot.slane %v265, %v269
        %v280 = vunpack.c.l.b16 %v247
        %v281 = vunpack.c.l.b16 %v248
        %v282 = vunpack.c.l.b16 %v249
        %v283 = vunpack.c.l.b16 %v250
        %v284 = vunpack.c.l.b16 %v251
        %v285 = vunpack.c.l.b16 %v252
        %v286 = vunpack.c.l.b16 %v253
        %v287 = vunpack.c.l.b16 %v254
        %v288 = vpack.c.b16 %v281, %v280
        %v289 = vpack.c.b16 %v283, %v282
        %v290 = vpack.c.b16 %v285, %v284
        %v291 = vpack.c.b16 %v287, %v286
        %v302 = vunpack.c.l.b16 %v255
        %v303 = vunpack.c.l.b16 %v256
        %v304 = vunpack.c.l.b16 %v257
        %v305 = vunpack.c.l.b16 %v258
        %v306 = vunpack.c.l.b16 %v259
        %v307 = vunpack.c.l.b16 %v260
        %v308 = vunpack.c.l.b16 %v261
        %v309 = vunpack.c.l.b16 %v262
        %v310 = vunpack.c.l.b16 %v263
        %v311 = vunpack.c.l.b16 %v264
        %v312 = vpack.c.b16 %v303, %v302
        %v313 = vpack.c.b16 %v305, %v304
        %v314 = vpack.c.b16 %v307, %v306
        %v315 = vpack.c.b16 %v309, %v308
        %v316 = vpack.c.b16 %v311, %v310
        %vm321 = vcmask 613376
        %v323 = vsel %vm321, %v288, 0
        %v326 = vsel %vm321, %v289, 0
        %v329 = vsel %vm321, %v290, 0
        %v332 = vsel %vm321, %v291, 0
        %vm334 = vcmask 1044480
        %vm335 = vcmask 1045504
        %v336 = vsel %vm334, 4294967295, 65535
        %v337 = vsel %vm335, %v336, 0
        %v339 = vand.u32 %v316, %v337
        %341 = vmatprep.subr.bf16.mxu0 0
        %342 = vmatpush1.bf16.msra.mxu0 %v312
        %343 = vmatprep.subr.bf16.mxu0 0
        %344 = vmatpush1.bf16.msra.mxu0 %v313
        %345 = vmatprep.subr.bf16.mxu0 0
        %346 = vmatpush1.bf16.msra.mxu0 %v314
        %347 = vmatprep.subr.bf16.mxu0 0
        %348 = vmatpush1.bf16.msra.mxu0 %v315
        %349 = vmatprep.subr.bf16.mxu0 0
        %350 = vmatpush1.bf16.msra.mxu0 %v339
        %351 = vmatprep.subr.bf16.mxu0 0
        %352 = vmatpush1.bf16.msra.mxu0 0
        %353 = vmatprep.subr.bf16.mxu0 0
        %354 = vmatpush1.bf16.msra.mxu0 0
        %355 = vmatprep.subr.bf16.mxu0 0
        %356 = vmatpush1.bf16.msra.mxu0 0
        %357 = vmatprep.subr.bf16.mxu0 0
        %358 = vmatpush1.bf16.msra.mxu0 0
        %359 = vmatprep.subr.bf16.mxu0 0
        %360 = vmatpush1.bf16.msra.mxu0 0
        %361 = vmatprep.subr.bf16.mxu0 0
        %362 = vmatpush1.bf16.msra.mxu0 0
        %363 = vmatprep.subr.bf16.mxu0 0
        %364 = vmatpush1.bf16.msra.mxu0 0
        %365 = vmatprep.subr.bf16.mxu0 0
        %366 = vmatpush1.bf16.msra.mxu0 0
        %367 = vmatprep.subr.bf16.mxu0 0
        %368 = vmatpush1.bf16.msra.mxu0 0
        %369 = vmatprep.subr.bf16.mxu0 0
        %370 = vmatpush1.bf16.msra.mxu0 0
        %371 = vmatprep.subr.bf16.mxu0 0
        %372 = vmatpush1.bf16.msra.mxu0 0
        %373 = vmatprep.mubr.bf16.mxu0 0
        %374 = vmatmul.mubr.bf16.gmra.mrb[0].mxu0 %v323
        %v375 = vpop.f32.mrb[0].mxu0
        %v376 = vadd.f32 %v270, %v375
        %v377 = vpop.f32.mrb[0].mxu0
        %v378 = vpop.f32.mrb[0].mxu0
        %v379 = vadd.f32 %v270, %v378
        %v380 = vpop.f32.mrb[0].mxu0
        %381 = vmatprep.mubr.bf16.mxu0 0
        %382 = vmatmul.mubr.bf16.gmra.mrb[0].mxu0 %v326
        %v383 = vpop.f32.mrb[0].mxu0
        %v384 = vadd.f32 %v270, %v383
        %v385 = vpop.f32.mrb[0].mxu0
        %v386 = vpop.f32.mrb[0].mxu0
        %v387 = vadd.f32 %v270, %v386
        %v388 = vpop.f32.mrb[0].mxu0
        %389 = vmatprep.mubr.bf16.mxu0 0
        %390 = vmatmul.mubr.bf16.gmra.mrb[0].mxu0 %v329
        %v391 = vpop.f32.mrb[0].mxu0
        %v392 = vadd.f32 %v270, %v391
        %v393 = vpop.f32.mrb[0].mxu0
        %v394 = vpop.f32.mrb[0].mxu0
        %v395 = vadd.f32 %v270, %v394
        %v396 = vpop.f32.mrb[0].mxu0
        %397 = vmatprep.mubr.bf16.mxu0 0
        %398 = vmatmul.mubr.bf16.gmra.mrb[0].mxu0 %v332
        %v399 = vpop.f32.mrb[0].mxu0
        %v400 = vadd.f32 %v270, %v399
        %v401 = vpop.f32.mrb[0].mxu0
        %v402 = vpop.f32.mrb[0].mxu0
        %v403 = vadd.f32 %v270, %v402
        %v404 = vpop.f32.mrb[0].mxu0
        %405 = vdwg.mxu0
        %v406 = vmax.f32 %v376, 0.0
        %v407 = vmax.f32 %v379, 0.0
        %v408 = vmax.f32 %v384, 0.0
        %v409 = vmax.f32 %v387, 0.0
        %v410 = vmax.f32 %v392, 0.0
        %v411 = vmax.f32 %v395, 0.0
        %v412 = vmax.f32 %v400, 0.0
        %v413 = vmax.f32 %v403, 0.0
        %v414 = vpack.c.bf16 %v407, %v406
        %v415 = vpack.c.bf16 %v409, %v408
        %v416 = vpack.c.bf16 %v411, %v410
        %v417 = vpack.c.bf16 %v413, %v412
        %v422 = vunpack.c.l.b16 %v414
        %v423 = vunpack.c.h.b16 %v414
        %v424 = vunpack.c.l.b16 %v415
        %v425 = vunpack.c.h.b16 %v415
        %v426 = vunpack.c.l.b16 %v416
        %v427 = vunpack.c.h.b16 %v416
        %v428 = vunpack.c.l.b16 %v417
        %v429 = vunpack.c.h.b16 %v417
        %v430 = vpack.c.b16 %v422, %v422
        %v431 = vpack.c.b16 %v423, %v423
        %v432 = vpack.c.b16 %v424, %v424
        %v433 = vpack.c.b16 %v425, %v425
        %v434 = vpack.c.b16 %v426, %v426
        %v435 = vpack.c.b16 %v427, %v427
        %v436 = vpack.c.b16 %v428, %v428
        %v437 = vpack.c.b16 %v429, %v429
        %446 = vst [vmem:[%s243] sm:$0xf] %v430
        %447 = vst [vmem:[%s243 + $0x4] sm:$0xf] %v431
        %448 = vst [vmem:[%s243 + $0x8] sm:$0xf] %v432
        %449 = vst [vmem:[%s243 + $0xc] sm:$0xf] %v433
        %450 = vst [vmem:[%s243 + $0x10] sm:$0xf] %v434
        %451 = vst [vmem:[%s243 + $0x14] sm:$0xf] %v435
        %452 = vst [vmem:[%s243 + $0x18] sm:$0xf] %v436
        %453 = vst [vmem:[%s243 + $0x1c] sm:$0xf] %v437
        %s454 = sand.u32 %s121, 1
        %s455 = scalar_lea.sflag [#allocation4], %s454
        %s456 = sand.u32 %s121, 1
        %s457 = smul.addr %s456, 32
        %s458 = scalar_lea.vmem [#allocation8], %s457
        // Predicated region
        $region45: #{idae_forward.12} parent=31 // pred_check
          %p459 = pneg %p131
        $region46: #{idae_forward.12} parent=31 // pred_check_branch
          %461 = sbr.rel (%p459) target = $region48
        $region47: #{idae_forward.12} parent=31 // pred_region
          %s462 = smul.u32 8, %s25
          %s464 = ssub.s32 512, 512
          %465 = vsyncadd %s455, %s464
          %s466 = sadd.s32 %s26, %s462
          %s467 = smul.addr %s466, 64
          %s468 = scalar_lea.hbm %s3, %s467
          %s469 = sshll.u32 %s458, 4
          %s470 = int_to_ptr.vmem [resolvable:$true] %s469
          %475 = dma.vmem_to_hbm [thread:$0]  %s470, 512, %s468, %s455, 64, 64, 4
        $region48: #{idae_forward.12} parent=31 // pred_fallthru
          _
      $region32: #{idae_forward.12} parent=5 // pred_fallthru
        _
      %p476 = scmp.le.s32.totalorder 2, %s16
      // Predicated region
      $region49: #{idae_forward.12} parent=5 // pred_check
        %p477 = pneg %p476
      $region50: #{idae_forward.12} parent=5 // pred_check_branch
        %479 = sbr.rel (%p477) target = $region52
      $region51: #{idae_forward.12} parent=5 // pred_region
        %s480 = ssub.s32 %s16, 2
        // Predicated region
        $region53: #{idae_forward.12} parent=51 // pred_check
          %p481 = pneg %p137
        $region54: #{idae_forward.12} parent=51 // pred_check_branch
          %483 = sbr.rel (%p481) target = $region56
        $region55: #{idae_forward.12} parent=51 // pred_region
          %s484 = sand.u32 %s122, 1
          %s485 = scalar_lea.sflag [#allocation4], %s484
          %s486 = sand.u32 %s122, 1
          %s487 = smul.addr %s486, 32
          %s488 = scalar_lea.vmem [#allocation8], %s487
          %489 = dma.done %s485, 512
        $region56: #{idae_forward.12} parent=51 // pred_fallthru
          _
      $region52: #{idae_forward.12} parent=5 // pred_fallthru
        _
    $region6: #{idae_forward.12} parent=1 // loop_footer
      %s20 = sadd.s32 1, %s16
    $region7: #{idae_forward.12} parent=1 // loop_footer_branch
      %15 = sbr.rel target = $region3
    $region8: #{idae_forward.12} parent=1 // loop_exit
      _
    %490 = vsyncpa [#allocation3], 1
    %s491 = scalar_lea.sflag [#allocation3], 1
    %492 = vsyncpa %s491, 1
    %493 = vsyncpa [#allocation6], 1
    %494 = vsyncpa [#allocation4], 1
    %s495 = scalar_lea.sflag [#allocation4], 1
    %496 = vsyncpa %s495, 1

// kernel: idae_forward.13
$region0: #{idae_forward.13}
  #allocation0 [shape = 'u32[]', space=smem, size = 0x4, offset = 0x4, fixed_abs, tag = 'smem constant byte address 0x4 - core index']
  #allocation1 [shape = 'u32[144,128]{1,0:T(1,128)}', space=vmem, size = 0x12000, scoped, tag = 'internal scratch']
  %s0 = inlined_call_operand.hbm [shape: bf16[32,50], index: 0, kind: input, shape index: {}]
  %s1 = inlined_call_operand.hbm [shape: bf16[50,128], index: 1, kind: input, shape index: {}]
  %s2 = inlined_call_operand.hbm [shape: f32[1,128], index: 2, kind: input, shape index: {}]
  %s3 = inlined_call_operand.hbm [shape: bf16[32,128], index: 3, kind: output, shape index: {}]
  %s4 = sld [smem:[#allocation0]]
  $region57: #{idae_forward.13} parent=0
    _
  %s6 = ssub.s32 1, %s4
  %s7 = scalar_select 0, %s6, %s4
  $region1: #{idae_forward.13} parent=0
    #allocation2 [shape = 'u8[8192]{0}', space=vmem, size = 0x2000, scoped, tag = 'input window, operand 0']
    #allocation3 [shape = 's32[2]{0}', space=sflag, size = 0x8, scoped, tag = 'scoped memory for idae_forward.13']
    #allocation4 [shape = 's32[2]{0}', space=sflag, size = 0x8, scoped, tag = 'scoped memory for idae_forward.13']
    #allocation5 [shape = 'u8[14336]{0}', space=vmem, size = 0x3800, scoped, tag = 'input window, operand 1, single buffered']
    #allocation6 [shape = 's32[1]{0}', space=sflag, size = 0x4, scoped, tag = 'scoped memory for idae_forward.13']
    #allocation7 [shape = 'u8[512]{0}', space=vmem, size = 0x400, scoped, tag = 'input window, operand 2, single buffered']
    #allocation8 [shape = 'u8[8192]{0}', space=vmem, size = 0x2000, scoped, tag = 'output window, operand 0']
    %8 = vsyncpa [#allocation3], 0
    %s9 = scalar_lea.sflag [#allocation3], 1
    %10 = vsyncpa %s9, 0
    %11 = vsyncpa [#allocation6], 0
    %12 = vsyncpa [#allocation4], 0
    %s13 = scalar_lea.sflag [#allocation4], 1
    %14 = vsyncpa %s13, 0
    loop: start=0, step=1, limit=4
    $region2: #{idae_forward.13} parent=1 // loop_pre_header
      _
    $region3: #{idae_forward.13} parent=1 // loop_header
      %s16 = sphi 0, %s20
      %p17 = scmp.ge.s32.totalorder %s16, 4
      %s23 = sphi 0, %s35
      %s24 = sphi 0, %s31
      %s25 = sphi 0, %s23
      %s26 = sphi 0, %s24
      %s27 = sphi 0, %s25
      %s28 = sphi 0, %s26
      %s38 = sphi 0, %s40
      %s41 = sphi 0, %s38
      %s42 = sphi 0, %s41
      %s58 = sphi 0, %s42
      %s64 = sphi 0, %s66
      %s67 = sphi 0, %s64
      %s68 = sphi 0, %s67
      %s84 = sphi 0, %s68
      %s90 = sphi 0, %s92
      %s93 = sphi 0, %s90
      %s94 = sphi 0, %s93
      %s110 = sphi 0, %s94
      %s118 = sphi 0, %s120
      %s121 = sphi 0, %s118
      %s122 = sphi 0, %s121
      %s138 = sphi 0, %s122
    $region4: #{idae_forward.13} parent=1 // loop_header_branch
      %19 = sbr.rel (%p17) target = $region8
    $region5: #{idae_forward.13} parent=1 // loop_body
      %s21 = ssub.s32 %s16, 1
      %s22 = ssub.s32 %s16, 2
      %s29 = sadd.s32 1, %s24
      %p30 = scmp.ge.s32.totalorder %s29, 1
      %s31 = scalar_select %p30, 0, %s29
      %s32 = sadd.s32 1, %s23
      %s33 = scalar_select %p30, %s32, %s23
      %p34 = scmp.ge.s32.totalorder %s33, 2
      %s35 = scalar_select %p34, 0, %s33
      %s36 = ssub.s32 %s23, %s35
      %p37 = scmp.eq.s32.totalorder %s36, 0
      %s39 = sadd.s32 %s38, 1
      %s40 = scalar_select %p37, %s38, %s39
      %p43 = pneg %p37
      %p44 = scmp.eq.s32.totalorder %s16, 1
      %p45 = por %p43, %p44
      %p46 = scmp.ne.s32.totalorder %s38, %s41
      %p47 = scmp.eq.s32.totalorder %s16, 0
      %p48 = por %p46, %p47
      %p49 = scmp.ne.s32.totalorder %s38, %s41
      %p50 = scmp.eq.s32.totalorder %s21, 1
      %p51 = por %p49, %p50
      %p52 = scmp.ne.s32.totalorder %s41, %s42
      %p53 = scmp.eq.s32.totalorder %s21, 0
      %p54 = por %p52, %p53
      %p55 = scmp.ne.s32.totalorder %s41, %s42
      %p56 = scmp.eq.s32.totalorder %s22, 1
      %p57 = por %p55, %p56
      %p59 = scmp.ne.s32.totalorder %s42, %s58
      %p60 = scmp.eq.s32.totalorder %s22, 0
      %p61 = por %p59, %p60
      %s62 = ssub.s32 %s24, %s31
      %p63 = scmp.eq.s32.totalorder %s62, 0
      %s65 = sadd.s32 %s64, 1
      %s66 = scalar_select %p63, %s64, %s65
      %p69 = pneg %p63
      %p70 = scmp.eq.s32.totalorder %s16, 1
      %p71 = por %p69, %p70
      %p72 = scmp.ne.s32.totalorder %s64, %s67
      %p73 = scmp.eq.s32.totalorder %s16, 0
      %p74 = por %p72, %p73
      %p75 = scmp.ne.s32.totalorder %s64, %s67
      %p76 = scmp.eq.s32.totalorder %s21, 1
      %p77 = por %p75, %p76
      %p78 = scmp.ne.s32.totalorder %s67, %s68
      %p79 = scmp.eq.s32.totalorder %s21, 0
      %p80 = por %p78, %p79
      %p81 = scmp.ne.s32.totalorder %s67, %s68
      %p82 = scmp.eq.s32.totalorder %s22, 1
      %p83 = por %p81, %p82
      %p85 = scmp.ne.s32.totalorder %s68, %s84
      %p86 = scmp.eq.s32.totalorder %s22, 0
      %p87 = por %p85, %p86
      %s88 = ssub.s32 %s24, %s31
      %p89 = scmp.eq.s32.totalorder %s88, 0
      %s91 = sadd.s32 %s90, 1
      %s92 = scalar_select %p89, %s90, %s91
      %p95 = pneg %p89
      %p96 = scmp.eq.s32.totalorder %s16, 1
      %p97 = por %p95, %p96
      %p98 = scmp.ne.s32.totalorder %s90, %s93
      %p99 = scmp.eq.s32.totalorder %s16, 0
      %p100 = por %p98, %p99
      %p101 = scmp.ne.s32.totalorder %s90, %s93
      %p102 = scmp.eq.s32.totalorder %s21, 1
      %p103 = por %p101, %p102
      %p104 = scmp.ne.s32.totalorder %s93, %s94
      %p105 = scmp.eq.s32.totalorder %s21, 0
      %p106 = por %p104, %p105
      %p107 = scmp.ne.s32.totalorder %s93, %s94
      %p108 = scmp.eq.s32.totalorder %s22, 1
      %p109 = por %p107, %p108
      %p111 = scmp.ne.s32.totalorder %s94, %s110
      %p112 = scmp.eq.s32.totalorder %s22, 0
      %p113 = por %p111, %p112
      %s114 = ssub.s32 %s23, %s35
      %s115 = ssub.s32 %s24, %s31
      %s116 = sor.u32 %s114, %s115
      %p117 = scmp.eq.s32.totalorder %s116, 0
      %s119 = sadd.s32 %s118, 1
      %s120 = scalar_select %p117, %s118, %s119
      %p123 = pneg %p117
      %p124 = scmp.eq.s32.totalorder %s16, 1
      %p125 = por %p123, %p124
      %p126 = scmp.ne.s32.totalorder %s118, %s121
      %p127 = scmp.eq.s32.totalorder %s16, 0
      %p128 = por %p126, %p127
      %p129 = scmp.ne.s32.totalorder %s118, %s121
      %p130 = scmp.eq.s32.totalorder %s21, 1
      %p131 = por %p129, %p130
      %p132 = scmp.ne.s32.totalorder %s121, %s122
      %p133 = scmp.eq.s32.totalorder %s21, 0
      %p134 = por %p132, %p133
      %p135 = scmp.ne.s32.totalorder %s121, %s122
      %p136 = scmp.eq.s32.totalorder %s22, 1
      %p137 = por %p135, %p136
      %p139 = scmp.ne.s32.totalorder %s122, %s138
      %p140 = scmp.eq.s32.totalorder %s22, 0
      %p141 = por %p139, %p140
      %p142 = scmp.le.s32.totalorder 1, %s16
      %p143 = scmp.lt.s32.totalorder %s16, 3
      %p144 = pnand %p142, %p143
      %p145 = pneg %p144
      // Predicated region
      $region9: #{idae_forward.13} parent=5 // pred_check
        _
      $region10: #{idae_forward.13} parent=5 // pred_check_branch
        %147 = sbr.rel (%p144) target = $region12
      $region11: #{idae_forward.13} parent=5 // pred_region
        %s148 = ssub.s32 %s16, 1
        // Predicated region
        $region13: #{idae_forward.13} parent=11 // pred_check
          %p149 = pneg %p80
        $region14: #{idae_forward.13} parent=11 // pred_check_branch
          %151 = sbr.rel (%p149) target = $region16
        $region15: #{idae_forward.13} parent=11 // pred_region
          %s153 = ssub.s32 448, 448
          %154 = vsyncadd [#allocation6], %s153
          %s155 = smul.addr %s26, 64
          %s156 = scalar_lea.hbm %s1, %s155
          %s157 = sshll.u32 [#allocation5], 4
          %s158 = int_to_ptr.vmem [resolvable:$true] %s157
          %163 = dma.hbm_to_vmem [thread:$0]  %s156, 448, %s158, [#allocation6], 64, 64, 4
        $region16: #{idae_forward.13} parent=11 // pred_fallthru
          _
        // Predicated region
        $region17: #{idae_forward.13} parent=11 // pred_check
          %p164 = pneg %p106
        $region18: #{idae_forward.13} parent=11 // pred_check_branch
          %166 = sbr.rel (%p164) target = $region20
        $region19: #{idae_forward.13} parent=11 // pred_region
          %s168 = ssub.s32 16, 16
          %169 = vsyncadd [#allocation6], %s168
          %s170 = smul.addr %s26, 16
          %s171 = scalar_lea.hbm %s2, %s170
          %s173 = sshll.u32 [#allocation7], 4
          %s174 = int_to_ptr.vmem [resolvable:$true] %s173
          %176 = dma.hbm_to_vmem [thread:$0]  %s171, 16, %s174, [#allocation6]
        $region20: #{idae_forward.13} parent=11 // pred_fallthru
          _
      $region12: #{idae_forward.13} parent=5 // pred_fallthru
        _
      %p177 = scmp.lt.s32.totalorder %s16, 2
      // Predicated region
      $region21: #{idae_forward.13} parent=5 // pred_check
        %p178 = pneg %p177
      $region22: #{idae_forward.13} parent=5 // pred_check_branch
        %180 = sbr.rel (%p178) target = $region24
      $region23: #{idae_forward.13} parent=5 // pred_region
        // Predicated region
        $region25: #{idae_forward.13} parent=23 // pred_check
          %p181 = pneg %p48
        $region26: #{idae_forward.13} parent=23 // pred_check_branch
          %183 = sbr.rel (%p181) target = $region28
        $region27: #{idae_forward.13} parent=23 // pred_region
          %s184 = sand.u32 %s38, 1
          %s185 = scalar_lea.sflag [#allocation3], %s184
          %s186 = sand.u32 %s38, 1
          %s187 = smul.addr %s186, 8
          %s188 = scalar_lea.vmem [#allocation2], %s187
          %s189 = smul.u32 2, %s23
          %s191 = ssub.s32 128, 128
          %192 = vsyncadd %s185, %s191
          %s193 = smul.addr %s189, 64
          %s194 = scalar_lea.hbm %s0, %s193
          %s195 = sshll.u32 %s188, 4
          %s196 = int_to_ptr.vmem [resolvable:$true] %s195
          %201 = dma.hbm_to_vmem [thread:$0]  %s194, 128, %s196, %s185, 64, 64, 4
        $region28: #{idae_forward.13} parent=23 // pred_fallthru
          _
      $region24: #{idae_forward.13} parent=5 // pred_fallthru
        _
      %p202 = scmp.le.s32.totalorder 1, %s16
      %p203 = scmp.lt.s32.totalorder %s16, 3
      %p204 = pnand %p202, %p203
      %p205 = pneg %p204
      // Predicated region
      $region29: #{idae_forward.13} parent=5 // pred_check
        _
      $region30: #{idae_forward.13} parent=5 // pred_check_branch
        %207 = sbr.rel (%p204) target = $region32
      $region31: #{idae_forward.13} parent=5 // pred_region
        %s208 = ssub.s32 %s16, 1
        %s209 = sand.u32 %s41, 1
        %s210 = scalar_lea.sflag [#allocation3], %s209
        %s211 = sand.u32 %s41, 1
        %s212 = smul.addr %s211, 8
        %s213 = scalar_lea.vmem [#allocation2], %s212
        // Predicated region
        $region33: #{idae_forward.13} parent=31 // pred_check
          %p214 = pneg %p54
        $region34: #{idae_forward.13} parent=31 // pred_check_branch
          %216 = sbr.rel (%p214) target = $region36
        $region35: #{idae_forward.13} parent=31 // pred_region
          %217 = dma.done %s210, 128
        $region36: #{idae_forward.13} parent=31 // pred_fallthru
          _
        // Predicated region
        $region37: #{idae_forward.13} parent=31 // pred_check
          %p218 = pneg %p80
        $region38: #{idae_forward.13} parent=31 // pred_check_branch
          %220 = sbr.rel (%p218) target = $region40
        $region39: #{idae_forward.13} parent=31 // pred_region
          %221 = dma.done [#allocation6], 448
        $region40: #{idae_forward.13} parent=31 // pred_fallthru
          _
        // Predicated region
        $region41: #{idae_forward.13} parent=31 // pred_check
          %p222 = pneg %p106
        $region42: #{idae_forward.13} parent=31 // pred_check_branch
          %224 = sbr.rel (%p222) target = $region44
        $region43: #{idae_forward.13} parent=31 // pred_region
          %225 = dma.done [#allocation6], 16
        $region44: #{idae_forward.13} parent=31 // pred_fallthru
          _
        %s226 = sand.u32 %s41, 1
        %s227 = scalar_lea.sflag [#allocation3], %s226
        %s228 = sand.u32 %s41, 1
        %s229 = smul.addr %s228, 8
        %s230 = scalar_lea.vmem [#allocation2], %s229
        %p231 = pneg %p54
        %p232 = pneg %p51
        %p233 = pneg %p80
        %p234 = pneg %p77
        %p235 = pneg %p106
        %p236 = pneg %p103
        %p237 = pneg %p134
        %p238 = pneg %p131
        %s239 = sand.u32 %s121, 1
        %s240 = scalar_lea.sflag [#allocation4], %s239
        %s241 = sand.u32 %s121, 1
        %s242 = smul.addr %s241, 8
        %s243 = scalar_lea.vmem [#allocation8], %s242
        %s244 = smul.u32 2, %s25
        %s245 = smul.u32 2, %s25
        %v247 = vld [vmem:[%s213] sm:$0xf]
        %v248 = vld [vmem:[%s213 + $0x4] sm:$0xf]
        %v249 = vld [vmem:[#allocation5] sm:$0xf]
        %v250 = vld [vmem:[#allocation5 + $0x4] sm:$0xf]
        %v251 = vld [vmem:[#allocation5 + $0x8] sm:$0xf]
        %v252 = vld [vmem:[#allocation5 + $0xc] sm:$0xf]
        %v253 = vld [vmem:[#allocation5 + $0x10] sm:$0xf]
        %v254 = vld [vmem:[#allocation5 + $0x14] sm:$0xf]
        %v255 = vld [vmem:[#allocation5 + $0x18] sm:$0x1]
        %v256 = vld [vmem:[#allocation7] sm:$0x1]
        %v258 = vlaneseq
        %v259 = vshrl.u32 %v258, 7
        %v260 = vsub.s32 0, %v259
        %v261 = vrot.slane %v256, %v260
        %v265 = vunpack.c.l.b16 %v247
        %v266 = vunpack.c.l.b16 %v248
        %v267 = vpack.c.b16 %v266, %v265
        %v275 = vunpack.c.l.b16 %v249
        %v276 = vunpack.c.l.b16 %v250
        %v277 = vunpack.c.l.b16 %v251
        %v278 = vunpack.c.l.b16 %v252
        %v279 = vunpack.c.l.b16 %v253
        %v280 = vunpack.c.l.b16 %v254
        %v281 = vunpack.c.l.b16 %v255
        %v282 = vpack.c.b16 %v276, %v275
        %v283 = vpack.c.b16 %v278, %v277
        %v284 = vpack.c.b16 %v280, %v279
        %v285 = vpack.c.b16 %v281, %v281
        %vm289 = vcmask 408576
        %v291 = vsel %vm289, %v267, 0
        %vm293 = vcmask 1040384
        %v295 = vsel %vm293, %v285, 0
        %297 = vmatprep.subr.bf16.mxu0 0
        %298 = vmatpush1.bf16.msra.mxu0 %v282
        %299 = vmatprep.subr.bf16.mxu0 0
        %300 = vmatpush1.bf16.msra.mxu0 %v283
        %301 = vmatprep.subr.bf16.mxu0 0
        %302 = vmatpush1.bf16.msra.mxu0 %v284
        %303 = vmatprep.subr.bf16.mxu0 0
        %304 = vmatpush1.bf16.msra.mxu0 %v295
        %305 = vmatprep.subr.bf16.mxu0 0
        %306 = vmatpush1.bf16.msra.mxu0 0
        %307 = vmatprep.subr.bf16.mxu0 0
        %308 = vmatpush1.bf16.msra.mxu0 0
        %309 = vmatprep.subr.bf16.mxu0 0
        %310 = vmatpush1.bf16.msra.mxu0 0
        %311 = vmatprep.subr.bf16.mxu0 0
        %312 = vmatpush1.bf16.msra.mxu0 0
        %313 = vmatprep.subr.bf16.mxu0 0
        %314 = vmatpush1.bf16.msra.mxu0 0
        %315 = vmatprep.subr.bf16.mxu0 0
        %316 = vmatpush1.bf16.msra.mxu0 0
        %317 = vmatprep.subr.bf16.mxu0 0
        %318 = vmatpush1.bf16.msra.mxu0 0
        %319 = vmatprep.subr.bf16.mxu0 0
        %320 = vmatpush1.bf16.msra.mxu0 0
        %321 = vmatprep.subr.bf16.mxu0 0
        %322 = vmatpush1.bf16.msra.mxu0 0
        %323 = vmatprep.subr.bf16.mxu0 0
        %324 = vmatpush1.bf16.msra.mxu0 0
        %325 = vmatprep.subr.bf16.mxu0 0
        %326 = vmatpush1.bf16.msra.mxu0 0
        %327 = vmatprep.subr.bf16.mxu0 0
        %328 = vmatpush1.bf16.msra.mxu0 0
        %329 = vmatprep.mubr.bf16.mxu0 0
        %330 = vmatmul.mubr.bf16.gmra.mrb[0].mxu0 %v291
        %v331 = vpop.f32.mrb[0].mxu0
        %v332 = vadd.f32 %v261, %v331
        %v333 = vpop.f32.mrb[0].mxu0
        %v334 = vpop.f32.mrb[0].mxu0
        %v335 = vadd.f32 %v261, %v334
        %v336 = vpop.f32.mrb[0].mxu0
        %337 = vdwg.mxu0
        %v338 = vmax.f32 %v332, 0.0
        %v339 = vmax.f32 %v335, 0.0
        %v340 = vpack.c.bf16 %v339, %v338
        %v342 = vunpack.c.l.b16 %v340
        %v343 = vunpack.c.h.b16 %v340
        %v344 = vpack.c.b16 %v342, %v342
        %v345 = vpack.c.b16 %v343, %v343
        %348 = vst [vmem:[%s243] sm:$0xf] %v344
        %349 = vst [vmem:[%s243 + $0x4] sm:$0xf] %v345
        %s350 = sand.u32 %s121, 1
        %s351 = scalar_lea.sflag [#allocation4], %s350
        %s352 = sand.u32 %s121, 1
        %s353 = smul.addr %s352, 8
        %s354 = scalar_lea.vmem [#allocation8], %s353
        // Predicated region
        $region45: #{idae_forward.13} parent=31 // pred_check
          %p355 = pneg %p131
        $region46: #{idae_forward.13} parent=31 // pred_check_branch
          %357 = sbr.rel (%p355) target = $region48
        $region47: #{idae_forward.13} parent=31 // pred_region
          %s358 = smul.u32 2, %s25
          %s360 = ssub.s32 128, 128
          %361 = vsyncadd %s351, %s360
          %s362 = sadd.s32 %s26, %s358
          %s363 = smul.addr %s362, 64
          %s364 = scalar_lea.hbm %s3, %s363
          %s365 = sshll.u32 %s354, 4
          %s366 = int_to_ptr.vmem [resolvable:$true] %s365
          %371 = dma.vmem_to_hbm [thread:$0]  %s366, 128, %s364, %s351, 64, 64, 4
        $region48: #{idae_forward.13} parent=31 // pred_fallthru
          _
      $region32: #{idae_forward.13} parent=5 // pred_fallthru
        _
      %p372 = scmp.le.s32.totalorder 2, %s16
      // Predicated region
      $region49: #{idae_forward.13} parent=5 // pred_check
        %p373 = pneg %p372
      $region50: #{idae_forward.13} parent=5 // pred_check_branch
        %375 = sbr.rel (%p373) target = $region52
      $region51: #{idae_forward.13} parent=5 // pred_region
        %s376 = ssub.s32 %s16, 2
        // Predicated region
        $region53: #{idae_forward.13} parent=51 // pred_check
          %p377 = pneg %p137
        $region54: #{idae_forward.13} parent=51 // pred_check_branch
          %379 = sbr.rel (%p377) target = $region56
        $region55: #{idae_forward.13} parent=51 // pred_region
          %s380 = sand.u32 %s122, 1
          %s381 = scalar_lea.sflag [#allocation4], %s380
          %s382 = sand.u32 %s122, 1
          %s383 = smul.addr %s382, 8
          %s384 = scalar_lea.vmem [#allocation8], %s383
          %385 = dma.done %s381, 128
        $region56: #{idae_forward.13} parent=51 // pred_fallthru
          _
      $region52: #{idae_forward.13} parent=5 // pred_fallthru
        _
    $region6: #{idae_forward.13} parent=1 // loop_footer
      %s20 = sadd.s32 1, %s16
    $region7: #{idae_forward.13} parent=1 // loop_footer_branch
      %15 = sbr.rel target = $region3
    $region8: #{idae_forward.13} parent=1 // loop_exit
      _
    %386 = vsyncpa [#allocation3], 1
    %s387 = scalar_lea.sflag [#allocation3], 1
    %388 = vsyncpa %s387, 1
    %389 = vsyncpa [#allocation6], 1
    %390 = vsyncpa [#allocation4], 1
    %s391 = scalar_lea.sflag [#allocation4], 1
    %392 = vsyncpa %s391, 1

// kernel: idae_forward.14
$region0: #{idae_forward.14}
  #allocation0 [shape = 'u32[]', space=smem, size = 0x4, offset = 0x4, fixed_abs, tag = 'smem constant byte address 0x4 - core index']
  #allocation1 [shape = 'u32[144,128]{1,0:T(1,128)}', space=vmem, size = 0x12000, scoped, tag = 'internal scratch']
  %s0 = inlined_call_operand.hbm [shape: bf16[8,100], index: 0, kind: input, shape index: {}]
  %s1 = inlined_call_operand.hbm [shape: bf16[100,128], index: 1, kind: input, shape index: {}]
  %s2 = inlined_call_operand.hbm [shape: f32[1,128], index: 2, kind: input, shape index: {}]
  %s3 = inlined_call_operand.hbm [shape: bf16[8,128], index: 3, kind: output, shape index: {}]
  %s4 = sld [smem:[#allocation0]]
  $region34: #{idae_forward.14} parent=0
    _
  %s6 = ssub.s32 1, %s4
  %s7 = scalar_select 0, %s6, %s4
  $region1: #{idae_forward.14} parent=0
    #allocation2 [shape = 'u8[2048]{0}', space=vmem, size = 0x800, scoped, tag = 'input window, operand 0, single buffered']
    #allocation3 [shape = 's32[1]{0}', space=sflag, size = 0x4, scoped, tag = 'scoped memory for idae_forward.14']
    #allocation4 [shape = 's32[1]{0}', space=sflag, size = 0x4, scoped, tag = 'scoped memory for idae_forward.14']
    #allocation5 [shape = 'u8[26624]{0}', space=vmem, size = 0x6800, scoped, tag = 'input window, operand 1, single buffered']
    #allocation6 [shape = 's32[1]{0}', space=sflag, size = 0x4, scoped, tag = 'scoped memory for idae_forward.14']
    #allocation7 [shape = 'u8[512]{0}', space=vmem, size = 0x400, scoped, tag = 'input window, operand 2, single buffered']
    #allocation8 [shape = 'u8[2048]{0}', space=vmem, size = 0x800, scoped, tag = 'output window, operand 0, single buffered']
    %8 = vsyncpa [#allocation3], 0
    %9 = vsyncpa [#allocation6], 0
    %10 = vsyncpa [#allocation4], 0
    // Predicated region
    $region2: #{idae_forward.14} parent=1 // pred_check
      _
    $region3: #{idae_forward.14} parent=1 // pred_check_branch
      %12 = sbr.rel (0) target = $region5
    $region4: #{idae_forward.14} parent=1 // pred_region
      %s14 = ssub.s32 64, 64
      %15 = vsyncadd [#allocation3], %s14
      %s17 = sshll.u32 [#allocation2], 4
      %s18 = int_to_ptr.vmem [resolvable:$true] %s17
      %20 = dma.hbm_to_vmem [thread:$0]  %s0, 64, %s18, [#allocation3]
    $region5: #{idae_forward.14} parent=1 // pred_fallthru
      _
    // Predicated region
    $region6: #{idae_forward.14} parent=1 // pred_check
      _
    $region7: #{idae_forward.14} parent=1 // pred_check_branch
      %22 = sbr.rel (0) target = $region9
    $region8: #{idae_forward.14} parent=1 // pred_region
      %s24 = ssub.s32 832, 832
      %25 = vsyncadd [#allocation6], %s24
      %s26 = sshll.u32 [#allocation5], 4
      %s27 = int_to_ptr.vmem [resolvable:$true] %s26
      %32 = dma.hbm_to_vmem [thread:$0]  %s1, 832, %s27, [#allocation6], 64, 64, 4
    $region9: #{idae_forward.14} parent=1 // pred_fallthru
      _
    // Predicated region
    $region10: #{idae_forward.14} parent=1 // pred_check
      _
    $region11: #{idae_forward.14} parent=1 // pred_check_branch
      %34 = sbr.rel (0) target = $region13
    $region12: #{idae_forward.14} parent=1 // pred_region
      %s36 = ssub.s32 16, 16
      %37 = vsyncadd [#allocation6], %s36
      %s39 = sshll.u32 [#allocation7], 4
      %s40 = int_to_ptr.vmem [resolvable:$true] %s39
      %42 = dma.hbm_to_vmem [thread:$0]  %s2, 16, %s40, [#allocation6]
    $region13: #{idae_forward.14} parent=1 // pred_fallthru
      _
    // Predicated region
    $region14: #{idae_forward.14} parent=1 // pred_check
      _
    $region15: #{idae_forward.14} parent=1 // pred_check_branch
      %44 = sbr.rel (0) target = $region17
    $region16: #{idae_forward.14} parent=1 // pred_region
      %45 = dma.done [#allocation3], 64
    $region17: #{idae_forward.14} parent=1 // pred_fallthru
      _
    // Predicated region
    $region18: #{idae_forward.14} parent=1 // pred_check
      _
    $region19: #{idae_forward.14} parent=1 // pred_check_branch
      %47 = sbr.rel (0) target = $region21
    $region20: #{idae_forward.14} parent=1 // pred_region
      %48 = dma.done [#allocation6], 832
    $region21: #{idae_forward.14} parent=1 // pred_fallthru
      _
    // Predicated region
    $region22: #{idae_forward.14} parent=1 // pred_check
      _
    $region23: #{idae_forward.14} parent=1 // pred_check_branch
      %50 = sbr.rel (0) target = $region25
    $region24: #{idae_forward.14} parent=1 // pred_region
      %51 = dma.done [#allocation6], 16
    $region25: #{idae_forward.14} parent=1 // pred_fallthru
      _
    %v53 = vld [vmem:[#allocation2] sm:$0xf]
    %v54 = vld [vmem:[#allocation5] sm:$0xf]
    %v55 = vld [vmem:[#allocation5 + $0x4] sm:$0xf]
    %v56 = vld [vmem:[#allocation5 + $0x8] sm:$0xf]
    %v57 = vld [vmem:[#allocation5 + $0xc] sm:$0xf]
    %v58 = vld [vmem:[#allocation5 + $0x10] sm:$0xf]
    %v59 = vld [vmem:[#allocation5 + $0x14] sm:$0xf]
    %v60 = vld [vmem:[#allocation5 + $0x18] sm:$0xf]
    %v61 = vld [vmem:[#allocation5 + $0x1c] sm:$0xf]
    %v62 = vld [vmem:[#allocation5 + $0x20] sm:$0xf]
    %v63 = vld [vmem:[#allocation5 + $0x24] sm:$0xf]
    %v64 = vld [vmem:[#allocation5 + $0x28] sm:$0xf]
    %v65 = vld [vmem:[#allocation5 + $0x2c] sm:$0xf]
    %v66 = vld [vmem:[#allocation5 + $0x30] sm:$0x3]
    %v67 = vld [vmem:[#allocation7] sm:$0x1]
    %v69 = vlaneseq
    %v70 = vshrl.u32 %v69, 7
    %v71 = vsub.s32 0, %v70
    %v72 = vrot.slane %v67, %v71
    %v87 = vunpack.c.l.b16 %v54
    %v88 = vunpack.c.l.b16 %v55
    %v89 = vunpack.c.l.b16 %v56
    %v90 = vunpack.c.l.b16 %v57
    %v91 = vunpack.c.l.b16 %v58
    %v92 = vunpack.c.l.b16 %v59
    %v93 = vunpack.c.l.b16 %v60
    %v94 = vunpack.c.l.b16 %v61
    %v95 = vunpack.c.l.b16 %v62
    %v96 = vunpack.c.l.b16 %v63
    %v97 = vunpack.c.l.b16 %v64
    %v98 = vunpack.c.l.b16 %v65
    %v99 = vunpack.c.l.b16 %v66
    %v100 = vpack.c.b16 %v88, %v87
    %v101 = vpack.c.b16 %v90, %v89
    %v102 = vpack.c.b16 %v92, %v91
    %v103 = vpack.c.b16 %v94, %v93
    %v104 = vpack.c.b16 %v96, %v95
    %v105 = vpack.c.b16 %v98, %v97
    %v106 = vpack.c.b16 %v99, %v99
    %vm113 = vcmask 818176
    %v115 = vsel %vm113, %v53, 0
    %vm117 = vcmask 1041408
    %v119 = vsel %vm117, %v106, 0
    %121 = vmatprep.subr.bf16.mxu0 0
    %122 = vmatpush1.bf16.msra.mxu0 %v100
    %123 = vmatprep.subr.bf16.mxu0 0
    %124 = vmatpush1.bf16.msra.mxu0 %v101
    %125 = vmatprep.subr.bf16.mxu0 0
    %126 = vmatpush1.bf16.msra.mxu0 %v102
    %127 = vmatprep.subr.bf16.mxu0 0
    %128 = vmatpush1.bf16.msra.mxu0 %v103
    %129 = vmatprep.subr.bf16.mxu0 0
    %130 = vmatpush1.bf16.msra.mxu0 %v104
    %131 = vmatprep.subr.bf16.mxu0 0
    %132 = vmatpush1.bf16.msra.mxu0 %v105
    %133 = vmatprep.subr.bf16.mxu0 0
    %134 = vmatpush1.bf16.msra.mxu0 %v119
    %135 = vmatprep.subr.bf16.mxu0 0
    %136 = vmatpush1.bf16.msra.mxu0 0
    %137 = vmatprep.subr.bf16.mxu0 0
    %138 = vmatpush1.bf16.msra.mxu0 0
    %139 = vmatprep.subr.bf16.mxu0 0
    %140 = vmatpush1.bf16.msra.mxu0 0
    %141 = vmatprep.subr.bf16.mxu0 0
    %142 = vmatpush1.bf16.msra.mxu0 0
    %143 = vmatprep.subr.bf16.mxu0 0
    %144 = vmatpush1.bf16.msra.mxu0 0
    %145 = vmatprep.subr.bf16.mxu0 0
    %146 = vmatpush1.bf16.msra.mxu0 0
    %147 = vmatprep.subr.bf16.mxu0 0
    %148 = vmatpush1.bf16.msra.mxu0 0
    %149 = vmatprep.subr.bf16.mxu0 0
    %150 = vmatpush1.bf16.msra.mxu0 0
    %151 = vmatprep.subr.bf16.mxu0 0
    %152 = vmatpush1.bf16.msra.mxu0 0
    %153 = vmatprep.mubr.bf16.mxu0 0
    %154 = vmatmul.mubr.bf16.gmra.mrb[0].mxu0 %v115
    %v155 = vpop.f32.mrb[0].mxu0
    %v156 = vadd.f32 %v72, %v155
    %v157 = vpop.f32.mrb[0].mxu0
    %v158 = vpop.f32.mrb[0].mxu0
    %v159 = vpop.f32.mrb[0].mxu0
    %160 = vdwg.mxu0
    %v161 = vmax.f32 %v156, 0.0
    %v162 = vpack.c.bf16 %v161, %v161
    %163 = vst [vmem:[#allocation8] sm:$0xf] %v162
    // Predicated region
    $region26: #{idae_forward.14} parent=1 // pred_check
      _
    $region27: #{idae_forward.14} parent=1 // pred_check_branch
      %165 = sbr.rel (0) target = $region29
    $region28: #{idae_forward.14} parent=1 // pred_region
      %s167 = ssub.s32 64, 64
      %168 = vsyncadd [#allocation4], %s167
      %s170 = sshll.u32 [#allocation8], 4
      %s171 = int_to_ptr.vmem [resolvable:$true] %s170
      %173 = dma.vmem_to_hbm [thread:$0]  %s171, 64, %s3, [#allocation4]
    $region29: #{idae_forward.14} parent=1 // pred_fallthru
      _
    // Predicated region
    $region30: #{idae_forward.14} parent=1 // pred_check
      _
    $region31: #{idae_forward.14} parent=1 // pred_check_branch
      %175 = sbr.rel (0) target = $region33
    $region32: #{idae_forward.14} parent=1 // pred_region
      %176 = dma.done [#allocation4], 64
    $region33: #{idae_forward.14} parent=1 // pred_fallthru
      _
    %177 = vsyncpa [#allocation3], 1
    %178 = vsyncpa [#allocation6], 1
    %179 = vsyncpa [#allocation4], 1

// kernel: idae_forward.15
$region0: #{idae_forward.15}
  #allocation0 [shape = 'u32[]', space=smem, size = 0x4, offset = 0x4, fixed_abs, tag = 'smem constant byte address 0x4 - core index']
  #allocation1 [shape = 'u32[144,128]{1,0:T(1,128)}', space=vmem, size = 0x12000, scoped, tag = 'internal scratch']
  %s0 = inlined_call_operand.hbm [shape: bf16[2,200], index: 0, kind: input, shape index: {}]
  %s1 = inlined_call_operand.hbm [shape: bf16[200,128], index: 1, kind: input, shape index: {}]
  %s2 = inlined_call_operand.hbm [shape: f32[1,128], index: 2, kind: input, shape index: {}]
  %s3 = inlined_call_operand.hbm [shape: bf16[2,128], index: 3, kind: output, shape index: {}]
  %s4 = sld [smem:[#allocation0]]
  $region34: #{idae_forward.15} parent=0
    _
  %s6 = ssub.s32 1, %s4
  %s7 = scalar_select 0, %s6, %s4
  $region1: #{idae_forward.15} parent=0
    #allocation2 [shape = 'u8[1024]{0}', space=vmem, size = 0x400, scoped, tag = 'input window, operand 0, single buffered']
    #allocation3 [shape = 's32[1]{0}', space=sflag, size = 0x4, scoped, tag = 'scoped memory for idae_forward.15']
    #allocation4 [shape = 's32[1]{0}', space=sflag, size = 0x4, scoped, tag = 'scoped memory for idae_forward.15']
    #allocation5 [shape = 'u8[51200]{0}', space=vmem, size = 0xc800, scoped, tag = 'input window, operand 1, single buffered']
    #allocation6 [shape = 's32[1]{0}', space=sflag, size = 0x4, scoped, tag = 'scoped memory for idae_forward.15']
    #allocation7 [shape = 'u8[512]{0}', space=vmem, size = 0x400, scoped, tag = 'input window, operand 2, single buffered']
    #allocation8 [shape = 'u8[512]{0}', space=vmem, size = 0x400, scoped, tag = 'output window, operand 0, single buffered']
    %8 = vsyncpa [#allocation3], 0
    %9 = vsyncpa [#allocation6], 0
    %10 = vsyncpa [#allocation4], 0
    // Predicated region
    $region2: #{idae_forward.15} parent=1 // pred_check
      _
    $region3: #{idae_forward.15} parent=1 // pred_check_branch
      %12 = sbr.rel (0) target = $region5
    $region4: #{idae_forward.15} parent=1 // pred_region
      %s14 = ssub.s32 32, 32
      %15 = vsyncadd [#allocation3], %s14
      %s17 = sshll.u32 [#allocation2], 4
      %s18 = int_to_ptr.vmem [resolvable:$true] %s17
      %20 = dma.hbm_to_vmem [thread:$0]  %s0, 32, %s18, [#allocation3]
    $region5: #{idae_forward.15} parent=1 // pred_fallthru
      _
    // Predicated region
    $region6: #{idae_forward.15} parent=1 // pred_check
      _
    $region7: #{idae_forward.15} parent=1 // pred_check_branch
      %22 = sbr.rel (0) target = $region9
    $region8: #{idae_forward.15} parent=1 // pred_region
      %s24 = ssub.s32 1600, 1600
      %25 = vsyncadd [#allocation6], %s24
      %s26 = sshll.u32 [#allocation5], 4
      %s27 = int_to_ptr.vmem [resolvable:$true] %s26
      %32 = dma.hbm_to_vmem [thread:$0]  %s1, 1600, %s27, [#allocation6], 64, 64, 4
    $region9: #{idae_forward.15} parent=1 // pred_fallthru
      _
    // Predicated region
    $region10: #{idae_forward.15} parent=1 // pred_check
      _
    $region11: #{idae_forward.15} parent=1 // pred_check_branch
      %34 = sbr.rel (0) target = $region13
    $region12: #{idae_forward.15} parent=1 // pred_region
      %s36 = ssub.s32 16, 16
      %37 = vsyncadd [#allocation6], %s36
      %s39 = sshll.u32 [#allocation7], 4
      %s40 = int_to_ptr.vmem [resolvable:$true] %s39
      %42 = dma.hbm_to_vmem [thread:$0]  %s2, 16, %s40, [#allocation6]
    $region13: #{idae_forward.15} parent=1 // pred_fallthru
      _
    // Predicated region
    $region14: #{idae_forward.15} parent=1 // pred_check
      _
    $region15: #{idae_forward.15} parent=1 // pred_check_branch
      %44 = sbr.rel (0) target = $region17
    $region16: #{idae_forward.15} parent=1 // pred_region
      %45 = dma.done [#allocation3], 32
    $region17: #{idae_forward.15} parent=1 // pred_fallthru
      _
    // Predicated region
    $region18: #{idae_forward.15} parent=1 // pred_check
      _
    $region19: #{idae_forward.15} parent=1 // pred_check_branch
      %47 = sbr.rel (0) target = $region21
    $region20: #{idae_forward.15} parent=1 // pred_region
      %48 = dma.done [#allocation6], 1600
    $region21: #{idae_forward.15} parent=1 // pred_fallthru
      _
    // Predicated region
    $region22: #{idae_forward.15} parent=1 // pred_check
      _
    $region23: #{idae_forward.15} parent=1 // pred_check_branch
      %50 = sbr.rel (0) target = $region25
    $region24: #{idae_forward.15} parent=1 // pred_region
      %51 = dma.done [#allocation6], 16
    $region25: #{idae_forward.15} parent=1 // pred_fallthru
      _
    %v53 = vld [vmem:[#allocation2] sm:$0x3]
    %v54 = vld [vmem:[#allocation5] sm:$0xf]
    %v55 = vld [vmem:[#allocation5 + $0x4] sm:$0xf]
    %v56 = vld [vmem:[#allocation5 + $0x8] sm:$0xf]
    %v57 = vld [vmem:[#allocation5 + $0xc] sm:$0xf]
    %v58 = vld [vmem:[#allocation5 + $0x10] sm:$0xf]
    %v59 = vld [vmem:[#allocation5 + $0x14] sm:$0xf]
    %v60 = vld [vmem:[#allocation5 + $0x18] sm:$0xf]
    %v61 = vld [vmem:[#allocation5 + $0x1c] sm:$0xf]
    %v62 = vld [vmem:[#allocation5 + $0x20] sm:$0xf]
    %v63 = vld [vmem:[#allocation5 + $0x24] sm:$0xf]
    %v64 = vld [vmem:[#allocation5 + $0x28] sm:$0xf]
    %v65 = vld [vmem:[#allocation5 + $0x2c] sm:$0xf]
    %v66 = vld [vmem:[#allocation5 + $0x30] sm:$0xf]
    %v67 = vld [vmem:[#allocation5 + $0x34] sm:$0xf]
    %v68 = vld [vmem:[#allocation5 + $0x38] sm:$0xf]
    %v69 = vld [vmem:[#allocation5 + $0x3c] sm:$0xf]
    %v70 = vld [vmem:[#allocation5 + $0x40] sm:$0xf]
    %v71 = vld [vmem:[#allocation5 + $0x44] sm:$0xf]
    %v72 = vld [vmem:[#allocation5 + $0x48] sm:$0xf]
    %v73 = vld [vmem:[#allocation5 + $0x4c] sm:$0xf]
    %v74 = vld [vmem:[#allocation5 + $0x50] sm:$0xf]
    %v75 = vld [vmem:[#allocation5 + $0x54] sm:$0xf]
    %v76 = vld [vmem:[#allocation5 + $0x58] sm:$0xf]
    %v77 = vld [vmem:[#allocation5 + $0x5c] sm:$0xf]
    %v78 = vld [vmem:[#allocation5 + $0x60] sm:$0xf]
    %v79 = vld [vmem:[#allocation7] sm:$0x1]
    %v81 = vlaneseq
    %v82 = vshrl.u32 %v81, 7
    %v83 = vsub.s32 0, %v82
    %v84 = vrot.slane %v79, %v83
    %v88 = vunpack.c.l.s4 1966171168
    %v89 = vunpack.c.0.s8 %v88
    %v90 = vlaneseq
    %v91 = vshrl.u32 %v90, 7
    %v92 = vsub.s32 %v89, %v91
    %v93 = vrot.slane %v53, %v92
    %v94 = vcombine.high %v93, %v93
    %v96 = vunpack.c.l.s4 1966171168
    %v97 = vunpack.c.0.s8 %v96
    %v98 = vlaneseq
    %v99 = vshrl.u32 %v98, 7
    %v100 = vsub.s32 %v97, %v99
    %v101 = vrot.slane %v93, %v100
    %v103 = vunpack.c.l.s4 1966171168
    %v104 = vunpack.c.0.s8 %v103
    %v105 = vlaneseq
    %v106 = vshrl.u32 %v105, 7
    %v107 = vsub.s32 %v104, %v106
    %v108 = vrot.slane %v94, %v107
    %v135 = vunpack.c.l.b16 %v54
    %v136 = vunpack.c.l.b16 %v55
    %v137 = vunpack.c.l.b16 %v56
    %v138 = vunpack.c.l.b16 %v57
    %v139 = vunpack.c.l.b16 %v58
    %v140 = vunpack.c.l.b16 %v59
    %v141 = vunpack.c.l.b16 %v60
    %v142 = vunpack.c.l.b16 %v61
    %v143 = vunpack.c.l.b16 %v62
    %v144 = vunpack.c.l.b16 %v63
    %v145 = vunpack.c.l.b16 %v64
    %v146 = vunpack.c.l.b16 %v65
    %v147 = vunpack.c.l.b16 %v66
    %v148 = vunpack.c.l.b16 %v67
    %v149 = vunpack.c.l.b16 %v68
    %v150 = vunpack.c.l.b16 %v69
    %v151 = vunpack.c.l.b16 %v70
    %v152 = vunpack.c.l.b16 %v71
    %v153 = vunpack.c.l.b16 %v72
    %v154 = vunpack.c.l.b16 %v73
    %v155 = vunpack.c.l.b16 %v74
    %v156 = vunpack.c.l.b16 %v75
    %v157 = vunpack.c.l.b16 %v76
    %v158 = vunpack.c.l.b16 %v77
    %v159 = vunpack.c.l.b16 %v78
    %v160 = vpack.c.b16 %v136, %v135
    %v161 = vpack.c.b16 %v138, %v137
    %v162 = vpack.c.b16 %v140, %v139
    %v163 = vpack.c.b16 %v142, %v141
    %v164 = vpack.c.b16 %v144, %v143
    %v165 = vpack.c.b16 %v146, %v145
    %v166 = vpack.c.b16 %v148, %v147
    %v167 = vpack.c.b16 %v150, %v149
    %v168 = vpack.c.b16 %v152, %v151
    %v169 = vpack.c.b16 %v154, %v153
    %v170 = vpack.c.b16 %v156, %v155
    %v171 = vpack.c.b16 %v158, %v157
    %v172 = vpack.c.b16 %v159, %v159
    %vm185 = vcmask 588800
    %v187 = vsel %vm185, %v108, 0
    %vm189 = vcmask 1043456
    %v191 = vsel %vm189, %v172, 0
    %193 = vmatprep.subr.bf16.mxu0 0
    %194 = vmatpush1.bf16.msra.mxu0 %v160
    %195 = vmatprep.subr.bf16.mxu0 0
    %196 = vmatpush1.bf16.msra.mxu0 %v161
    %197 = vmatprep.subr.bf16.mxu0 0
    %198 = vmatpush1.bf16.msra.mxu0 %v162
    %199 = vmatprep.subr.bf16.mxu0 0
    %200 = vmatpush1.bf16.msra.mxu0 %v163
    %201 = vmatprep.subr.bf16.mxu0 0
    %202 = vmatpush1.bf16.msra.mxu0 %v164
    %203 = vmatprep.subr.bf16.mxu0 0
    %204 = vmatpush1.bf16.msra.mxu0 %v165
    %205 = vmatprep.subr.bf16.mxu0 0
    %206 = vmatpush1.bf16.msra.mxu0 %v166
    %207 = vmatprep.subr.bf16.mxu0 0
    %208 = vmatpush1.bf16.msra.mxu0 %v167
    %209 = vmatprep.subr.bf16.mxu0 0
    %210 = vmatpush1.bf16.msra.mxu0 %v168
    %211 = vmatprep.subr.bf16.mxu0 0
    %212 = vmatpush1.bf16.msra.mxu0 %v169
    %213 = vmatprep.subr.bf16.mxu0 0
    %214 = vmatpush1.bf16.msra.mxu0 %v170
    %215 = vmatprep.subr.bf16.mxu0 0
    %216 = vmatpush1.bf16.msra.mxu0 %v171
    %217 = vmatprep.subr.bf16.mxu0 0
    %218 = vmatpush1.bf16.msra.mxu0 %v191
    %219 = vmatprep.subr.bf16.mxu0 0
    %220 = vmatpush1.bf16.msra.mxu0 0
    %221 = vmatprep.subr.bf16.mxu0 0
    %222 = vmatpush1.bf16.msra.mxu0 0
    %223 = vmatprep.subr.bf16.mxu0 0
    %224 = vmatpush1.bf16.msra.mxu0 0
    %225 = vmatprep.mubr.bf16.mxu0 %v187
    %226 = vmatmul.mubr.bf16.gmra.mrb[0].mxu0 %v101
    %v227 = vpop.f32.mrb[0].mxu0
    %v228 = vadd.f32 %v84, %v227
    %v229 = vpop.f32.mrb[0].mxu0
    %v230 = vpop.f32.mrb[0].mxu0
    %v231 = vpop.f32.mrb[0].mxu0
    %232 = vdwg.mxu0
    %v233 = vmax.f32 %v228, 0.0
    %v234 = vpack.c.bf16 %v233, %v233
    %235 = vst [vmem:[#allocation8] sm:$0x1] %v234
    // Predicated region
    $region26: #{idae_forward.15} parent=1 // pred_check
      _
    $region27: #{idae_forward.15} parent=1 // pred_check_branch
      %237 = sbr.rel (0) target = $region29
    $region28: #{idae_forward.15} parent=1 // pred_region
      %s239 = ssub.s32 16, 16
      %240 = vsyncadd [#allocation4], %s239
      %s242 = sshll.u32 [#allocation8], 4
      %s243 = int_to_ptr.vmem [resolvable:$true] %s242
      %245 = dma.vmem_to_hbm [thread:$0]  %s243, 16, %s3, [#allocation4]
    $region29: #{idae_forward.15} parent=1 // pred_fallthru
      _
    // Predicated region
    $region30: #{idae_forward.15} parent=1 // pred_check
      _
    $region31: #{idae_forward.15} parent=1 // pred_check_branch
      %247 = sbr.rel (0) target = $region33
    $region32: #{idae_forward.15} parent=1 // pred_region
      %248 = dma.done [#allocation4], 16
    $region33: #{idae_forward.15} parent=1 // pred_fallthru
      _
    %249 = vsyncpa [#allocation3], 1
    %250 = vsyncpa [#allocation6], 1
    %251 = vsyncpa [#allocation4], 1

// kernel: idae_forward.18
$region0: #{idae_forward.18}
  #allocation0 [shape = 'u32[]', space=smem, size = 0x4, offset = 0x4, fixed_abs, tag = 'smem constant byte address 0x4 - core index']
  #allocation1 [shape = 'u32[144,128]{1,0:T(1,128)}', space=vmem, size = 0x12000, scoped, tag = 'internal scratch']
  %s0 = inlined_call_operand.hbm [shape: bf16[2,64], index: 0, kind: input, shape index: {}]
  %s1 = inlined_call_operand.hbm [shape: bf16[64,128], index: 1, kind: input, shape index: {}]
  %s2 = inlined_call_operand.hbm [shape: f32[1,128], index: 2, kind: input, shape index: {}]
  %s3 = inlined_call_operand.hbm [shape: bf16[2,128], index: 3, kind: output, shape index: {}]
  %s4 = sld [smem:[#allocation0]]
  $region34: #{idae_forward.18} parent=0
    _
  %s6 = ssub.s32 1, %s4
  %s7 = scalar_select 0, %s6, %s4
  $region1: #{idae_forward.18} parent=0
    #allocation2 [shape = 'u8[512]{0}', space=vmem, size = 0x400, scoped, tag = 'input window, operand 0, single buffered']
    #allocation3 [shape = 's32[1]{0}', space=sflag, size = 0x4, scoped, tag = 'scoped memory for idae_forward.18']
    #allocation4 [shape = 's32[1]{0}', space=sflag, size = 0x4, scoped, tag = 'scoped memory for idae_forward.18']
    #allocation5 [shape = 'u8[16384]{0}', space=vmem, size = 0x4000, scoped, tag = 'input window, operand 1, single buffered']
    #allocation6 [shape = 's32[1]{0}', space=sflag, size = 0x4, scoped, tag = 'scoped memory for idae_forward.18']
    #allocation7 [shape = 'u8[512]{0}', space=vmem, size = 0x400, scoped, tag = 'input window, operand 2, single buffered']
    #allocation8 [shape = 'u8[512]{0}', space=vmem, size = 0x400, scoped, tag = 'output window, operand 0, single buffered']
    %8 = vsyncpa [#allocation3], 0
    %9 = vsyncpa [#allocation6], 0
    %10 = vsyncpa [#allocation4], 0
    // Predicated region
    $region2: #{idae_forward.18} parent=1 // pred_check
      _
    $region3: #{idae_forward.18} parent=1 // pred_check_branch
      %12 = sbr.rel (0) target = $region5
    $region4: #{idae_forward.18} parent=1 // pred_region
      %s14 = ssub.s32 16, 16
      %15 = vsyncadd [#allocation3], %s14
      %s17 = sshll.u32 [#allocation2], 4
      %s18 = int_to_ptr.vmem [resolvable:$true] %s17
      %20 = dma.hbm_to_vmem [thread:$0]  %s0, 16, %s18, [#allocation3]
    $region5: #{idae_forward.18} parent=1 // pred_fallthru
      _
    // Predicated region
    $region6: #{idae_forward.18} parent=1 // pred_check
      _
    $region7: #{idae_forward.18} parent=1 // pred_check_branch
      %22 = sbr.rel (0) target = $region9
    $region8: #{idae_forward.18} parent=1 // pred_region
      %s24 = ssub.s32 512, 512
      %25 = vsyncadd [#allocation6], %s24
      %s26 = sshll.u32 [#allocation5], 4
      %s27 = int_to_ptr.vmem [resolvable:$true] %s26
      %32 = dma.hbm_to_vmem [thread:$0]  %s1, 512, %s27, [#allocation6], 64, 64, 4
    $region9: #{idae_forward.18} parent=1 // pred_fallthru
      _
    // Predicated region
    $region10: #{idae_forward.18} parent=1 // pred_check
      _
    $region11: #{idae_forward.18} parent=1 // pred_check_branch
      %34 = sbr.rel (0) target = $region13
    $region12: #{idae_forward.18} parent=1 // pred_region
      %s36 = ssub.s32 16, 16
      %37 = vsyncadd [#allocation6], %s36
      %s39 = sshll.u32 [#allocation7], 4
      %s40 = int_to_ptr.vmem [resolvable:$true] %s39
      %42 = dma.hbm_to_vmem [thread:$0]  %s2, 16, %s40, [#allocation6]
    $region13: #{idae_forward.18} parent=1 // pred_fallthru
      _
    // Predicated region
    $region14: #{idae_forward.18} parent=1 // pred_check
      _
    $region15: #{idae_forward.18} parent=1 // pred_check_branch
      %44 = sbr.rel (0) target = $region17
    $region16: #{idae_forward.18} parent=1 // pred_region
      %45 = dma.done [#allocation3], 16
    $region17: #{idae_forward.18} parent=1 // pred_fallthru
      _
    // Predicated region
    $region18: #{idae_forward.18} parent=1 // pred_check
      _
    $region19: #{idae_forward.18} parent=1 // pred_check_branch
      %47 = sbr.rel (0) target = $region21
    $region20: #{idae_forward.18} parent=1 // pred_region
      %48 = dma.done [#allocation6], 512
    $region21: #{idae_forward.18} parent=1 // pred_fallthru
      _
    // Predicated region
    $region22: #{idae_forward.18} parent=1 // pred_check
      _
    $region23: #{idae_forward.18} parent=1 // pred_check_branch
      %50 = sbr.rel (0) target = $region25
    $region24: #{idae_forward.18} parent=1 // pred_region
      %51 = dma.done [#allocation6], 16
    $region25: #{idae_forward.18} parent=1 // pred_fallthru
      _
    %v53 = vld [vmem:[#allocation2] sm:$0x1]
    %v54 = vld [vmem:[#allocation5] sm:$0xf]
    %v55 = vld [vmem:[#allocation5 + $0x4] sm:$0xf]
    %v56 = vld [vmem:[#allocation5 + $0x8] sm:$0xf]
    %v57 = vld [vmem:[#allocation5 + $0xc] sm:$0xf]
    %v58 = vld [vmem:[#allocation5 + $0x10] sm:$0xf]
    %v59 = vld [vmem:[#allocation5 + $0x14] sm:$0xf]
    %v60 = vld [vmem:[#allocation5 + $0x18] sm:$0xf]
    %v61 = vld [vmem:[#allocation5 + $0x1c] sm:$0xf]
    %v62 = vld [vmem:[#allocation7] sm:$0x1]
    %v64 = vlaneseq
    %v65 = vshrl.u32 %v64, 7
    %v66 = vsub.s32 0, %v65
    %v67 = vrot.slane %v62, %v66
    %v77 = vunpack.c.l.b16 %v54
    %v78 = vunpack.c.l.b16 %v55
    %v79 = vunpack.c.l.b16 %v56
    %v80 = vunpack.c.l.b16 %v57
    %v81 = vunpack.c.l.b16 %v58
    %v82 = vunpack.c.l.b16 %v59
    %v83 = vunpack.c.l.b16 %v60
    %v84 = vunpack.c.l.b16 %v61
    %v85 = vpack.c.b16 %v78, %v77
    %v86 = vpack.c.b16 %v80, %v79
    %v87 = vpack.c.b16 %v82, %v81
    %v88 = vpack.c.b16 %v84, %v83
    %vm93 = vcmask 523264
    %v95 = vsel %vm93, %v53, 0
    %97 = vmatprep.subr.bf16.mxu0 0
    %98 = vmatpush1.bf16.msra.mxu0 %v85
    %99 = vmatprep.subr.bf16.mxu0 0
    %100 = vmatpush1.bf16.msra.mxu0 %v86
    %101 = vmatprep.subr.bf16.mxu0 0
    %102 = vmatpush1.bf16.msra.mxu0 %v87
    %103 = vmatprep.subr.bf16.mxu0 0
    %104 = vmatpush1.bf16.msra.mxu0 %v88
    %105 = vmatprep.subr.bf16.mxu0 0
    %106 = vmatpush1.bf16.msra.mxu0 0
    %107 = vmatprep.subr.bf16.mxu0 0
    %108 = vmatpush1.bf16.msra.mxu0 0
    %109 = vmatprep.subr.bf16.mxu0 0
    %110 = vmatpush1.bf16.msra.mxu0 0
    %111 = vmatprep.subr.bf16.mxu0 0
    %112 = vmatpush1.bf16.msra.mxu0 0
    %113 = vmatprep.subr.bf16.mxu0 0
    %114 = vmatpush1.bf16.msra.mxu0 0
    %115 = vmatprep.subr.bf16.mxu0 0
    %116 = vmatpush1.bf16.msra.mxu0 0
    %117 = vmatprep.subr.bf16.mxu0 0
    %118 = vmatpush1.bf16.msra.mxu0 0
    %119 = vmatprep.subr.bf16.mxu0 0
    %120 = vmatpush1.bf16.msra.mxu0 0
    %121 = vmatprep.subr.bf16.mxu0 0
    %122 = vmatpush1.bf16.msra.mxu0 0
    %123 = vmatprep.subr.bf16.mxu0 0
    %124 = vmatpush1.bf16.msra.mxu0 0
    %125 = vmatprep.subr.bf16.mxu0 0
    %126 = vmatpush1.bf16.msra.mxu0 0
    %127 = vmatprep.subr.bf16.mxu0 0
    %128 = vmatpush1.bf16.msra.mxu0 0
    %129 = vmatprep.mubr.bf16.mxu0 0
    %130 = vmatmul.mubr.bf16.gmra.mrb[0].mxu0 %v95
    %v131 = vpop.f32.mrb[0].mxu0
    %v132 = vadd.f32 %v67, %v131
    %v133 = vpop.f32.mrb[0].mxu0
    %v134 = vpop.f32.mrb[0].mxu0
    %v135 = vpop.f32.mrb[0].mxu0
    %136 = vdwg.mxu0
    %v137 = vmax.f32 %v132, 0.0
    %v138 = vpack.c.bf16 %v137, %v137
    %139 = vst [vmem:[#allocation8] sm:$0x1] %v138
    // Predicated region
    $region26: #{idae_forward.18} parent=1 // pred_check
      _
    $region27: #{idae_forward.18} parent=1 // pred_check_branch
      %141 = sbr.rel (0) target = $region29
    $region28: #{idae_forward.18} parent=1 // pred_region
      %s143 = ssub.s32 16, 16
      %144 = vsyncadd [#allocation4], %s143
      %s146 = sshll.u32 [#allocation8], 4
      %s147 = int_to_ptr.vmem [resolvable:$true] %s146
      %149 = dma.vmem_to_hbm [thread:$0]  %s147, 16, %s3, [#allocation4]
    $region29: #{idae_forward.18} parent=1 // pred_fallthru
      _
    // Predicated region
    $region30: #{idae_forward.18} parent=1 // pred_check
      _
    $region31: #{idae_forward.18} parent=1 // pred_check_branch
      %151 = sbr.rel (0) target = $region33
    $region32: #{idae_forward.18} parent=1 // pred_region
      %152 = dma.done [#allocation4], 16
    $region33: #{idae_forward.18} parent=1 // pred_fallthru
      _
    %153 = vsyncpa [#allocation3], 1
    %154 = vsyncpa [#allocation6], 1
    %155 = vsyncpa [#allocation4], 1

// kernel: idae_forward.17
$region0: #{idae_forward.17}
  #allocation0 [shape = 'u32[]', space=smem, size = 0x4, offset = 0x4, fixed_abs, tag = 'smem constant byte address 0x4 - core index']
  #allocation1 [shape = 'u32[144,128]{1,0:T(1,128)}', space=vmem, size = 0x12000, scoped, tag = 'internal scratch']
  %s0 = inlined_call_operand.hbm [shape: bf16[2,8], index: 0, kind: input, shape index: {}]
  %s1 = inlined_call_operand.hbm [shape: bf16[8,128], index: 1, kind: input, shape index: {}]
  %s2 = inlined_call_operand.hbm [shape: f32[1,128], index: 2, kind: input, shape index: {}]
  %s3 = inlined_call_operand.hbm [shape: bf16[2,128], index: 3, kind: output, shape index: {}]
  %s4 = sld [smem:[#allocation0]]
  $region34: #{idae_forward.17} parent=0
    _
  %s6 = ssub.s32 1, %s4
  %s7 = scalar_select 0, %s6, %s4
  $region1: #{idae_forward.17} parent=0
    #allocation2 [shape = 'u8[512]{0}', space=vmem, size = 0x400, scoped, tag = 'input window, operand 0, single buffered']
    #allocation3 [shape = 's32[1]{0}', space=sflag, size = 0x4, scoped, tag = 'scoped memory for idae_forward.17']
    #allocation4 [shape = 's32[1]{0}', space=sflag, size = 0x4, scoped, tag = 'scoped memory for idae_forward.17']
    #allocation5 [shape = 'u8[2048]{0}', space=vmem, size = 0x800, scoped, tag = 'input window, operand 1, single buffered']
    #allocation6 [shape = 's32[1]{0}', space=sflag, size = 0x4, scoped, tag = 'scoped memory for idae_forward.17']
    #allocation7 [shape = 'u8[512]{0}', space=vmem, size = 0x400, scoped, tag = 'input window, operand 2, single buffered']
    #allocation8 [shape = 'u8[512]{0}', space=vmem, size = 0x400, scoped, tag = 'output window, operand 0, single buffered']
    %8 = vsyncpa [#allocation3], 0
    %9 = vsyncpa [#allocation6], 0
    %10 = vsyncpa [#allocation4], 0
    // Predicated region
    $region2: #{idae_forward.17} parent=1 // pred_check
      _
    $region3: #{idae_forward.17} parent=1 // pred_check_branch
      %12 = sbr.rel (0) target = $region5
    $region4: #{idae_forward.17} parent=1 // pred_region
      %s14 = ssub.s32 16, 16
      %15 = vsyncadd [#allocation3], %s14
      %s17 = sshll.u32 [#allocation2], 4
      %s18 = int_to_ptr.vmem [resolvable:$true] %s17
      %20 = dma.hbm_to_vmem [thread:$0]  %s0, 16, %s18, [#allocation3]
    $region5: #{idae_forward.17} parent=1 // pred_fallthru
      _
    // Predicated region
    $region6: #{idae_forward.17} parent=1 // pred_check
      _
    $region7: #{idae_forward.17} parent=1 // pred_check_branch
      %22 = sbr.rel (0) target = $region9
    $region8: #{idae_forward.17} parent=1 // pred_region
      %s24 = ssub.s32 64, 64
      %25 = vsyncadd [#allocation6], %s24
      %s27 = sshll.u32 [#allocation5], 4
      %s28 = int_to_ptr.vmem [resolvable:$true] %s27
      %30 = dma.hbm_to_vmem [thread:$0]  %s1, 64, %s28, [#allocation6]
    $region9: #{idae_forward.17} parent=1 // pred_fallthru
      _
    // Predicated region
    $region10: #{idae_forward.17} parent=1 // pred_check
      _
    $region11: #{idae_forward.17} parent=1 // pred_check_branch
      %32 = sbr.rel (0) target = $region13
    $region12: #{idae_forward.17} parent=1 // pred_region
      %s34 = ssub.s32 16, 16
      %35 = vsyncadd [#allocation6], %s34
      %s37 = sshll.u32 [#allocation7], 4
      %s38 = int_to_ptr.vmem [resolvable:$true] %s37
      %40 = dma.hbm_to_vmem [thread:$0]  %s2, 16, %s38, [#allocation6]
    $region13: #{idae_forward.17} parent=1 // pred_fallthru
      _
    // Predicated region
    $region14: #{idae_forward.17} parent=1 // pred_check
      _
    $region15: #{idae_forward.17} parent=1 // pred_check_branch
      %42 = sbr.rel (0) target = $region17
    $region16: #{idae_forward.17} parent=1 // pred_region
      %43 = dma.done [#allocation3], 16
    $region17: #{idae_forward.17} parent=1 // pred_fallthru
      _
    // Predicated region
    $region18: #{idae_forward.17} parent=1 // pred_check
      _
    $region19: #{idae_forward.17} parent=1 // pred_check_branch
      %45 = sbr.rel (0) target = $region21
    $region20: #{idae_forward.17} parent=1 // pred_region
      %46 = dma.done [#allocation6], 64
    $region21: #{idae_forward.17} parent=1 // pred_fallthru
      _
    // Predicated region
    $region22: #{idae_forward.17} parent=1 // pred_check
      _
    $region23: #{idae_forward.17} parent=1 // pred_check_branch
      %48 = sbr.rel (0) target = $region25
    $region24: #{idae_forward.17} parent=1 // pred_region
      %49 = dma.done [#allocation6], 16
    $region25: #{idae_forward.17} parent=1 // pred_fallthru
      _
    %v51 = vld [vmem:[#allocation2] sm:$0x1]
    %v52 = vld [vmem:[#allocation5] sm:$0xf]
    %v53 = vld [vmem:[#allocation7] sm:$0x1]
    %v55 = vlaneseq
    %v56 = vshrl.u32 %v55, 7
    %v57 = vsub.s32 0, %v56
    %v58 = vrot.slane %v53, %v57
    %vm60 = vcmask 64512
    %v62 = vsel %vm60, %v51, 0
    %vm64 = vcmask 1043456
    %v66 = vsel %vm64, %v52, 0
    %68 = vmatprep.subr.bf16.mxu0 0
    %69 = vmatpush1.bf16.msra.mxu0 %v66
    %70 = vmatprep.subr.bf16.mxu0 0
    %71 = vmatpush1.bf16.msra.mxu0 0
    %72 = vmatprep.subr.bf16.mxu0 0
    %73 = vmatpush1.bf16.msra.mxu0 0
    %74 = vmatprep.subr.bf16.mxu0 0
    %75 = vmatpush1.bf16.msra.mxu0 0
    %76 = vmatprep.subr.bf16.mxu0 0
    %77 = vmatpush1.bf16.msra.mxu0 0
    %78 = vmatprep.subr.bf16.mxu0 0
    %79 = vmatpush1.bf16.msra.mxu0 0
    %80 = vmatprep.subr.bf16.mxu0 0
    %81 = vmatpush1.bf16.msra.mxu0 0
    %82 = vmatprep.subr.bf16.mxu0 0
    %83 = vmatpush1.bf16.msra.mxu0 0
    %84 = vmatprep.subr.bf16.mxu0 0
    %85 = vmatpush1.bf16.msra.mxu0 0
    %86 = vmatprep.subr.bf16.mxu0 0
    %87 = vmatpush1.bf16.msra.mxu0 0
    %88 = vmatprep.subr.bf16.mxu0 0
    %89 = vmatpush1.bf16.msra.mxu0 0
    %90 = vmatprep.subr.bf16.mxu0 0
    %91 = vmatpush1.bf16.msra.mxu0 0
    %92 = vmatprep.subr.bf16.mxu0 0
    %93 = vmatpush1.bf16.msra.mxu0 0
    %94 = vmatprep.subr.bf16.mxu0 0
    %95 = vmatpush1.bf16.msra.mxu0 0
    %96 = vmatprep.subr.bf16.mxu0 0
    %97 = vmatpush1.bf16.msra.mxu0 0
    %98 = vmatprep.subr.bf16.mxu0 0
    %99 = vmatpush1.bf16.msra.mxu0 0
    %100 = vmatprep.mubr.bf16.mxu0 0
    %101 = vmatmul.mubr.bf16.gmra.mrb[0].mxu0 %v62
    %v102 = vpop.f32.mrb[0].mxu0
    %v103 = vadd.f32 %v58, %v102
    %v104 = vpop.f32.mrb[0].mxu0
    %v105 = vpop.f32.mrb[0].mxu0
    %v106 = vpop.f32.mrb[0].mxu0
    %107 = vdwg.mxu0
    %v108 = vmax.f32 %v103, 0.0
    %v109 = vpack.c.bf16 %v108, %v108
    %110 = vst [vmem:[#allocation8] sm:$0x1] %v109
    // Predicated region
    $region26: #{idae_forward.17} parent=1 // pred_check
      _
    $region27: #{idae_forward.17} parent=1 // pred_check_branch
      %112 = sbr.rel (0) target = $region29
    $region28: #{idae_forward.17} parent=1 // pred_region
      %s114 = ssub.s32 16, 16
      %115 = vsyncadd [#allocation4], %s114
      %s117 = sshll.u32 [#allocation8], 4
      %s118 = int_to_ptr.vmem [resolvable:$true] %s117
      %120 = dma.vmem_to_hbm [thread:$0]  %s118, 16, %s3, [#allocation4]
    $region29: #{idae_forward.17} parent=1 // pred_fallthru
      _
    // Predicated region
    $region30: #{idae_forward.17} parent=1 // pred_check
      _
    $region31: #{idae_forward.17} parent=1 // pred_check_branch
      %122 = sbr.rel (0) target = $region33
    $region32: #{idae_forward.17} parent=1 // pred_region
      %123 = dma.done [#allocation4], 16
    $region33: #{idae_forward.17} parent=1 // pred_fallthru
      _
    %124 = vsyncpa [#allocation3], 1
    %125 = vsyncpa [#allocation6], 1
    %126 = vsyncpa [#allocation4], 1

// kernel: idae_forward.16
$region0: #{idae_forward.16}
  #allocation0 [shape = 'u32[]', space=smem, size = 0x4, offset = 0x4, fixed_abs, tag = 'smem constant byte address 0x4 - core index']
  #allocation1 [shape = 'u32[144,128]{1,0:T(1,128)}', space=vmem, size = 0x12000, scoped, tag = 'internal scratch']
  %s0 = inlined_call_operand.hbm [shape: bf16[2,16], index: 0, kind: input, shape index: {}]
  %s1 = inlined_call_operand.hbm [shape: bf16[16,128], index: 1, kind: input, shape index: {}]
  %s2 = inlined_call_operand.hbm [shape: f32[1,128], index: 2, kind: input, shape index: {}]
  %s3 = inlined_call_operand.hbm [shape: f32[2,128], index: 3, kind: output, shape index: {}]
  %s4 = sld [smem:[#allocation0]]
  $region34: #{idae_forward.16} parent=0
    _
  %s6 = ssub.s32 1, %s4
  %s7 = scalar_select 0, %s6, %s4
  $region1: #{idae_forward.16} parent=0
    #allocation2 [shape = 'u8[512]{0}', space=vmem, size = 0x400, scoped, tag = 'input window, operand 0, single buffered']
    #allocation3 [shape = 's32[1]{0}', space=sflag, size = 0x4, scoped, tag = 'scoped memory for idae_forward.16']
    #allocation4 [shape = 's32[1]{0}', space=sflag, size = 0x4, scoped, tag = 'scoped memory for idae_forward.16']
    #allocation5 [shape = 'u8[4096]{0}', space=vmem, size = 0x1000, scoped, tag = 'input window, operand 1, single buffered']
    #allocation6 [shape = 's32[1]{0}', space=sflag, size = 0x4, scoped, tag = 'scoped memory for idae_forward.16']
    #allocation7 [shape = 'u8[512]{0}', space=vmem, size = 0x400, scoped, tag = 'input window, operand 2, single buffered']
    #allocation8 [shape = 'u8[1024]{0}', space=vmem, size = 0x400, scoped, tag = 'output window, operand 0, single buffered']
    %8 = vsyncpa [#allocation3], 0
    %9 = vsyncpa [#allocation6], 0
    %10 = vsyncpa [#allocation4], 0
    // Predicated region
    $region2: #{idae_forward.16} parent=1 // pred_check
      _
    $region3: #{idae_forward.16} parent=1 // pred_check_branch
      %12 = sbr.rel (0) target = $region5
    $region4: #{idae_forward.16} parent=1 // pred_region
      %s14 = ssub.s32 16, 16
      %15 = vsyncadd [#allocation3], %s14
      %s17 = sshll.u32 [#allocation2], 4
      %s18 = int_to_ptr.vmem [resolvable:$true] %s17
      %20 = dma.hbm_to_vmem [thread:$0]  %s0, 16, %s18, [#allocation3]
    $region5: #{idae_forward.16} parent=1 // pred_fallthru
      _
    // Predicated region
    $region6: #{idae_forward.16} parent=1 // pred_check
      _
    $region7: #{idae_forward.16} parent=1 // pred_check_branch
      %22 = sbr.rel (0) target = $region9
    $region8: #{idae_forward.16} parent=1 // pred_region
      %s24 = ssub.s32 128, 128
      %25 = vsyncadd [#allocation6], %s24
      %s26 = sshll.u32 [#allocation5], 4
      %s27 = int_to_ptr.vmem [resolvable:$true] %s26
      %32 = dma.hbm_to_vmem [thread:$0]  %s1, 128, %s27, [#allocation6], 64, 64, 4
    $region9: #{idae_forward.16} parent=1 // pred_fallthru
      _
    // Predicated region
    $region10: #{idae_forward.16} parent=1 // pred_check
      _
    $region11: #{idae_forward.16} parent=1 // pred_check_branch
      %34 = sbr.rel (0) target = $region13
    $region12: #{idae_forward.16} parent=1 // pred_region
      %s36 = ssub.s32 16, 16
      %37 = vsyncadd [#allocation6], %s36
      %s39 = sshll.u32 [#allocation7], 4
      %s40 = int_to_ptr.vmem [resolvable:$true] %s39
      %42 = dma.hbm_to_vmem [thread:$0]  %s2, 16, %s40, [#allocation6]
    $region13: #{idae_forward.16} parent=1 // pred_fallthru
      _
    // Predicated region
    $region14: #{idae_forward.16} parent=1 // pred_check
      _
    $region15: #{idae_forward.16} parent=1 // pred_check_branch
      %44 = sbr.rel (0) target = $region17
    $region16: #{idae_forward.16} parent=1 // pred_region
      %45 = dma.done [#allocation3], 16
    $region17: #{idae_forward.16} parent=1 // pred_fallthru
      _
    // Predicated region
    $region18: #{idae_forward.16} parent=1 // pred_check
      _
    $region19: #{idae_forward.16} parent=1 // pred_check_branch
      %47 = sbr.rel (0) target = $region21
    $region20: #{idae_forward.16} parent=1 // pred_region
      %48 = dma.done [#allocation6], 128
    $region21: #{idae_forward.16} parent=1 // pred_fallthru
      _
    // Predicated region
    $region22: #{idae_forward.16} parent=1 // pred_check
      _
    $region23: #{idae_forward.16} parent=1 // pred_check_branch
      %50 = sbr.rel (0) target = $region25
    $region24: #{idae_forward.16} parent=1 // pred_region
      %51 = dma.done [#allocation6], 16
    $region25: #{idae_forward.16} parent=1 // pred_fallthru
      _
    %v53 = vld [vmem:[#allocation2] sm:$0x1]
    %v54 = vld [vmem:[#allocation5] sm:$0xf]
    %v55 = vld [vmem:[#allocation5 + $0x4] sm:$0xf]
    %v56 = vld [vmem:[#allocation7] sm:$0x1]
    %v58 = vlaneseq
    %v59 = vshrl.u32 %v58, 7
    %v60 = vsub.s32 0, %v59
    %v61 = vrot.slane %v56, %v60
    %v65 = vunpack.c.l.b16 %v54
    %v66 = vunpack.c.l.b16 %v55
    %v67 = vpack.c.b16 %v66, %v65
    %vm69 = vcmask 130048
    %v71 = vsel %vm69, %v53, 0
    %73 = vmatprep.subr.bf16.mxu0 0
    %74 = vmatpush1.bf16.msra.mxu0 %v67
    %75 = vmatprep.subr.bf16.mxu0 0
    %76 = vmatpush1.bf16.msra.mxu0 0
    %77 = vmatprep.subr.bf16.mxu0 0
    %78 = vmatpush1.bf16.msra.mxu0 0
    %79 = vmatprep.subr.bf16.mxu0 0
    %80 = vmatpush1.bf16.msra.mxu0 0
    %81 = vmatprep.subr.bf16.mxu0 0
    %82 = vmatpush1.bf16.msra.mxu0 0
    %83 = vmatprep.subr.bf16.mxu0 0
    %84 = vmatpush1.bf16.msra.mxu0 0
    %85 = vmatprep.subr.bf16.mxu0 0
    %86 = vmatpush1.bf16.msra.mxu0 0
    %87 = vmatprep.subr.bf16.mxu0 0
    %88 = vmatpush1.bf16.msra.mxu0 0
    %89 = vmatprep.subr.bf16.mxu0 0
    %90 = vmatpush1.bf16.msra.mxu0 0
    %91 = vmatprep.subr.bf16.mxu0 0
    %92 = vmatpush1.bf16.msra.mxu0 0
    %93 = vmatprep.subr.bf16.mxu0 0
    %94 = vmatpush1.bf16.msra.mxu0 0
    %95 = vmatprep.subr.bf16.mxu0 0
    %96 = vmatpush1.bf16.msra.mxu0 0
    %97 = vmatprep.subr.bf16.mxu0 0
    %98 = vmatpush1.bf16.msra.mxu0 0
    %99 = vmatprep.subr.bf16.mxu0 0
    %100 = vmatpush1.bf16.msra.mxu0 0
    %101 = vmatprep.subr.bf16.mxu0 0
    %102 = vmatpush1.bf16.msra.mxu0 0
    %103 = vmatprep.subr.bf16.mxu0 0
    %104 = vmatpush1.bf16.msra.mxu0 0
    %105 = vmatprep.mubr.bf16.mxu0 0
    %106 = vmatmul.mubr.bf16.gmra.mrb[0].mxu0 %v71
    %v107 = vpop.f32.mrb[0].mxu0
    %v108 = vadd.f32 %v61, %v107
    %v109 = vpop.f32.mrb[0].mxu0
    %v110 = vpop.f32.mrb[0].mxu0
    %v111 = vpop.f32.mrb[0].mxu0
    %112 = vdwg.mxu0
    %113 = vst [vmem:[#allocation8] sm:$0x3] %v108
    // Predicated region
    $region26: #{idae_forward.16} parent=1 // pred_check
      _
    $region27: #{idae_forward.16} parent=1 // pred_check_branch
      %115 = sbr.rel (0) target = $region29
    $region28: #{idae_forward.16} parent=1 // pred_region
      %s117 = ssub.s32 32, 32
      %118 = vsyncadd [#allocation4], %s117
      %s120 = sshll.u32 [#allocation8], 4
      %s121 = int_to_ptr.vmem [resolvable:$true] %s120
      %123 = dma.vmem_to_hbm [thread:$0]  %s121, 32, %s3, [#allocation4]
    $region29: #{idae_forward.16} parent=1 // pred_fallthru
      _
    // Predicated region
    $region30: #{idae_forward.16} parent=1 // pred_check
      _
    $region31: #{idae_forward.16} parent=1 // pred_check_branch
      %125 = sbr.rel (0) target = $region33
    $region32: #{idae_forward.16} parent=1 // pred_region
      %126 = dma.done [#allocation4], 32
    $region33: #{idae_forward.16} parent=1 // pred_fallthru
      _
    %127 = vsyncpa [#allocation3], 1
    %128 = vsyncpa [#allocation6], 1
    %129 = vsyncpa [#allocation4], 1

// kernel: idae_forward.19
$region0: #{idae_forward.19}
  #allocation0 [shape = 'u32[]', space=smem, size = 0x4, offset = 0x4, fixed_abs, tag = 'smem constant byte address 0x4 - core index']
  #allocation1 [shape = 'u32[144,128]{1,0:T(1,128)}', space=vmem, size = 0x12000, scoped, tag = 'internal scratch']
  %s0 = inlined_call_operand.hbm [shape: bf16[8,32], index: 0, kind: input, shape index: {}]
  %s1 = inlined_call_operand.hbm [shape: bf16[32,128], index: 1, kind: input, shape index: {}]
  %s2 = inlined_call_operand.hbm [shape: f32[1,128], index: 2, kind: input, shape index: {}]
  %s3 = inlined_call_operand.hbm [shape: bf16[8,128], index: 3, kind: output, shape index: {}]
  %s4 = sld [smem:[#allocation0]]
  $region34: #{idae_forward.19} parent=0
    _
  %s6 = ssub.s32 1, %s4
  %s7 = scalar_select 0, %s6, %s4
  $region1: #{idae_forward.19} parent=0
    #allocation2 [shape = 'u8[2048]{0}', space=vmem, size = 0x800, scoped, tag = 'input window, operand 0, single buffered']
    #allocation3 [shape = 's32[1]{0}', space=sflag, size = 0x4, scoped, tag = 'scoped memory for idae_forward.19']
    #allocation4 [shape = 's32[1]{0}', space=sflag, size = 0x4, scoped, tag = 'scoped memory for idae_forward.19']
    #allocation5 [shape = 'u8[8192]{0}', space=vmem, size = 0x2000, scoped, tag = 'input window, operand 1, single buffered']
    #allocation6 [shape = 's32[1]{0}', space=sflag, size = 0x4, scoped, tag = 'scoped memory for idae_forward.19']
    #allocation7 [shape = 'u8[512]{0}', space=vmem, size = 0x400, scoped, tag = 'input window, operand 2, single buffered']
    #allocation8 [shape = 'u8[2048]{0}', space=vmem, size = 0x800, scoped, tag = 'output window, operand 0, single buffered']
    %8 = vsyncpa [#allocation3], 0
    %9 = vsyncpa [#allocation6], 0
    %10 = vsyncpa [#allocation4], 0
    // Predicated region
    $region2: #{idae_forward.19} parent=1 // pred_check
      _
    $region3: #{idae_forward.19} parent=1 // pred_check_branch
      %12 = sbr.rel (0) target = $region5
    $region4: #{idae_forward.19} parent=1 // pred_region
      %s14 = ssub.s32 64, 64
      %15 = vsyncadd [#allocation3], %s14
      %s17 = sshll.u32 [#allocation2], 4
      %s18 = int_to_ptr.vmem [resolvable:$true] %s17
      %20 = dma.hbm_to_vmem [thread:$0]  %s0, 64, %s18, [#allocation3]
    $region5: #{idae_forward.19} parent=1 // pred_fallthru
      _
    // Predicated region
    $region6: #{idae_forward.19} parent=1 // pred_check
      _
    $region7: #{idae_forward.19} parent=1 // pred_check_branch
      %22 = sbr.rel (0) target = $region9
    $region8: #{idae_forward.19} parent=1 // pred_region
      %s24 = ssub.s32 256, 256
      %25 = vsyncadd [#allocation6], %s24
      %s26 = sshll.u32 [#allocation5], 4
      %s27 = int_to_ptr.vmem [resolvable:$true] %s26
      %32 = dma.hbm_to_vmem [thread:$0]  %s1, 256, %s27, [#allocation6], 64, 64, 4
    $region9: #{idae_forward.19} parent=1 // pred_fallthru
      _
    // Predicated region
    $region10: #{idae_forward.19} parent=1 // pred_check
      _
    $region11: #{idae_forward.19} parent=1 // pred_check_branch
      %34 = sbr.rel (0) target = $region13
    $region12: #{idae_forward.19} parent=1 // pred_region
      %s36 = ssub.s32 16, 16
      %37 = vsyncadd [#allocation6], %s36
      %s39 = sshll.u32 [#allocation7], 4
      %s40 = int_to_ptr.vmem [resolvable:$true] %s39
      %42 = dma.hbm_to_vmem [thread:$0]  %s2, 16, %s40, [#allocation6]
    $region13: #{idae_forward.19} parent=1 // pred_fallthru
      _
    // Predicated region
    $region14: #{idae_forward.19} parent=1 // pred_check
      _
    $region15: #{idae_forward.19} parent=1 // pred_check_branch
      %44 = sbr.rel (0) target = $region17
    $region16: #{idae_forward.19} parent=1 // pred_region
      %45 = dma.done [#allocation3], 64
    $region17: #{idae_forward.19} parent=1 // pred_fallthru
      _
    // Predicated region
    $region18: #{idae_forward.19} parent=1 // pred_check
      _
    $region19: #{idae_forward.19} parent=1 // pred_check_branch
      %47 = sbr.rel (0) target = $region21
    $region20: #{idae_forward.19} parent=1 // pred_region
      %48 = dma.done [#allocation6], 256
    $region21: #{idae_forward.19} parent=1 // pred_fallthru
      _
    // Predicated region
    $region22: #{idae_forward.19} parent=1 // pred_check
      _
    $region23: #{idae_forward.19} parent=1 // pred_check_branch
      %50 = sbr.rel (0) target = $region25
    $region24: #{idae_forward.19} parent=1 // pred_region
      %51 = dma.done [#allocation6], 16
    $region25: #{idae_forward.19} parent=1 // pred_fallthru
      _
    %v53 = vld [vmem:[#allocation2] sm:$0xf]
    %v54 = vld [vmem:[#allocation5] sm:$0xf]
    %v55 = vld [vmem:[#allocation5 + $0x4] sm:$0xf]
    %v56 = vld [vmem:[#allocation5 + $0x8] sm:$0xf]
    %v57 = vld [vmem:[#allocation5 + $0xc] sm:$0xf]
    %v58 = vld [vmem:[#allocation7] sm:$0x1]
    %v60 = vlaneseq
    %v61 = vshrl.u32 %v60, 7
    %v62 = vsub.s32 0, %v61
    %v63 = vrot.slane %v58, %v62
    %v69 = vunpack.c.l.b16 %v54
    %v70 = vunpack.c.l.b16 %v55
    %v71 = vunpack.c.l.b16 %v56
    %v72 = vunpack.c.l.b16 %v57
    %v73 = vpack.c.b16 %v70, %v69
    %v74 = vpack.c.b16 %v72, %v71
    %vm77 = vcmask 261120
    %v79 = vsel %vm77, %v53, 0
    %81 = vmatprep.subr.bf16.mxu0 0
    %82 = vmatpush1.bf16.msra.mxu0 %v73
    %83 = vmatprep.subr.bf16.mxu0 0
    %84 = vmatpush1.bf16.msra.mxu0 %v74
    %85 = vmatprep.subr.bf16.mxu0 0
    %86 = vmatpush1.bf16.msra.mxu0 0
    %87 = vmatprep.subr.bf16.mxu0 0
    %88 = vmatpush1.bf16.msra.mxu0 0
    %89 = vmatprep.subr.bf16.mxu0 0
    %90 = vmatpush1.bf16.msra.mxu0 0
    %91 = vmatprep.subr.bf16.mxu0 0
    %92 = vmatpush1.bf16.msra.mxu0 0
    %93 = vmatprep.subr.bf16.mxu0 0
    %94 = vmatpush1.bf16.msra.mxu0 0
    %95 = vmatprep.subr.bf16.mxu0 0
    %96 = vmatpush1.bf16.msra.mxu0 0
    %97 = vmatprep.subr.bf16.mxu0 0
    %98 = vmatpush1.bf16.msra.mxu0 0
    %99 = vmatprep.subr.bf16.mxu0 0
    %100 = vmatpush1.bf16.msra.mxu0 0
    %101 = vmatprep.subr.bf16.mxu0 0
    %102 = vmatpush1.bf16.msra.mxu0 0
    %103 = vmatprep.subr.bf16.mxu0 0
    %104 = vmatpush1.bf16.msra.mxu0 0
    %105 = vmatprep.subr.bf16.mxu0 0
    %106 = vmatpush1.bf16.msra.mxu0 0
    %107 = vmatprep.subr.bf16.mxu0 0
    %108 = vmatpush1.bf16.msra.mxu0 0
    %109 = vmatprep.subr.bf16.mxu0 0
    %110 = vmatpush1.bf16.msra.mxu0 0
    %111 = vmatprep.subr.bf16.mxu0 0
    %112 = vmatpush1.bf16.msra.mxu0 0
    %113 = vmatprep.mubr.bf16.mxu0 0
    %114 = vmatmul.mubr.bf16.gmra.mrb[0].mxu0 %v79
    %v115 = vpop.f32.mrb[0].mxu0
    %v116 = vadd.f32 %v63, %v115
    %v117 = vpop.f32.mrb[0].mxu0
    %v118 = vpop.f32.mrb[0].mxu0
    %v119 = vpop.f32.mrb[0].mxu0
    %120 = vdwg.mxu0
    %v121 = vmax.f32 %v116, 0.0
    %v122 = vpack.c.bf16 %v121, %v121
    %123 = vst [vmem:[#allocation8] sm:$0xf] %v122
    // Predicated region
    $region26: #{idae_forward.19} parent=1 // pred_check
      _
    $region27: #{idae_forward.19} parent=1 // pred_check_branch
      %125 = sbr.rel (0) target = $region29
    $region28: #{idae_forward.19} parent=1 // pred_region
      %s127 = ssub.s32 64, 64
      %128 = vsyncadd [#allocation4], %s127
      %s130 = sshll.u32 [#allocation8], 4
      %s131 = int_to_ptr.vmem [resolvable:$true] %s130
      %133 = dma.vmem_to_hbm [thread:$0]  %s131, 64, %s3, [#allocation4]
    $region29: #{idae_forward.19} parent=1 // pred_fallthru
      _
    // Predicated region
    $region30: #{idae_forward.19} parent=1 // pred_check
      _
    $region31: #{idae_forward.19} parent=1 // pred_check_branch
      %135 = sbr.rel (0) target = $region33
    $region32: #{idae_forward.19} parent=1 // pred_region
      %136 = dma.done [#allocation4], 64
    $region33: #{idae_forward.19} parent=1 // pred_fallthru
      _
    %137 = vsyncpa [#allocation3], 1
    %138 = vsyncpa [#allocation6], 1
    %139 = vsyncpa [#allocation4], 1

// kernel: idae_forward.20
$region0: #{idae_forward.20}
  #allocation0 [shape = 'u32[]', space=smem, size = 0x4, offset = 0x4, fixed_abs, tag = 'smem constant byte address 0x4 - core index']
  #allocation1 [shape = 'u32[144,128]{1,0:T(1,128)}', space=vmem, size = 0x12000, scoped, tag = 'internal scratch']
  %s0 = inlined_call_operand.hbm [shape: bf16[32,16], index: 0, kind: input, shape index: {}]
  %s1 = inlined_call_operand.hbm [shape: bf16[16,128], index: 1, kind: input, shape index: {}]
  %s2 = inlined_call_operand.hbm [shape: f32[1,128], index: 2, kind: input, shape index: {}]
  %s3 = inlined_call_operand.hbm [shape: bf16[32,128], index: 3, kind: output, shape index: {}]
  %s4 = sld [smem:[#allocation0]]
  $region57: #{idae_forward.20} parent=0
    _
  %s6 = ssub.s32 1, %s4
  %s7 = scalar_select 0, %s6, %s4
  $region1: #{idae_forward.20} parent=0
    #allocation2 [shape = 'u8[8192]{0}', space=vmem, size = 0x2000, scoped, tag = 'input window, operand 0']
    #allocation3 [shape = 's32[2]{0}', space=sflag, size = 0x8, scoped, tag = 'scoped memory for idae_forward.20']
    #allocation4 [shape = 's32[2]{0}', space=sflag, size = 0x8, scoped, tag = 'scoped memory for idae_forward.20']
    #allocation5 [shape = 'u8[4096]{0}', space=vmem, size = 0x1000, scoped, tag = 'input window, operand 1, single buffered']
    #allocation6 [shape = 's32[1]{0}', space=sflag, size = 0x4, scoped, tag = 'scoped memory for idae_forward.20']
    #allocation7 [shape = 'u8[512]{0}', space=vmem, size = 0x400, scoped, tag = 'input window, operand 2, single buffered']
    #allocation8 [shape = 'u8[8192]{0}', space=vmem, size = 0x2000, scoped, tag = 'output window, operand 0']
    %8 = vsyncpa [#allocation3], 0
    %s9 = scalar_lea.sflag [#allocation3], 1
    %10 = vsyncpa %s9, 0
    %11 = vsyncpa [#allocation6], 0
    %12 = vsyncpa [#allocation4], 0
    %s13 = scalar_lea.sflag [#allocation4], 1
    %14 = vsyncpa %s13, 0
    loop: start=0, step=1, limit=4
    $region2: #{idae_forward.20} parent=1 // loop_pre_header
      _
    $region3: #{idae_forward.20} parent=1 // loop_header
      %s16 = sphi 0, %s20
      %p17 = scmp.ge.s32.totalorder %s16, 4
      %s23 = sphi 0, %s35
      %s24 = sphi 0, %s31
      %s25 = sphi 0, %s23
      %s26 = sphi 0, %s24
      %s27 = sphi 0, %s25
      %s28 = sphi 0, %s26
      %s38 = sphi 0, %s40
      %s41 = sphi 0, %s38
      %s42 = sphi 0, %s41
      %s58 = sphi 0, %s42
      %s64 = sphi 0, %s66
      %s67 = sphi 0, %s64
      %s68 = sphi 0, %s67
      %s84 = sphi 0, %s68
      %s90 = sphi 0, %s92
      %s93 = sphi 0, %s90
      %s94 = sphi 0, %s93
      %s110 = sphi 0, %s94
      %s118 = sphi 0, %s120
      %s121 = sphi 0, %s118
      %s122 = sphi 0, %s121
      %s138 = sphi 0, %s122
    $region4: #{idae_forward.20} parent=1 // loop_header_branch
      %19 = sbr.rel (%p17) target = $region8
    $region5: #{idae_forward.20} parent=1 // loop_body
      %s21 = ssub.s32 %s16, 1
      %s22 = ssub.s32 %s16, 2
      %s29 = sadd.s32 1, %s24
      %p30 = scmp.ge.s32.totalorder %s29, 1
      %s31 = scalar_select %p30, 0, %s29
      %s32 = sadd.s32 1, %s23
      %s33 = scalar_select %p30, %s32, %s23
      %p34 = scmp.ge.s32.totalorder %s33, 2
      %s35 = scalar_select %p34, 0, %s33
      %s36 = ssub.s32 %s23, %s35
      %p37 = scmp.eq.s32.totalorder %s36, 0
      %s39 = sadd.s32 %s38, 1
      %s40 = scalar_select %p37, %s38, %s39
      %p43 = pneg %p37
      %p44 = scmp.eq.s32.totalorder %s16, 1
      %p45 = por %p43, %p44
      %p46 = scmp.ne.s32.totalorder %s38, %s41
      %p47 = scmp.eq.s32.totalorder %s16, 0
      %p48 = por %p46, %p47
      %p49 = scmp.ne.s32.totalorder %s38, %s41
      %p50 = scmp.eq.s32.totalorder %s21, 1
      %p51 = por %p49, %p50
      %p52 = scmp.ne.s32.totalorder %s41, %s42
      %p53 = scmp.eq.s32.totalorder %s21, 0
      %p54 = por %p52, %p53
      %p55 = scmp.ne.s32.totalorder %s41, %s42
      %p56 = scmp.eq.s32.totalorder %s22, 1
      %p57 = por %p55, %p56
      %p59 = scmp.ne.s32.totalorder %s42, %s58
      %p60 = scmp.eq.s32.totalorder %s22, 0
      %p61 = por %p59, %p60
      %s62 = ssub.s32 %s24, %s31
      %p63 = scmp.eq.s32.totalorder %s62, 0
      %s65 = sadd.s32 %s64, 1
      %s66 = scalar_select %p63, %s64, %s65
      %p69 = pneg %p63
      %p70 = scmp.eq.s32.totalorder %s16, 1
      %p71 = por %p69, %p70
      %p72 = scmp.ne.s32.totalorder %s64, %s67
      %p73 = scmp.eq.s32.totalorder %s16, 0
      %p74 = por %p72, %p73
      %p75 = scmp.ne.s32.totalorder %s64, %s67
      %p76 = scmp.eq.s32.totalorder %s21, 1
      %p77 = por %p75, %p76
      %p78 = scmp.ne.s32.totalorder %s67, %s68
      %p79 = scmp.eq.s32.totalorder %s21, 0
      %p80 = por %p78, %p79
      %p81 = scmp.ne.s32.totalorder %s67, %s68
      %p82 = scmp.eq.s32.totalorder %s22, 1
      %p83 = por %p81, %p82
      %p85 = scmp.ne.s32.totalorder %s68, %s84
      %p86 = scmp.eq.s32.totalorder %s22, 0
      %p87 = por %p85, %p86
      %s88 = ssub.s32 %s24, %s31
      %p89 = scmp.eq.s32.totalorder %s88, 0
      %s91 = sadd.s32 %s90, 1
      %s92 = scalar_select %p89, %s90, %s91
      %p95 = pneg %p89
      %p96 = scmp.eq.s32.totalorder %s16, 1
      %p97 = por %p95, %p96
      %p98 = scmp.ne.s32.totalorder %s90, %s93
      %p99 = scmp.eq.s32.totalorder %s16, 0
      %p100 = por %p98, %p99
      %p101 = scmp.ne.s32.totalorder %s90, %s93
      %p102 = scmp.eq.s32.totalorder %s21, 1
      %p103 = por %p101, %p102
      %p104 = scmp.ne.s32.totalorder %s93, %s94
      %p105 = scmp.eq.s32.totalorder %s21, 0
      %p106 = por %p104, %p105
      %p107 = scmp.ne.s32.totalorder %s93, %s94
      %p108 = scmp.eq.s32.totalorder %s22, 1
      %p109 = por %p107, %p108
      %p111 = scmp.ne.s32.totalorder %s94, %s110
      %p112 = scmp.eq.s32.totalorder %s22, 0
      %p113 = por %p111, %p112
      %s114 = ssub.s32 %s23, %s35
      %s115 = ssub.s32 %s24, %s31
      %s116 = sor.u32 %s114, %s115
      %p117 = scmp.eq.s32.totalorder %s116, 0
      %s119 = sadd.s32 %s118, 1
      %s120 = scalar_select %p117, %s118, %s119
      %p123 = pneg %p117
      %p124 = scmp.eq.s32.totalorder %s16, 1
      %p125 = por %p123, %p124
      %p126 = scmp.ne.s32.totalorder %s118, %s121
      %p127 = scmp.eq.s32.totalorder %s16, 0
      %p128 = por %p126, %p127
      %p129 = scmp.ne.s32.totalorder %s118, %s121
      %p130 = scmp.eq.s32.totalorder %s21, 1
      %p131 = por %p129, %p130
      %p132 = scmp.ne.s32.totalorder %s121, %s122
      %p133 = scmp.eq.s32.totalorder %s21, 0
      %p134 = por %p132, %p133
      %p135 = scmp.ne.s32.totalorder %s121, %s122
      %p136 = scmp.eq.s32.totalorder %s22, 1
      %p137 = por %p135, %p136
      %p139 = scmp.ne.s32.totalorder %s122, %s138
      %p140 = scmp.eq.s32.totalorder %s22, 0
      %p141 = por %p139, %p140
      %p142 = scmp.le.s32.totalorder 1, %s16
      %p143 = scmp.lt.s32.totalorder %s16, 3
      %p144 = pnand %p142, %p143
      %p145 = pneg %p144
      // Predicated region
      $region9: #{idae_forward.20} parent=5 // pred_check
        _
      $region10: #{idae_forward.20} parent=5 // pred_check_branch
        %147 = sbr.rel (%p144) target = $region12
      $region11: #{idae_forward.20} parent=5 // pred_region
        %s148 = ssub.s32 %s16, 1
        // Predicated region
        $region13: #{idae_forward.20} parent=11 // pred_check
          %p149 = pneg %p80
        $region14: #{idae_forward.20} parent=11 // pred_check_branch
          %151 = sbr.rel (%p149) target = $region16
        $region15: #{idae_forward.20} parent=11 // pred_region
          %s153 = ssub.s32 128, 128
          %154 = vsyncadd [#allocation6], %s153
          %s155 = smul.addr %s26, 64
          %s156 = scalar_lea.hbm %s1, %s155
          %s157 = sshll.u32 [#allocation5], 4
          %s158 = int_to_ptr.vmem [resolvable:$true] %s157
          %163 = dma.hbm_to_vmem [thread:$0]  %s156, 128, %s158, [#allocation6], 64, 64, 4
        $region16: #{idae_forward.20} parent=11 // pred_fallthru
          _
        // Predicated region
        $region17: #{idae_forward.20} parent=11 // pred_check
          %p164 = pneg %p106
        $region18: #{idae_forward.20} parent=11 // pred_check_branch
          %166 = sbr.rel (%p164) target = $region20
        $region19: #{idae_forward.20} parent=11 // pred_region
          %s168 = ssub.s32 16, 16
          %169 = vsyncadd [#allocation6], %s168
          %s170 = smul.addr %s26, 16
          %s171 = scalar_lea.hbm %s2, %s170
          %s173 = sshll.u32 [#allocation7], 4
          %s174 = int_to_ptr.vmem [resolvable:$true] %s173
          %176 = dma.hbm_to_vmem [thread:$0]  %s171, 16, %s174, [#allocation6]
        $region20: #{idae_forward.20} parent=11 // pred_fallthru
          _
      $region12: #{idae_forward.20} parent=5 // pred_fallthru
        _
      %p177 = scmp.lt.s32.totalorder %s16, 2
      // Predicated region
      $region21: #{idae_forward.20} parent=5 // pred_check
        %p178 = pneg %p177
      $region22: #{idae_forward.20} parent=5 // pred_check_branch
        %180 = sbr.rel (%p178) target = $region24
      $region23: #{idae_forward.20} parent=5 // pred_region
        // Predicated region
        $region25: #{idae_forward.20} parent=23 // pred_check
          %p181 = pneg %p48
        $region26: #{idae_forward.20} parent=23 // pred_check_branch
          %183 = sbr.rel (%p181) target = $region28
        $region27: #{idae_forward.20} parent=23 // pred_region
          %s184 = sand.u32 %s38, 1
          %s185 = scalar_lea.sflag [#allocation3], %s184
          %s186 = sand.u32 %s38, 1
          %s187 = smul.addr %s186, 8
          %s188 = scalar_lea.vmem [#allocation2], %s187
          %s189 = smul.u32 2, %s23
          %s191 = ssub.s32 128, 128
          %192 = vsyncadd %s185, %s191
          %s193 = smul.addr %s189, 64
          %s194 = scalar_lea.hbm %s0, %s193
          %s195 = sshll.u32 %s188, 4
          %s196 = int_to_ptr.vmem [resolvable:$true] %s195
          %201 = dma.hbm_to_vmem [thread:$0]  %s194, 128, %s196, %s185, 64, 64, 4
        $region28: #{idae_forward.20} parent=23 // pred_fallthru
          _
      $region24: #{idae_forward.20} parent=5 // pred_fallthru
        _
      %p202 = scmp.le.s32.totalorder 1, %s16
      %p203 = scmp.lt.s32.totalorder %s16, 3
      %p204 = pnand %p202, %p203
      %p205 = pneg %p204
      // Predicated region
      $region29: #{idae_forward.20} parent=5 // pred_check
        _
      $region30: #{idae_forward.20} parent=5 // pred_check_branch
        %207 = sbr.rel (%p204) target = $region32
      $region31: #{idae_forward.20} parent=5 // pred_region
        %s208 = ssub.s32 %s16, 1
        %s209 = sand.u32 %s41, 1
        %s210 = scalar_lea.sflag [#allocation3], %s209
        %s211 = sand.u32 %s41, 1
        %s212 = smul.addr %s211, 8
        %s213 = scalar_lea.vmem [#allocation2], %s212
        // Predicated region
        $region33: #{idae_forward.20} parent=31 // pred_check
          %p214 = pneg %p54
        $region34: #{idae_forward.20} parent=31 // pred_check_branch
          %216 = sbr.rel (%p214) target = $region36
        $region35: #{idae_forward.20} parent=31 // pred_region
          %217 = dma.done %s210, 128
        $region36: #{idae_forward.20} parent=31 // pred_fallthru
          _
        // Predicated region
        $region37: #{idae_forward.20} parent=31 // pred_check
          %p218 = pneg %p80
        $region38: #{idae_forward.20} parent=31 // pred_check_branch
          %220 = sbr.rel (%p218) target = $region40
        $region39: #{idae_forward.20} parent=31 // pred_region
          %221 = dma.done [#allocation6], 128
        $region40: #{idae_forward.20} parent=31 // pred_fallthru
          _
        // Predicated region
        $region41: #{idae_forward.20} parent=31 // pred_check
          %p222 = pneg %p106
        $region42: #{idae_forward.20} parent=31 // pred_check_branch
          %224 = sbr.rel (%p222) target = $region44
        $region43: #{idae_forward.20} parent=31 // pred_region
          %225 = dma.done [#allocation6], 16
        $region44: #{idae_forward.20} parent=31 // pred_fallthru
          _
        %s226 = sand.u32 %s41, 1
        %s227 = scalar_lea.sflag [#allocation3], %s226
        %s228 = sand.u32 %s41, 1
        %s229 = smul.addr %s228, 8
        %s230 = scalar_lea.vmem [#allocation2], %s229
        %p231 = pneg %p54
        %p232 = pneg %p51
        %p233 = pneg %p80
        %p234 = pneg %p77
        %p235 = pneg %p106
        %p236 = pneg %p103
        %p237 = pneg %p134
        %p238 = pneg %p131
        %s239 = sand.u32 %s121, 1
        %s240 = scalar_lea.sflag [#allocation4], %s239
        %s241 = sand.u32 %s121, 1
        %s242 = smul.addr %s241, 8
        %s243 = scalar_lea.vmem [#allocation8], %s242
        %s244 = smul.u32 2, %s25
        %s245 = smul.u32 2, %s25
        %v247 = vld [vmem:[%s213] sm:$0xf]
        %v248 = vld [vmem:[%s213 + $0x4] sm:$0xf]
        %v249 = vld [vmem:[#allocation5] sm:$0xf]
        %v250 = vld [vmem:[#allocation5 + $0x4] sm:$0xf]
        %v251 = vld [vmem:[#allocation7] sm:$0x1]
        %v253 = vlaneseq
        %v254 = vshrl.u32 %v253, 7
        %v255 = vsub.s32 0, %v254
        %v256 = vrot.slane %v251, %v255
        %v260 = vunpack.c.l.b16 %v247
        %v261 = vunpack.c.l.b16 %v248
        %v262 = vpack.c.b16 %v261, %v260
        %v265 = vunpack.c.l.b16 %v249
        %v266 = vunpack.c.l.b16 %v250
        %v267 = vpack.c.b16 %v266, %v265
        %vm269 = vcmask 130048
        %v271 = vsel %vm269, %v262, 0
        %273 = vmatprep.subr.bf16.mxu0 0
        %274 = vmatpush1.bf16.msra.mxu0 %v267
        %275 = vmatprep.subr.bf16.mxu0 0
        %276 = vmatpush1.bf16.msra.mxu0 0
        %277 = vmatprep.subr.bf16.mxu0 0
        %278 = vmatpush1.bf16.msra.mxu0 0
        %279 = vmatprep.subr.bf16.mxu0 0
        %280 = vmatpush1.bf16.msra.mxu0 0
        %281 = vmatprep.subr.bf16.mxu0 0
        %282 = vmatpush1.bf16.msra.mxu0 0
        %283 = vmatprep.subr.bf16.mxu0 0
        %284 = vmatpush1.bf16.msra.mxu0 0
        %285 = vmatprep.subr.bf16.mxu0 0
        %286 = vmatpush1.bf16.msra.mxu0 0
        %287 = vmatprep.subr.bf16.mxu0 0
        %288 = vmatpush1.bf16.msra.mxu0 0
        %289 = vmatprep.subr.bf16.mxu0 0
        %290 = vmatpush1.bf16.msra.mxu0 0
        %291 = vmatprep.subr.bf16.mxu0 0
        %292 = vmatpush1.bf16.msra.mxu0 0
        %293 = vmatprep.subr.bf16.mxu0 0
        %294 = vmatpush1.bf16.msra.mxu0 0
        %295 = vmatprep.subr.bf16.mxu0 0
        %296 = vmatpush1.bf16.msra.mxu0 0
        %297 = vmatprep.subr.bf16.mxu0 0
        %298 = vmatpush1.bf16.msra.mxu0 0
        %299 = vmatprep.subr.bf16.mxu0 0
        %300 = vmatpush1.bf16.msra.mxu0 0
        %301 = vmatprep.subr.bf16.mxu0 0
        %302 = vmatpush1.bf16.msra.mxu0 0
        %303 = vmatprep.subr.bf16.mxu0 0
        %304 = vmatpush1.bf16.msra.mxu0 0
        %305 = vmatprep.mubr.bf16.mxu0 0
        %306 = vmatmul.mubr.bf16.gmra.mrb[0].mxu0 %v271
        %v307 = vpop.f32.mrb[0].mxu0
        %v308 = vadd.f32 %v256, %v307
        %v309 = vpop.f32.mrb[0].mxu0
        %v310 = vpop.f32.mrb[0].mxu0
        %v311 = vadd.f32 %v256, %v310
        %v312 = vpop.f32.mrb[0].mxu0
        %313 = vdwg.mxu0
        %v314 = vmax.f32 %v308, 0.0
        %v315 = vmax.f32 %v311, 0.0
        %v316 = vpack.c.bf16 %v315, %v314
        %v318 = vunpack.c.l.b16 %v316
        %v319 = vunpack.c.h.b16 %v316
        %v320 = vpack.c.b16 %v318, %v318
        %v321 = vpack.c.b16 %v319, %v319
        %324 = vst [vmem:[%s243] sm:$0xf] %v320
        %325 = vst [vmem:[%s243 + $0x4] sm:$0xf] %v321
        %s326 = sand.u32 %s121, 1
        %s327 = scalar_lea.sflag [#allocation4], %s326
        %s328 = sand.u32 %s121, 1
        %s329 = smul.addr %s328, 8
        %s330 = scalar_lea.vmem [#allocation8], %s329
        // Predicated region
        $region45: #{idae_forward.20} parent=31 // pred_check
          %p331 = pneg %p131
        $region46: #{idae_forward.20} parent=31 // pred_check_branch
          %333 = sbr.rel (%p331) target = $region48
        $region47: #{idae_forward.20} parent=31 // pred_region
          %s334 = smul.u32 2, %s25
          %s336 = ssub.s32 128, 128
          %337 = vsyncadd %s327, %s336
          %s338 = sadd.s32 %s26, %s334
          %s339 = smul.addr %s338, 64
          %s340 = scalar_lea.hbm %s3, %s339
          %s341 = sshll.u32 %s330, 4
          %s342 = int_to_ptr.vmem [resolvable:$true] %s341
          %347 = dma.vmem_to_hbm [thread:$0]  %s342, 128, %s340, %s327, 64, 64, 4
        $region48: #{idae_forward.20} parent=31 // pred_fallthru
          _
      $region32: #{idae_forward.20} parent=5 // pred_fallthru
        _
      %p348 = scmp.le.s32.totalorder 2, %s16
      // Predicated region
      $region49: #{idae_forward.20} parent=5 // pred_check
        %p349 = pneg %p348
      $region50: #{idae_forward.20} parent=5 // pred_check_branch
        %351 = sbr.rel (%p349) target = $region52
      $region51: #{idae_forward.20} parent=5 // pred_region
        %s352 = ssub.s32 %s16, 2
        // Predicated region
        $region53: #{idae_forward.20} parent=51 // pred_check
          %p353 = pneg %p137
        $region54: #{idae_forward.20} parent=51 // pred_check_branch
          %355 = sbr.rel (%p353) target = $region56
        $region55: #{idae_forward.20} parent=51 // pred_region
          %s356 = sand.u32 %s122, 1
          %s357 = scalar_lea.sflag [#allocation4], %s356
          %s358 = sand.u32 %s122, 1
          %s359 = smul.addr %s358, 8
          %s360 = scalar_lea.vmem [#allocation8], %s359
          %361 = dma.done %s357, 128
        $region56: #{idae_forward.20} parent=51 // pred_fallthru
          _
      $region52: #{idae_forward.20} parent=5 // pred_fallthru
        _
    $region6: #{idae_forward.20} parent=1 // loop_footer
      %s20 = sadd.s32 1, %s16
    $region7: #{idae_forward.20} parent=1 // loop_footer_branch
      %15 = sbr.rel target = $region3
    $region8: #{idae_forward.20} parent=1 // loop_exit
      _
    %362 = vsyncpa [#allocation3], 1
    %s363 = scalar_lea.sflag [#allocation3], 1
    %364 = vsyncpa %s363, 1
    %365 = vsyncpa [#allocation6], 1
    %366 = vsyncpa [#allocation4], 1
    %s367 = scalar_lea.sflag [#allocation4], 1
    %368 = vsyncpa %s367, 1

// kernel: idae_forward.21
$region0: #{idae_forward.21}
  #allocation0 [shape = 'u32[]', space=smem, size = 0x4, offset = 0x4, fixed_abs, tag = 'smem constant byte address 0x4 - core index']
  #allocation1 [shape = 'u32[144,128]{1,0:T(1,128)}', space=vmem, size = 0x12000, scoped, tag = 'internal scratch']
  %s0 = inlined_call_operand.hbm [shape: bf16[128,8], index: 0, kind: input, shape index: {}]
  %s1 = inlined_call_operand.hbm [shape: bf16[8,128], index: 1, kind: input, shape index: {}]
  %s2 = inlined_call_operand.hbm [shape: f32[1,128], index: 2, kind: input, shape index: {}]
  %s3 = inlined_call_operand.hbm [shape: f32[128,128], index: 3, kind: output, shape index: {}]
  %s4 = sld [smem:[#allocation0]]
  $region57: #{idae_forward.21} parent=0
    _
  %s6 = ssub.s32 1, %s4
  %s7 = scalar_select 0, %s6, %s4
  $region1: #{idae_forward.21} parent=0
    #allocation2 [shape = 'u8[32768]{0}', space=vmem, size = 0x8000, scoped, tag = 'input window, operand 0']
    #allocation3 [shape = 's32[2]{0}', space=sflag, size = 0x8, scoped, tag = 'scoped memory for idae_forward.21']
    #allocation4 [shape = 's32[2]{0}', space=sflag, size = 0x8, scoped, tag = 'scoped memory for idae_forward.21']
    #allocation5 [shape = 'u8[2048]{0}', space=vmem, size = 0x800, scoped, tag = 'input window, operand 1, single buffered']
    #allocation6 [shape = 's32[1]{0}', space=sflag, size = 0x4, scoped, tag = 'scoped memory for idae_forward.21']
    #allocation7 [shape = 'u8[512]{0}', space=vmem, size = 0x400, scoped, tag = 'input window, operand 2, single buffered']
    #allocation8 [shape = 'u8[65536]{0}', space=vmem, size = 0x10000, scoped, tag = 'output window, operand 0']
    %8 = vsyncpa [#allocation3], 0
    %s9 = scalar_lea.sflag [#allocation3], 1
    %10 = vsyncpa %s9, 0
    %11 = vsyncpa [#allocation6], 0
    %12 = vsyncpa [#allocation4], 0
    %s13 = scalar_lea.sflag [#allocation4], 1
    %14 = vsyncpa %s13, 0
    loop: start=0, step=1, limit=4
    $region2: #{idae_forward.21} parent=1 // loop_pre_header
      _
    $region3: #{idae_forward.21} parent=1 // loop_header
      %s16 = sphi 0, %s20
      %p17 = scmp.ge.s32.totalorder %s16, 4
      %s23 = sphi 0, %s35
      %s24 = sphi 0, %s31
      %s25 = sphi 0, %s23
      %s26 = sphi 0, %s24
      %s27 = sphi 0, %s25
      %s28 = sphi 0, %s26
      %s38 = sphi 0, %s40
      %s41 = sphi 0, %s38
      %s42 = sphi 0, %s41
      %s58 = sphi 0, %s42
      %s64 = sphi 0, %s66
      %s67 = sphi 0, %s64
      %s68 = sphi 0, %s67
      %s84 = sphi 0, %s68
      %s90 = sphi 0, %s92
      %s93 = sphi 0, %s90
      %s94 = sphi 0, %s93
      %s110 = sphi 0, %s94
      %s118 = sphi 0, %s120
      %s121 = sphi 0, %s118
      %s122 = sphi 0, %s121
      %s138 = sphi 0, %s122
    $region4: #{idae_forward.21} parent=1 // loop_header_branch
      %19 = sbr.rel (%p17) target = $region8
    $region5: #{idae_forward.21} parent=1 // loop_body
      %s21 = ssub.s32 %s16, 1
      %s22 = ssub.s32 %s16, 2
      %s29 = sadd.s32 1, %s24
      %p30 = scmp.ge.s32.totalorder %s29, 1
      %s31 = scalar_select %p30, 0, %s29
      %s32 = sadd.s32 1, %s23
      %s33 = scalar_select %p30, %s32, %s23
      %p34 = scmp.ge.s32.totalorder %s33, 2
      %s35 = scalar_select %p34, 0, %s33
      %s36 = ssub.s32 %s23, %s35
      %p37 = scmp.eq.s32.totalorder %s36, 0
      %s39 = sadd.s32 %s38, 1
      %s40 = scalar_select %p37, %s38, %s39
      %p43 = pneg %p37
      %p44 = scmp.eq.s32.totalorder %s16, 1
      %p45 = por %p43, %p44
      %p46 = scmp.ne.s32.totalorder %s38, %s41
      %p47 = scmp.eq.s32.totalorder %s16, 0
      %p48 = por %p46, %p47
      %p49 = scmp.ne.s32.totalorder %s38, %s41
      %p50 = scmp.eq.s32.totalorder %s21, 1
      %p51 = por %p49, %p50
      %p52 = scmp.ne.s32.totalorder %s41, %s42
      %p53 = scmp.eq.s32.totalorder %s21, 0
      %p54 = por %p52, %p53
      %p55 = scmp.ne.s32.totalorder %s41, %s42
      %p56 = scmp.eq.s32.totalorder %s22, 1
      %p57 = por %p55, %p56
      %p59 = scmp.ne.s32.totalorder %s42, %s58
      %p60 = scmp.eq.s32.totalorder %s22, 0
      %p61 = por %p59, %p60
      %s62 = ssub.s32 %s24, %s31
      %p63 = scmp.eq.s32.totalorder %s62, 0
      %s65 = sadd.s32 %s64, 1
      %s66 = scalar_select %p63, %s64, %s65
      %p69 = pneg %p63
      %p70 = scmp.eq.s32.totalorder %s16, 1
      %p71 = por %p69, %p70
      %p72 = scmp.ne.s32.totalorder %s64, %s67
      %p73 = scmp.eq.s32.totalorder %s16, 0
      %p74 = por %p72, %p73
      %p75 = scmp.ne.s32.totalorder %s64, %s67
      %p76 = scmp.eq.s32.totalorder %s21, 1
      %p77 = por %p75, %p76
      %p78 = scmp.ne.s32.totalorder %s67, %s68
      %p79 = scmp.eq.s32.totalorder %s21, 0
      %p80 = por %p78, %p79
      %p81 = scmp.ne.s32.totalorder %s67, %s68
      %p82 = scmp.eq.s32.totalorder %s22, 1
      %p83 = por %p81, %p82
      %p85 = scmp.ne.s32.totalorder %s68, %s84
      %p86 = scmp.eq.s32.totalorder %s22, 0
      %p87 = por %p85, %p86
      %s88 = ssub.s32 %s24, %s31
      %p89 = scmp.eq.s32.totalorder %s88, 0
      %s91 = sadd.s32 %s90, 1
      %s92 = scalar_select %p89, %s90, %s91
      %p95 = pneg %p89
      %p96 = scmp.eq.s32.totalorder %s16, 1
      %p97 = por %p95, %p96
      %p98 = scmp.ne.s32.totalorder %s90, %s93
      %p99 = scmp.eq.s32.totalorder %s16, 0
      %p100 = por %p98, %p99
      %p101 = scmp.ne.s32.totalorder %s90, %s93
      %p102 = scmp.eq.s32.totalorder %s21, 1
      %p103 = por %p101, %p102
      %p104 = scmp.ne.s32.totalorder %s93, %s94
      %p105 = scmp.eq.s32.totalorder %s21, 0
      %p106 = por %p104, %p105
      %p107 = scmp.ne.s32.totalorder %s93, %s94
      %p108 = scmp.eq.s32.totalorder %s22, 1
      %p109 = por %p107, %p108
      %p111 = scmp.ne.s32.totalorder %s94, %s110
      %p112 = scmp.eq.s32.totalorder %s22, 0
      %p113 = por %p111, %p112
      %s114 = ssub.s32 %s23, %s35
      %s115 = ssub.s32 %s24, %s31
      %s116 = sor.u32 %s114, %s115
      %p117 = scmp.eq.s32.totalorder %s116, 0
      %s119 = sadd.s32 %s118, 1
      %s120 = scalar_select %p117, %s118, %s119
      %p123 = pneg %p117
      %p124 = scmp.eq.s32.totalorder %s16, 1
      %p125 = por %p123, %p124
      %p126 = scmp.ne.s32.totalorder %s118, %s121
      %p127 = scmp.eq.s32.totalorder %s16, 0
      %p128 = por %p126, %p127
      %p129 = scmp.ne.s32.totalorder %s118, %s121
      %p130 = scmp.eq.s32.totalorder %s21, 1
      %p131 = por %p129, %p130
      %p132 = scmp.ne.s32.totalorder %s121, %s122
      %p133 = scmp.eq.s32.totalorder %s21, 0
      %p134 = por %p132, %p133
      %p135 = scmp.ne.s32.totalorder %s121, %s122
      %p136 = scmp.eq.s32.totalorder %s22, 1
      %p137 = por %p135, %p136
      %p139 = scmp.ne.s32.totalorder %s122, %s138
      %p140 = scmp.eq.s32.totalorder %s22, 0
      %p141 = por %p139, %p140
      %p142 = scmp.le.s32.totalorder 1, %s16
      %p143 = scmp.lt.s32.totalorder %s16, 3
      %p144 = pnand %p142, %p143
      %p145 = pneg %p144
      // Predicated region
      $region9: #{idae_forward.21} parent=5 // pred_check
        _
      $region10: #{idae_forward.21} parent=5 // pred_check_branch
        %147 = sbr.rel (%p144) target = $region12
      $region11: #{idae_forward.21} parent=5 // pred_region
        %s148 = ssub.s32 %s16, 1
        // Predicated region
        $region13: #{idae_forward.21} parent=11 // pred_check
          %p149 = pneg %p80
        $region14: #{idae_forward.21} parent=11 // pred_check_branch
          %151 = sbr.rel (%p149) target = $region16
        $region15: #{idae_forward.21} parent=11 // pred_region
          %s153 = ssub.s32 64, 64
          %154 = vsyncadd [#allocation6], %s153
          %s155 = smul.addr %s26, 64
          %s156 = scalar_lea.hbm %s1, %s155
          %s158 = sshll.u32 [#allocation5], 4
          %s159 = int_to_ptr.vmem [resolvable:$true] %s158
          %161 = dma.hbm_to_vmem [thread:$0]  %s156, 64, %s159, [#allocation6]
        $region16: #{idae_forward.21} parent=11 // pred_fallthru
          _
        // Predicated region
        $region17: #{idae_forward.21} parent=11 // pred_check
          %p162 = pneg %p106
        $region18: #{idae_forward.21} parent=11 // pred_check_branch
          %164 = sbr.rel (%p162) target = $region20
        $region19: #{idae_forward.21} parent=11 // pred_region
          %s166 = ssub.s32 16, 16
          %167 = vsyncadd [#allocation6], %s166
          %s168 = smul.addr %s26, 16
          %s169 = scalar_lea.hbm %s2, %s168
          %s171 = sshll.u32 [#allocation7], 4
          %s172 = int_to_ptr.vmem [resolvable:$true] %s171
          %174 = dma.hbm_to_vmem [thread:$0]  %s169, 16, %s172, [#allocation6]
        $region20: #{idae_forward.21} parent=11 // pred_fallthru
          _
      $region12: #{idae_forward.21} parent=5 // pred_fallthru
        _
      %p175 = scmp.lt.s32.totalorder %s16, 2
      // Predicated region
      $region21: #{idae_forward.21} parent=5 // pred_check
        %p176 = pneg %p175
      $region22: #{idae_forward.21} parent=5 // pred_check_branch
        %178 = sbr.rel (%p176) target = $region24
      $region23: #{idae_forward.21} parent=5 // pred_region
        // Predicated region
        $region25: #{idae_forward.21} parent=23 // pred_check
          %p179 = pneg %p48
        $region26: #{idae_forward.21} parent=23 // pred_check_branch
          %181 = sbr.rel (%p179) target = $region28
        $region27: #{idae_forward.21} parent=23 // pred_region
          %s182 = sand.u32 %s38, 1
          %s183 = scalar_lea.sflag [#allocation3], %s182
          %s184 = sand.u32 %s38, 1
          %s185 = smul.addr %s184, 32
          %s186 = scalar_lea.vmem [#allocation2], %s185
          %s187 = smul.u32 8, %s23
          %s189 = ssub.s32 512, 512
          %190 = vsyncadd %s183, %s189
          %s191 = smul.addr %s187, 64
          %s192 = scalar_lea.hbm %s0, %s191
          %s193 = sshll.u32 %s186, 4
          %s194 = int_to_ptr.vmem [resolvable:$true] %s193
          %199 = dma.hbm_to_vmem [thread:$0]  %s192, 512, %s194, %s183, 64, 64, 4
        $region28: #{idae_forward.21} parent=23 // pred_fallthru
          _
      $region24: #{idae_forward.21} parent=5 // pred_fallthru
        _
      %p200 = scmp.le.s32.totalorder 1, %s16
      %p201 = scmp.lt.s32.totalorder %s16, 3
      %p202 = pnand %p200, %p201
      %p203 = pneg %p202
      // Predicated region
      $region29: #{idae_forward.21} parent=5 // pred_check
        _
      $region30: #{idae_forward.21} parent=5 // pred_check_branch
        %205 = sbr.rel (%p202) target = $region32
      $region31: #{idae_forward.21} parent=5 // pred_region
        %s206 = ssub.s32 %s16, 1
        %s207 = sand.u32 %s41, 1
        %s208 = scalar_lea.sflag [#allocation3], %s207
        %s209 = sand.u32 %s41, 1
        %s210 = smul.addr %s209, 32
        %s211 = scalar_lea.vmem [#allocation2], %s210
        // Predicated region
        $region33: #{idae_forward.21} parent=31 // pred_check
          %p212 = pneg %p54
        $region34: #{idae_forward.21} parent=31 // pred_check_branch
          %214 = sbr.rel (%p212) target = $region36
        $region35: #{idae_forward.21} parent=31 // pred_region
          %215 = dma.done %s208, 512
        $region36: #{idae_forward.21} parent=31 // pred_fallthru
          _
        // Predicated region
        $region37: #{idae_forward.21} parent=31 // pred_check
          %p216 = pneg %p80
        $region38: #{idae_forward.21} parent=31 // pred_check_branch
          %218 = sbr.rel (%p216) target = $region40
        $region39: #{idae_forward.21} parent=31 // pred_region
          %219 = dma.done [#allocation6], 64
        $region40: #{idae_forward.21} parent=31 // pred_fallthru
          _
        // Predicated region
        $region41: #{idae_forward.21} parent=31 // pred_check
          %p220 = pneg %p106
        $region42: #{idae_forward.21} parent=31 // pred_check_branch
          %222 = sbr.rel (%p220) target = $region44
        $region43: #{idae_forward.21} parent=31 // pred_region
          %223 = dma.done [#allocation6], 16
        $region44: #{idae_forward.21} parent=31 // pred_fallthru
          _
        %s224 = sand.u32 %s41, 1
        %s225 = scalar_lea.sflag [#allocation3], %s224
        %s226 = sand.u32 %s41, 1
        %s227 = smul.addr %s226, 32
        %s228 = scalar_lea.vmem [#allocation2], %s227
        %p229 = pneg %p54
        %p230 = pneg %p51
        %p231 = pneg %p80
        %p232 = pneg %p77
        %p233 = pneg %p106
        %p234 = pneg %p103
        %p235 = pneg %p134
        %p236 = pneg %p131
        %s237 = sand.u32 %s121, 1
        %s238 = scalar_lea.sflag [#allocation4], %s237
        %s239 = sand.u32 %s121, 1
        %s240 = smul.addr %s239, 64
        %s241 = scalar_lea.vmem [#allocation8], %s240
        %s242 = smul.u32 8, %s25
        %s243 = smul.u32 8, %s25
        %v245 = vld [vmem:[%s211] sm:$0xf]
        %v246 = vld [vmem:[%s211 + $0x4] sm:$0xf]
        %v247 = vld [vmem:[%s211 + $0x8] sm:$0xf]
        %v248 = vld [vmem:[%s211 + $0xc] sm:$0xf]
        %v249 = vld [vmem:[%s211 + $0x10] sm:$0xf]
        %v250 = vld [vmem:[%s211 + $0x14] sm:$0xf]
        %v251 = vld [vmem:[%s211 + $0x18] sm:$0xf]
        %v252 = vld [vmem:[%s211 + $0x1c] sm:$0xf]
        %v253 = vld [vmem:[#allocation5] sm:$0xf]
        %v254 = vld [vmem:[#allocation7] sm:$0x1]
        %v256 = vlaneseq
        %v257 = vshrl.u32 %v256, 7
        %v258 = vsub.s32 0, %v257
        %v259 = vrot.slane %v254, %v258
        %v269 = vunpack.c.l.b16 %v245
        %v270 = vunpack.c.l.b16 %v246
        %v271 = vunpack.c.l.b16 %v247
        %v272 = vunpack.c.l.b16 %v248
        %v273 = vunpack.c.l.b16 %v249
        %v274 = vunpack.c.l.b16 %v250
        %v275 = vunpack.c.l.b16 %v251
        %v276 = vunpack.c.l.b16 %v252
        %v277 = vpack.c.b16 %v270, %v269
        %v278 = vpack.c.b16 %v272, %v271
        %v279 = vpack.c.b16 %v274, %v273
        %v280 = vpack.c.b16 %v276, %v275
        %vm281 = vcmask 64512
        %v283 = vsel %vm281, %v277, 0
        %v286 = vsel %vm281, %v278, 0
        %v289 = vsel %vm281, %v279, 0
        %v292 = vsel %vm281, %v280, 0
        %vm294 = vcmask 1043456
        %v296 = vsel %vm294, %v253, 0
        %298 = vmatprep.subr.bf16.mxu0 0
        %299 = vmatpush1.bf16.msra.mxu0 %v296
        %300 = vmatprep.subr.bf16.mxu0 0
        %301 = vmatpush1.bf16.msra.mxu0 0
        %302 = vmatprep.subr.bf16.mxu0 0
        %303 = vmatpush1.bf16.msra.mxu0 0
        %304 = vmatprep.subr.bf16.mxu0 0
        %305 = vmatpush1.bf16.msra.mxu0 0
        %306 = vmatprep.subr.bf16.mxu0 0
        %307 = vmatpush1.bf16.msra.mxu0 0
        %308 = vmatprep.subr.bf16.mxu0 0
        %309 = vmatpush1.bf16.msra.mxu0 0
        %310 = vmatprep.subr.bf16.mxu0 0
        %311 = vmatpush1.bf16.msra.mxu0 0
        %312 = vmatprep.subr.bf16.mxu0 0
        %313 = vmatpush1.bf16.msra.mxu0 0
        %314 = vmatprep.subr.bf16.mxu0 0
        %315 = vmatpush1.bf16.msra.mxu0 0
        %316 = vmatprep.subr.bf16.mxu0 0
        %317 = vmatpush1.bf16.msra.mxu0 0
        %318 = vmatprep.subr.bf16.mxu0 0
        %319 = vmatpush1.bf16.msra.mxu0 0
        %320 = vmatprep.subr.bf16.mxu0 0
        %321 = vmatpush1.bf16.msra.mxu0 0
        %322 = vmatprep.subr.bf16.mxu0 0
        %323 = vmatpush1.bf16.msra.mxu0 0
        %324 = vmatprep.subr.bf16.mxu0 0
        %325 = vmatpush1.bf16.msra.mxu0 0
        %326 = vmatprep.subr.bf16.mxu0 0
        %327 = vmatpush1.bf16.msra.mxu0 0
        %328 = vmatprep.subr.bf16.mxu0 0
        %329 = vmatpush1.bf16.msra.mxu0 0
        %330 = vmatprep.mubr.bf16.mxu0 0
        %331 = vmatmul.mubr.bf16.gmra.mrb[0].mxu0 %v283
        %v332 = vpop.f32.mrb[0].mxu0
        %v333 = vadd.f32 %v259, %v332
        %v334 = vpop.f32.mrb[0].mxu0
        %v335 = vpop.f32.mrb[0].mxu0
        %v336 = vadd.f32 %v259, %v335
        %v337 = vpop.f32.mrb[0].mxu0
        %338 = vmatprep.mubr.bf16.mxu0 0
        %339 = vmatmul.mubr.bf16.gmra.mrb[0].mxu0 %v286
        %v340 = vpop.f32.mrb[0].mxu0
        %v341 = vadd.f32 %v259, %v340
        %v342 = vpop.f32.mrb[0].mxu0
        %v343 = vpop.f32.mrb[0].mxu0
        %v344 = vadd.f32 %v259, %v343
        %v345 = vpop.f32.mrb[0].mxu0
        %346 = vmatprep.mubr.bf16.mxu0 0
        %347 = vmatmul.mubr.bf16.gmra.mrb[0].mxu0 %v289
        %v348 = vpop.f32.mrb[0].mxu0
        %v349 = vadd.f32 %v259, %v348
        %v350 = vpop.f32.mrb[0].mxu0
        %v351 = vpop.f32.mrb[0].mxu0
        %v352 = vadd.f32 %v259, %v351
        %v353 = vpop.f32.mrb[0].mxu0
        %354 = vmatprep.mubr.bf16.mxu0 0
        %355 = vmatmul.mubr.bf16.gmra.mrb[0].mxu0 %v292
        %v356 = vpop.f32.mrb[0].mxu0
        %v357 = vadd.f32 %v259, %v356
        %v358 = vpop.f32.mrb[0].mxu0
        %v359 = vpop.f32.mrb[0].mxu0
        %v360 = vadd.f32 %v259, %v359
        %v361 = vpop.f32.mrb[0].mxu0
        %362 = vdwg.mxu0
        %v363 = vxor.u32 %v333, 2147483648
        %v364 = vxor.u32 %v336, 2147483648
        %v365 = vxor.u32 %v341, 2147483648
        %v366 = vxor.u32 %v344, 2147483648
        %v367 = vxor.u32 %v349, 2147483648
        %v368 = vxor.u32 %v352, 2147483648
        %v369 = vxor.u32 %v357, 2147483648
        %v370 = vxor.u32 %v360, 2147483648
        %v371 = vmul.f32 %v363, 1.442695
        %v372 = vpow.pop %v371
        %v373 = vmul.f32 %v364, 1.442695
        %v374 = vpow.pop %v373
        %v375 = vmul.f32 %v365, 1.442695
        %v376 = vpow.pop %v375
        %v377 = vmul.f32 %v366, 1.442695
        %v378 = vpow.pop %v377
        %v379 = vmul.f32 %v367, 1.442695
        %v380 = vpow.pop %v379
        %v381 = vmul.f32 %v368, 1.442695
        %v382 = vpow.pop %v381
        %v383 = vmul.f32 %v369, 1.442695
        %v384 = vpow.pop %v383
        %v385 = vmul.f32 %v370, 1.442695
        %v386 = vpow.pop %v385
        %v387 = vadd.f32 %v372, 1.0
        %v388 = vadd.f32 %v374, 1.0
        %v389 = vadd.f32 %v376, 1.0
        %v390 = vadd.f32 %v378, 1.0
        %v391 = vadd.f32 %v380, 1.0
        %v392 = vadd.f32 %v382, 1.0
        %v393 = vadd.f32 %v384, 1.0
        %v394 = vadd.f32 %v386, 1.0
        %v395 = vrcp.pop %v387
        %v396 = vmul.f32 1.0, %v395
        %v397 = vrcp.pop %v388
        %v398 = vmul.f32 1.0, %v397
        %v399 = vrcp.pop %v389
        %v400 = vmul.f32 1.0, %v399
        %v401 = vrcp.pop %v390
        %v402 = vmul.f32 1.0, %v401
        %v403 = vrcp.pop %v391
        %v404 = vmul.f32 1.0, %v403
        %v405 = vrcp.pop %v392
        %v406 = vmul.f32 1.0, %v405
        %v407 = vrcp.pop %v393
        %v408 = vmul.f32 1.0, %v407
        %v409 = vrcp.pop %v394
        %v410 = vmul.f32 1.0, %v409
        %411 = vst [vmem:[%s241] sm:$0xff] %v396
        %412 = vst [vmem:[%s241 + $0x8] sm:$0xff] %v398
        %413 = vst [vmem:[%s241 + $0x10] sm:$0xff] %v400
        %414 = vst [vmem:[%s241 + $0x18] sm:$0xff] %v402
        %415 = vst [vmem:[%s241 + $0x20] sm:$0xff] %v404
        %416 = vst [vmem:[%s241 + $0x28] sm:$0xff] %v406
        %417 = vst [vmem:[%s241 + $0x30] sm:$0xff] %v408
        %418 = vst [vmem:[%s241 + $0x38] sm:$0xff] %v410
        %s419 = sand.u32 %s121, 1
        %s420 = scalar_lea.sflag [#allocation4], %s419
        %s421 = sand.u32 %s121, 1
        %s422 = smul.addr %s421, 64
        %s423 = scalar_lea.vmem [#allocation8], %s422
        // Predicated region
        $region45: #{idae_forward.21} parent=31 // pred_check
          %p424 = pneg %p131
        $region46: #{idae_forward.21} parent=31 // pred_check_branch
          %426 = sbr.rel (%p424) target = $region48
        $region47: #{idae_forward.21} parent=31 // pred_region
          %s427 = smul.u32 8, %s25
          %s429 = ssub.s32 1024, 1024
          %430 = vsyncadd %s420, %s429
          %s431 = sadd.s32 %s26, %s427
          %s432 = smul.addr %s431, 128
          %s433 = scalar_lea.hbm %s3, %s432
          %s434 = sshll.u32 %s423, 4
          %s435 = int_to_ptr.vmem [resolvable:$true] %s434
          %440 = dma.vmem_to_hbm [thread:$0]  %s435, 1024, %s433, %s420, 128, 128, 8
        $region48: #{idae_forward.21} parent=31 // pred_fallthru
          _
      $region32: #{idae_forward.21} parent=5 // pred_fallthru
        _
      %p441 = scmp.le.s32.totalorder 2, %s16
      // Predicated region
      $region49: #{idae_forward.21} parent=5 // pred_check
        %p442 = pneg %p441
      $region50: #{idae_forward.21} parent=5 // pred_check_branch
        %444 = sbr.rel (%p442) target = $region52
      $region51: #{idae_forward.21} parent=5 // pred_region
        %s445 = ssub.s32 %s16, 2
        // Predicated region
        $region53: #{idae_forward.21} parent=51 // pred_check
          %p446 = pneg %p137
        $region54: #{idae_forward.21} parent=51 // pred_check_branch
          %448 = sbr.rel (%p446) target = $region56
        $region55: #{idae_forward.21} parent=51 // pred_region
          %s449 = sand.u32 %s122, 1
          %s450 = scalar_lea.sflag [#allocation4], %s449
          %s451 = sand.u32 %s122, 1
          %s452 = smul.addr %s451, 64
          %s453 = scalar_lea.vmem [#allocation8], %s452
          %454 = dma.done %s450, 1024
        $region56: #{idae_forward.21} parent=51 // pred_fallthru
          _
      $region52: #{idae_forward.21} parent=5 // pred_fallthru
        _
    $region6: #{idae_forward.21} parent=1 // loop_footer
      %s20 = sadd.s32 1, %s16
    $region7: #{idae_forward.21} parent=1 // loop_footer_branch
      %15 = sbr.rel target = $region3
    $region8: #{idae_forward.21} parent=1 // loop_exit
      _
    %455 = vsyncpa [#allocation3], 1
    %s456 = scalar_lea.sflag [#allocation3], 1
    %457 = vsyncpa %s456, 1
    %458 = vsyncpa [#allocation6], 1
    %459 = vsyncpa [#allocation4], 1
    %s460 = scalar_lea.sflag [#allocation4], 1
    %461 = vsyncpa %s460, 1

</llo_original>
